<compile_context>
chip_gen: v7x
topology: tpu7x:2x2x1
jax: 0.10.0
libtpu: 0.0.40
codegen_flags: <defaults>
</compile_context>

<pallas_src>
import functools

import jax
import jax.numpy as jnp
from jax.experimental import pallas as pl
from jax.experimental.pallas import tpu as pltpu


H = 16                       # LSTM hidden size
EMB = 32                     # query embedding size
K1, S1, C1 = 60, 6, 64       # conv1: kernel, stride, out channels (in = 2)
K2, S2, C2 = 30, 3, 32       # conv2
K3, S3, C3 = 10, 1, 16       # conv3


# ----------------------------- fused Pallas kernel -----------------------------

def _ranknet_kernel(p1_ref, q_ref, hw_ref, hb_ref, cw_ref, cb_ref,
                    w1_ref, b1_ref, w2_ref, b2_ref, w3_ref, b3_ref,
                    wx_ref, wh_ref, bg_ref, ws_ref, bs_ref,
                    o_ref,
                    a1_scr, a2_scr,
                    *, PB, T1, T2, T3):
    f32 = jnp.float32
    bf16 = jnp.bfloat16
    NB = 2 * PB                    # sequences in this block (PB pairs)
    RES = (T1 // S2) * NB          # a1 rows per conv2-stride residue class
    NT2 = NB * T2
    NT3 = NB * T3

    # ---- initial LSTM state from the query embedding (h_layer / c_layer).
    qc = q_ref[...]                                                  # (NB, 32)
    h = jnp.dot(qc, hw_ref[...], preferred_element_type=f32) + hb_ref[...]
    c = jnp.dot(qc, cw_ref[...], preferred_element_type=f32) + cb_ref[...]

    # ---- conv1: one MXU matmul on the pre-built bf16 patch matrix.
    #      Row order is (r, m, b) with t1 = S2*m + r (residue-major).
    a1 = jnp.dot(p1_ref[...], w1_ref[...], preferred_element_type=f32) + b1_ref[...]
    a1_scr[...] = jnp.maximum(a1, 0.0).astype(bf16)          # (NB*T1, 64) bf16

    # ---- conv2 (Cin=64, K=30, stride=3): per-tap matmul accumulation.
    #      Tap k = S2*j + r needs, for output row (t2, b), the a1 row
    #      (b, t1 = S2*(t2+j) + r) = residue-major row r*RES + (t2+j)*NB + b,
    #      so the whole tap operand is the contiguous block starting at
    #      r*RES + j*NB.  Output rows come out (t2, b)-major.
    a2 = jnp.zeros((NT2, C2), f32)
    for r in range(S2):
        for j in range(K2 // S2):
            k = S2 * j + r
            start = r * RES + j * NB
            a2 = a2 + jnp.dot(a1_scr[start:start + NT2, :], w2_ref[k],
                              preferred_element_type=f32)
    a2_scr[...] = jnp.maximum(a2 + b2_ref[...], 0.0).astype(bf16)   # (NB*T2, 32)

    # ---- conv3 (Cin=32, K=10, stride=1, no ReLU): per-tap accumulation on
    #      contiguous blocks; output rows are (t3, b)-major == t-major LSTM feed.
    feats = jnp.zeros((NT3, C3), f32)
    for j in range(K3):
        feats = feats + jnp.dot(a2_scr[j * NB:j * NB + NT3, :], w3_ref[j],
                                preferred_element_type=f32)
    feats = feats + b3_ref[...]                              # (NB*T3, 16) f32

    # ---- LSTM: gates (i,f,g,o) concatenated along 64 lanes.  Input projection
    #      (incl. the hoisted b_ih + b_hh bias) is one matmul outside the
    #      recurrence; each step reads a contiguous NB-row slice of xp.
    xp = jnp.dot(feats.astype(bf16), wx_ref[...],
                 preferred_element_type=f32) + bg_ref[...]   # (NB*T3, 64)
    for t in range(T3):
        x_t = xp[t * NB:(t + 1) * NB, :]
        gates = x_t + jnp.dot(h.astype(bf16), wh_ref[...],
                              preferred_element_type=f32)
        i_g = jax.nn.sigmoid(gates[:, 0 * H:1 * H])
        f_g = jax.nn.sigmoid(gates[:, 1 * H:2 * H])
        g_g = jnp.tanh(gates[:, 2 * H:3 * H])
        o_g = jax.nn.sigmoid(gates[:, 3 * H:4 * H])
        c = f_g * c + i_g * g_g
        h = o_g * jnp.tanh(c)

    # ---- score layer as a lane reduce, then the pairwise sigmoid.
    #      Rows [0, PB) are sequence 1, [PB, 2PB) sequence 2 of the same pairs.
    s = jnp.sum(h * ws_ref[...], axis=-1, keepdims=True) + bs_ref[...]   # (NB,1)
    o_ref[...] = jax.nn.sigmoid(s[:PB, :] - s[PB:, :])


# ------------------------------ wrapper / params ------------------------------

def init_params(key, num_q):
    ks = jax.random.split(key, 17)

    def rnd(k, shape, scale=0.05):
        return scale * jax.random.normal(k, shape, dtype=jnp.float32)

    return {
        'emb':     rnd(ks[0], (num_q, EMB), 0.5),
        'h_w':     rnd(ks[1], (H, EMB)),  'h_b': rnd(ks[2], (H,)),
        'c_w':     rnd(ks[3], (H, EMB)),  'c_b': rnd(ks[4], (H,)),
        'conv1_w': rnd(ks[5], (C1, 2, K1)),   'conv1_b': rnd(ks[6], (C1,)),
        'conv2_w': rnd(ks[7], (C2, C1, K2)),  'conv2_b': rnd(ks[8], (C2,)),
        'conv3_w': rnd(ks[9], (C3, C2, K3)),  'conv3_b': rnd(ks[10], (C3,)),
        'w_ih':    rnd(ks[11], (4 * H, H)), 'w_hh': rnd(ks[12], (4 * H, H)),
        'b_ih':    rnd(ks[13], (4 * H,)),   'b_hh': rnd(ks[14], (4 * H,)),
        'score_w': rnd(ks[15], (1, H)),     'score_b': rnd(ks[16], (1,)),
    }


def _conv_w_mat(w):
    """PyTorch conv weight (Cout, Cin, K) -> im2col matmul weight (K*Cin, Cout)."""
    Cout, Cin, K = w.shape
    return jnp.transpose(w, (2, 1, 0)).reshape(K * Cin, Cout)


@functools.partial(jax.jit, static_argnames=("pairs_per_block",))
def rank_net(params, x1, x2, q, pairs_per_block=None):
    B, Cin, L = x1.shape
    assert Cin == 2
    assert L >= K1
    T1 = (L - K1) // S1 + 1
    # Residue-major conv1 layout (and the per-tap conv2 accumulation) requires:
    assert T1 >= K2 and T1 % S2 == 0 and K2 % S2 == 0, \
        "conv2 residue decomposition needs T1 and K2 divisible by the conv2 stride"
    T2 = (T1 - K2) // S2 + 1
    assert T2 >= K3
    T3 = (T2 - K3) // S3 + 1

    if pairs_per_block is None:
        # Split the batch over (at least) two grid programs so v7x's second
        # TensorCore has work; on v5e/v6e the parallel grid simply iterates.
        pairs_per_block = B // 2 if (B % 2 == 0 and B >= 2) else B
    assert B % pairs_per_block == 0
    PB = pairs_per_block
    G = B // PB
    NB = 2 * PB
    ROWS1 = NB * T1

    bf16 = jnp.bfloat16

    # --- conv1 im2col in the XLA wrapper (review: precompute the patch matrix,
    #     delete the in-kernel p1 scratch and its misaligned stores).
    #     Within a block: rows [0,PB) = seq1 of the block's pairs, [PB,2PB) = seq2.
    x1b = x1.reshape(G, PB, 2, L)
    x2b = x2.reshape(G, PB, 2, L)
    xb = jnp.concatenate([x1b, x2b], axis=1)                 # (G, NB, 2, L)
    x_cl = jnp.transpose(xb, (0, 1, 3, 2))                   # (G, NB, L, 2)
    taps = [x_cl[:, :, k:k + S1 * (T1 - 1) + 1:S1, :] for k in range(K1)]
    p1 = jnp.stack(taps, axis=3)                             # (G, NB, T1, K1, 2)
    p1 = p1.reshape(G, NB, T1 // S2, S2, K1 * 2)             # t1 = m*S2 + r
    p1 = jnp.transpose(p1, (0, 3, 2, 1, 4))                  # -> [g, r, m, b, :]
    p1 = p1.reshape(G, ROWS1, K1 * 2).astype(bf16)           # row = r*RES + m*NB + b

    # Embedding row gather stays in XLA glue (data-dependent parameter gather).
    qc = params['emb'][q.reshape(G, PB)]                     # (G, PB, 32)
    qc = jnp.concatenate([qc, qc], axis=1)                   # (G, NB, 32)

    # Weight repacks (cheap XLA).  MXU operands go to bf16; biases stay f32.
    w1m = _conv_w_mat(params['conv1_w']).astype(bf16)        # (120, 64)
    w2t = jnp.transpose(params['conv2_w'], (2, 1, 0)).astype(bf16)   # (30, 64, 32)
    w3t = jnp.transpose(params['conv3_w'], (2, 1, 0)).astype(bf16)   # (10, 32, 16)
    b1 = params['conv1_b'].reshape(1, C1)
    b2 = params['conv2_b'].reshape(1, C2)
    b3 = params['conv3_b'].reshape(1, C3)
    hw, hb = params['h_w'].T, params['h_b'].reshape(1, H)
    cw, cb = params['c_w'].T, params['c_b'].reshape(1, H)
    wx = params['w_ih'].T.astype(bf16)                       # (16, 64), gates i,f,g,o
    wh = params['w_hh'].T.astype(bf16)                       # (16, 64)
    bg = (params['b_ih'] + params['b_hh']).reshape(1, 4 * H)
    ws = params['score_w']                                   # (1, 16)
    bs = params['score_b'].reshape(1, 1)

    operands = [p1, qc, hw, hb, cw, cb, w1m, b1, w2t, b2, w3t, b3,
                wx, wh, bg, ws, bs]

    def blk_spec(arr):
        # Blocked over the pair-block grid axis (leading dim squeezed away).
        nd = arr.ndim
        return pl.BlockSpec((None,) + arr.shape[1:],
                            lambda g, nd=nd: (g,) + (0,) * (nd - 1))

    def rep_spec(arr):
        # Whole array resident in VMEM; constant index_map -> DMA'd once.
        nd = arr.ndim
        return pl.BlockSpec(arr.shape, lambda g, nd=nd: (0,) * nd)

    in_specs = [blk_spec(p1), blk_spec(qc)] + [rep_spec(a) for a in operands[2:]]
    out_spec = pl.BlockSpec((None, PB, 1), lambda g: (g, 0, 0))

    kernel = functools.partial(_ranknet_kernel, PB=PB, T1=T1, T2=T2, T3=T3)

    # VMEM footprint per program: <1 MB (patches + weights + bf16 scratch) --
    # far under the 32 MiB scoped default on all of v5e/v6e/v7x, so no extra
    # vmem_limit_bytes / tiling is needed.
    out = pl.pallas_call(
        kernel,
        out_shape=jax.ShapeDtypeStruct((G, PB, 1), jnp.float32),
        grid=(G,),
        in_specs=in_specs,
        out_specs=out_spec,
        scratch_shapes=[
            pltpu.VMEM((NB * T1, C1), bf16),   # conv1 ReLU output, residue-major rows
            pltpu.VMEM((NB * T2, C2), bf16),   # conv2 ReLU output, (t2, b)-major rows
        ],
        compiler_params=pltpu.CompilerParams(
            dimension_semantics=("parallel",)),
    )(*operands)
    return out.reshape(B, 1)


# -------------------------- pure-JAX reference check --------------------------

@jax.jit
def _reference_forward(params, x1, x2, q):
    bf16 = jnp.bfloat16

    def conv1d_ref(x_blc, w, b, stride, relu):
        Bq, Lq, Cin = x_blc.shape
        Cout, _, K = w.shape
        T = (Lq - K) // stride + 1
        patches = jnp.stack(
            [x_blc[:, k:k + stride * (T - 1) + 1:stride, :] for k in range(K)],
            axis=2)
        patches = patches.reshape(Bq * T, K * Cin).astype(bf16)
        w_mat = jnp.transpose(w, (2, 1, 0)).reshape(K * Cin, Cout).astype(bf16)
        out = jnp.dot(patches, w_mat, preferred_element_type=jnp.float32) + b
        if relu:
            out = jnp.maximum(out, 0.0)
        return out.reshape(Bq, T, Cout)

    def score(x):
        qc = params['emb'][q]
        h = qc @ params['h_w'].T + params['h_b']
        c = qc @ params['c_w'].T + params['c_b']
        t = jnp.transpose(x, (0, 2, 1))
        t = conv1d_ref(t, params['conv1_w'], params['conv1_b'], S1, True)
        t = conv1d_ref(t, params['conv2_w'], params['conv2_b'], S2, True)
        t = conv1d_ref(t, params['conv3_w'], params['conv3_b'], S3, False)
        bg = params['b_ih'] + params['b_hh']
        w_ih_b = params['w_ih'].astype(bf16)
        w_hh_b = params['w_hh'].astype(bf16)
        for step in range(t.shape[1]):
            g = (jnp.dot(t[:, step, :].astype(bf16), w_ih_b.T,
                         preferred_element_type=jnp.float32)
                 + jnp.dot(h.astype(bf16), w_hh_b.T,
                           preferred_element_type=jnp.float32) + bg)
            i_g = jax.nn.sigmoid(g[:, 0 * H:1 * H])
            f_g = jax.nn.sigmoid(g[:, 1 * H:2 * H])
            g_g = jnp.tanh(g[:, 2 * H:3 * H])
            o_g = jax.nn.sigmoid(g[:, 3 * H:4 * H])
            c = f_g * c + i_g * g_g
            h = o_g * jnp.tanh(c)
        return h @ params['score_w'].T + params['score_b']

    return jax.nn.sigmoid(score(x1) - score(x2))


# ------------------------------------ main ------------------------------------

if __name__ == "__main__":
    num_q = 10
    B, L = 2, 432                 # conv chain: 432 -> 63 -> 12 -> 3 time steps
    key = jax.random.PRNGKey(0)
    kp, k1, k2, kq = jax.random.split(key, 4)

    params = init_params(kp, num_q)
    x1 = jax.random.normal(k1, (B, 2, L), dtype=jnp.float32)
    x2 = jax.random.normal(k2, (B, 2, L), dtype=jnp.float32)
    q = jax.random.randint(kq, (B,), 0, num_q, dtype=jnp.int32)

    out = jax.block_until_ready(rank_net(params, x1, x2, q))

    assert out.shape == (B, 1), out.shape
    assert bool(jnp.all(jnp.isfinite(out)))
    assert bool(jnp.all((out > 0.0) & (out < 1.0)))

    ref = jax.block_until_ready(_reference_forward(params, x1, x2, q))
    err = float(jnp.max(jnp.abs(out - ref)))
    assert err < 5e-3, f"kernel/reference mismatch: {err}"

    print("KERNEL_OK")
</pallas_src>

<mosaic_0001>
module attributes {stable_mosaic.version = 11 : i64} {
  func.func @_ranknet_kernel(%arg0: i32, %arg1: memref<1x126x120xbf16, #tpu.memory_space<vmem>>, %arg2: memref<1x2x32xf32, #tpu.memory_space<vmem>>, %arg3: memref<32x16xf32, #tpu.memory_space<vmem>>, %arg4: memref<1x16xf32, #tpu.memory_space<vmem>>, %arg5: memref<32x16xf32, #tpu.memory_space<vmem>>, %arg6: memref<1x16xf32, #tpu.memory_space<vmem>>, %arg7: memref<120x64xbf16, #tpu.memory_space<vmem>>, %arg8: memref<1x64xf32, #tpu.memory_space<vmem>>, %arg9: memref<30x64x32xbf16, #tpu.memory_space<vmem>>, %arg10: memref<1x32xf32, #tpu.memory_space<vmem>>, %arg11: memref<10x32x16xbf16, #tpu.memory_space<vmem>>, %arg12: memref<1x16xf32, #tpu.memory_space<vmem>>, %arg13: memref<16x64xbf16, #tpu.memory_space<vmem>>, %arg14: memref<16x64xbf16, #tpu.memory_space<vmem>>, %arg15: memref<1x64xf32, #tpu.memory_space<vmem>>, %arg16: memref<1x16xf32, #tpu.memory_space<vmem>>, %arg17: memref<1x1xf32, #tpu.memory_space<vmem>>, %arg18: memref<1x1x1xf32, #tpu.memory_space<vmem>>, %arg19: memref<126x64xbf16, #tpu.memory_space<vmem>>, %arg20: memref<24x32xbf16, #tpu.memory_space<vmem>>) attributes {dimension_semantics = [#tpu.dimension_semantics<parallel>], iteration_bounds = array<i64: 2>, scalar_prefetch = 0 : i64, scratch_operands = 2 : i64, tpu.core_type = #tpu.core_type<tc>, window_params = [{transform_indices = @transform_0, window_bounds = array<i64: 1, 126, 120>}, {transform_indices = @transform_1, window_bounds = array<i64: 1, 2, 32>}, {pipeline_mode = #tpu.pipeline_mode<synchronous>, transform_indices = @transform_2, window_bounds = array<i64: 32, 16>}, {pipeline_mode = #tpu.pipeline_mode<synchronous>, transform_indices = @transform_3, window_bounds = array<i64: 1, 16>}, {pipeline_mode = #tpu.pipeline_mode<synchronous>, transform_indices = @transform_4, window_bounds = array<i64: 32, 16>}, {pipeline_mode = #tpu.pipeline_mode<synchronous>, transform_indices = @transform_5, window_bounds = array<i64: 1, 16>}, {pipeline_mode = #tpu.pipeline_mode<synchronous>, transform_indices = @transform_6, window_bounds = array<i64: 120, 64>}, {pipeline_mode = #tpu.pipeline_mode<synchronous>, transform_indices = @transform_7, window_bounds = array<i64: 1, 64>}, {pipeline_mode = #tpu.pipeline_mode<synchronous>, transform_indices = @transform_8, window_bounds = array<i64: 30, 64, 32>}, {pipeline_mode = #tpu.pipeline_mode<synchronous>, transform_indices = @transform_9, window_bounds = array<i64: 1, 32>}, {pipeline_mode = #tpu.pipeline_mode<synchronous>, transform_indices = @transform_10, window_bounds = array<i64: 10, 32, 16>}, {pipeline_mode = #tpu.pipeline_mode<synchronous>, transform_indices = @transform_11, window_bounds = array<i64: 1, 16>}, {pipeline_mode = #tpu.pipeline_mode<synchronous>, transform_indices = @transform_12, window_bounds = array<i64: 16, 64>}, {pipeline_mode = #tpu.pipeline_mode<synchronous>, transform_indices = @transform_13, window_bounds = array<i64: 16, 64>}, {pipeline_mode = #tpu.pipeline_mode<synchronous>, transform_indices = @transform_14, window_bounds = array<i64: 1, 64>}, {pipeline_mode = #tpu.pipeline_mode<synchronous>, transform_indices = @transform_15, window_bounds = array<i64: 1, 16>}, {pipeline_mode = #tpu.pipeline_mode<synchronous>, transform_indices = @transform_16, window_bounds = array<i64: 1, 1>}, {transform_indices = @transform_17, window_bounds = array<i64: 1, 1, 1>}]} {
    %c0 = arith.constant 0 : index
    %c0_0 = arith.constant 0 : index
    %c0_1 = arith.constant 0 : index
    %0 = vector.load %arg2[%c0, %c0_0, %c0_1] : memref<1x2x32xf32, #tpu.memory_space<vmem>>, vector<1x2x32xf32>
    %1 = vector.shape_cast %0 : vector<1x2x32xf32> to vector<2x32xf32>
    %c0_2 = arith.constant 0 : index
    %c0_3 = arith.constant 0 : index
    %2 = vector.load %arg3[%c0_2, %c0_3] : memref<32x16xf32, #tpu.memory_space<vmem>>, vector<32x16xf32>
    %cst = arith.constant dense<0.000000e+00> : vector<2x16xf32>
    %3 = tpu.matmul %1, %2, %cst {dimension_numbers = #tpu.dot_dimension_numbers<[1], [0], [0], [1], [0, 0, 1, 1], [], []>} : vector<2x32xf32>, vector<32x16xf32>, vector<2x16xf32> -> vector<2x16xf32>
    %c0_4 = arith.constant 0 : index
    %c0_5 = arith.constant 0 : index
    %4 = vector.load %arg4[%c0_4, %c0_5] : memref<1x16xf32, #tpu.memory_space<vmem>>, vector<1x16xf32>
    %5 = vector.broadcast %4 : vector<1x16xf32> to vector<2x16xf32>
    %6 = arith.addf %3, %5 : vector<2x16xf32>
    %c0_6 = arith.constant 0 : index
    %c0_7 = arith.constant 0 : index
    %7 = vector.load %arg5[%c0_6, %c0_7] : memref<32x16xf32, #tpu.memory_space<vmem>>, vector<32x16xf32>
    %cst_8 = arith.constant dense<0.000000e+00> : vector<2x16xf32>
    %8 = tpu.matmul %1, %7, %cst_8 {dimension_numbers = #tpu.dot_dimension_numbers<[1], [0], [0], [1], [0, 0, 1, 1], [], []>} : vector<2x32xf32>, vector<32x16xf32>, vector<2x16xf32> -> vector<2x16xf32>
    %c0_9 = arith.constant 0 : index
    %c0_10 = arith.constant 0 : index
    %9 = vector.load %arg6[%c0_9, %c0_10] : memref<1x16xf32, #tpu.memory_space<vmem>>, vector<1x16xf32>
    %10 = vector.broadcast %9 : vector<1x16xf32> to vector<2x16xf32>
    %11 = arith.addf %8, %10 : vector<2x16xf32>
    %c0_11 = arith.constant 0 : index
    %c0_12 = arith.constant 0 : index
    %c0_13 = arith.constant 0 : index
    %12 = vector.load %arg1[%c0_11, %c0_12, %c0_13] : memref<1x126x120xbf16, #tpu.memory_space<vmem>>, vector<1x126x120xbf16>
    %13 = vector.shape_cast %12 : vector<1x126x120xbf16> to vector<126x120xbf16>
    %c0_14 = arith.constant 0 : index
    %c0_15 = arith.constant 0 : index
    %14 = vector.load %arg7[%c0_14, %c0_15] : memref<120x64xbf16, #tpu.memory_space<vmem>>, vector<120x64xbf16>
    %cst_16 = arith.constant dense<0.000000e+00> : vector<126x64xf32>
    %15 = tpu.matmul %13, %14, %cst_16 {dimension_numbers = #tpu.dot_dimension_numbers<[1], [0], [0], [1], [0, 0, 1, 1], [], []>} : vector<126x120xbf16>, vector<120x64xbf16>, vector<126x64xf32> -> vector<126x64xf32>
    %c0_17 = arith.constant 0 : index
    %c0_18 = arith.constant 0 : index
    %16 = vector.load %arg8[%c0_17, %c0_18] : memref<1x64xf32, #tpu.memory_space<vmem>>, vector<1x64xf32>
    %17 = vector.broadcast %16 : vector<1x64xf32> to vector<126x64xf32>
    %18 = arith.addf %15, %17 : vector<126x64xf32>
    %cst_19 = arith.constant 0.000000e+00 : f32
    %19 = vector.broadcast %cst_19 : f32 to vector<126x64xf32>
    %20 = arith.maximumf %18, %19 : vector<126x64xf32>
    %21 = arith.truncf %20 : vector<126x64xf32> to vector<126x64xbf16>
    %c0_20 = arith.constant 0 : index
    %c0_21 = arith.constant 0 : index
    %22 = vector.load %arg19[%c0_20, %c0_21] : memref<126x64xbf16, #tpu.memory_space<vmem>>, vector<126x64xbf16>
    tpu.vector_store %arg19[%c0_20, %c0_21], %21 {strides = array<i32>} : memref<126x64xbf16, #tpu.memory_space<vmem>>, vector<126x64xbf16>,
    %cst_22 = arith.constant 0.000000e+00 : f32
    %23 = vector.broadcast %cst_22 : f32 to vector<24x32xf32>
    %c0_23 = arith.constant 0 : index
    %c0_24 = arith.constant 0 : index
    %24 = vector.load %arg19[%c0_23, %c0_24] : memref<126x64xbf16, #tpu.memory_space<vmem>>, vector<24x64xbf16>
    %c0_25 = arith.constant 0 : index
    %c0_26 = arith.constant 0 : index
    %c0_27 = arith.constant 0 : index
    %25 = vector.load %arg9[%c0_25, %c0_26, %c0_27] : memref<30x64x32xbf16, #tpu.memory_space<vmem>>, vector<1x64x32xbf16>
    %26 = vector.shape_cast %25 : vector<1x64x32xbf16> to vector<64x32xbf16>
    %cst_28 = arith.constant dense<0.000000e+00> : vector<24x32xf32>
    %27 = tpu.matmul %24, %26, %cst_28 {dimension_numbers = #tpu.dot_dimension_numbers<[1], [0], [0], [1], [0, 0, 1, 1], [], []>} : vector<24x64xbf16>, vector<64x32xbf16>, vector<24x32xf32> -> vector<24x32xf32>
    %28 = arith.addf %23, %27 : vector<24x32xf32>
    %c2 = arith.constant 2 : index
    %c0_29 = arith.constant 0 : index
    %29 = vector.load %arg19[%c2, %c0_29] : memref<126x64xbf16, #tpu.memory_space<vmem>>, vector<24x64xbf16>
    %c3 = arith.constant 3 : index
    %c0_30 = arith.constant 0 : index
    %c0_31 = arith.constant 0 : index
    %30 = vector.load %arg9[%c3, %c0_30, %c0_31] : memref<30x64x32xbf16, #tpu.memory_space<vmem>>, vector<1x64x32xbf16>
    %31 = vector.shape_cast %30 : vector<1x64x32xbf16> to vector<64x32xbf16>
    %cst_32 = arith.constant dense<0.000000e+00> : vector<24x32xf32>
    %32 = tpu.matmul %29, %31, %cst_32 {dimension_numbers = #tpu.dot_dimension_numbers<[1], [0], [0], [1], [0, 0, 1, 1], [], []>} : vector<24x64xbf16>, vector<64x32xbf16>, vector<24x32xf32> -> vector<24x32xf32>
    %33 = arith.addf %28, %32 : vector<24x32xf32>
    %c4 = arith.constant 4 : index
    %c0_33 = arith.constant 0 : index
    %34 = vector.load %arg19[%c4, %c0_33] : memref<126x64xbf16, #tpu.memory_space<vmem>>, vector<24x64xbf16>
    %c6 = arith.constant 6 : index
    %c0_34 = arith.constant 0 : index
    %c0_35 = arith.constant 0 : index
    %35 = vector.load %arg9[%c6, %c0_34, %c0_35] : memref<30x64x32xbf16, #tpu.memory_space<vmem>>, vector<1x64x32xbf16>
    %36 = vector.shape_cast %35 : vector<1x64x32xbf16> to vector<64x32xbf16>
    %cst_36 = arith.constant dense<0.000000e+00> : vector<24x32xf32>
    %37 = tpu.matmul %34, %36, %cst_36 {dimension_numbers = #tpu.dot_dimension_numbers<[1], [0], [0], [1], [0, 0, 1, 1], [], []>} : vector<24x64xbf16>, vector<64x32xbf16>, vector<24x32xf32> -> vector<24x32xf32>
    %38 = arith.addf %33, %37 : vector<24x32xf32>
    %c6_37 = arith.constant 6 : index
    %c0_38 = arith.constant 0 : index
    %39 = vector.load %arg19[%c6_37, %c0_38] : memref<126x64xbf16, #tpu.memory_space<vmem>>, vector<24x64xbf16>
    %c9 = arith.constant 9 : index
    %c0_39 = arith.constant 0 : index
    %c0_40 = arith.constant 0 : index
    %40 = vector.load %arg9[%c9, %c0_39, %c0_40] : memref<30x64x32xbf16, #tpu.memory_space<vmem>>, vector<1x64x32xbf16>
    %41 = vector.shape_cast %40 : vector<1x64x32xbf16> to vector<64x32xbf16>
    %cst_41 = arith.constant dense<0.000000e+00> : vector<24x32xf32>
    %42 = tpu.matmul %39, %41, %cst_41 {dimension_numbers = #tpu.dot_dimension_numbers<[1], [0], [0], [1], [0, 0, 1, 1], [], []>} : vector<24x64xbf16>, vector<64x32xbf16>, vector<24x32xf32> -> vector<24x32xf32>
    %43 = arith.addf %38, %42 : vector<24x32xf32>
    %c8 = arith.constant 8 : index
    %c0_42 = arith.constant 0 : index
    %44 = vector.load %arg19[%c8, %c0_42] : memref<126x64xbf16, #tpu.memory_space<vmem>>, vector<24x64xbf16>
    %c12 = arith.constant 12 : index
    %c0_43 = arith.constant 0 : index
    %c0_44 = arith.constant 0 : index
    %45 = vector.load %arg9[%c12, %c0_43, %c0_44] : memref<30x64x32xbf16, #tpu.memory_space<vmem>>, vector<1x64x32xbf16>
    %46 = vector.shape_cast %45 : vector<1x64x32xbf16> to vector<64x32xbf16>
    %cst_45 = arith.constant dense<0.000000e+00> : vector<24x32xf32>
    %47 = tpu.matmul %44, %46, %cst_45 {dimension_numbers = #tpu.dot_dimension_numbers<[1], [0], [0], [1], [0, 0, 1, 1], [], []>} : vector<24x64xbf16>, vector<64x32xbf16>, vector<24x32xf32> -> vector<24x32xf32>
    %48 = arith.addf %43, %47 : vector<24x32xf32>
    %c10 = arith.constant 10 : index
    %c0_46 = arith.constant 0 : index
    %49 = vector.load %arg19[%c10, %c0_46] : memref<126x64xbf16, #tpu.memory_space<vmem>>, vector<24x64xbf16>
    %c15 = arith.constant 15 : index
    %c0_47 = arith.constant 0 : index
    %c0_48 = arith.constant 0 : index
    %50 = vector.load %arg9[%c15, %c0_47, %c0_48] : memref<30x64x32xbf16, #tpu.memory_space<vmem>>, vector<1x64x32xbf16>
    %51 = vector.shape_cast %50 : vector<1x64x32xbf16> to vector<64x32xbf16>
    %cst_49 = arith.constant dense<0.000000e+00> : vector<24x32xf32>
    %52 = tpu.matmul %49, %51, %cst_49 {dimension_numbers = #tpu.dot_dimension_numbers<[1], [0], [0], [1], [0, 0, 1, 1], [], []>} : vector<24x64xbf16>, vector<64x32xbf16>, vector<24x32xf32> -> vector<24x32xf32>
    %53 = arith.addf %48, %52 : vector<24x32xf32>
    %c12_50 = arith.constant 12 : index
    %c0_51 = arith.constant 0 : index
    %54 = vector.load %arg19[%c12_50, %c0_51] : memref<126x64xbf16, #tpu.memory_space<vmem>>, vector<24x64xbf16>
    %c18 = arith.constant 18 : index
    %c0_52 = arith.constant 0 : index
    %c0_53 = arith.constant 0 : index
    %55 = vector.load %arg9[%c18, %c0_52, %c0_53] : memref<30x64x32xbf16, #tpu.memory_space<vmem>>, vector<1x64x32xbf16>
    %56 = vector.shape_cast %55 : vector<1x64x32xbf16> to vector<64x32xbf16>
    %cst_54 = arith.constant dense<0.000000e+00> : vector<24x32xf32>
    %57 = tpu.matmul %54, %56, %cst_54 {dimension_numbers = #tpu.dot_dimension_numbers<[1], [0], [0], [1], [0, 0, 1, 1], [], []>} : vector<24x64xbf16>, vector<64x32xbf16>, vector<24x32xf32> -> vector<24x32xf32>
    %58 = arith.addf %53, %57 : vector<24x32xf32>
    %c14 = arith.constant 14 : index
    %c0_55 = arith.constant 0 : index
    %59 = vector.load %arg19[%c14, %c0_55] : memref<126x64xbf16, #tpu.memory_space<vmem>>, vector<24x64xbf16>
    %c21 = arith.constant 21 : index
    %c0_56 = arith.constant 0 : index
    %c0_57 = arith.constant 0 : index
    %60 = vector.load %arg9[%c21, %c0_56, %c0_57] : memref<30x64x32xbf16, #tpu.memory_space<vmem>>, vector<1x64x32xbf16>
    %61 = vector.shape_cast %60 : vector<1x64x32xbf16> to vector<64x32xbf16>
    %cst_58 = arith.constant dense<0.000000e+00> : vector<24x32xf32>
    %62 = tpu.matmul %59, %61, %cst_58 {dimension_numbers = #tpu.dot_dimension_numbers<[1], [0], [0], [1], [0, 0, 1, 1], [], []>} : vector<24x64xbf16>, vector<64x32xbf16>, vector<24x32xf32> -> vector<24x32xf32>
    %63 = arith.addf %58, %62 : vector<24x32xf32>
    %c16 = arith.constant 16 : index
    %c0_59 = arith.constant 0 : index
    %64 = vector.load %arg19[%c16, %c0_59] : memref<126x64xbf16, #tpu.memory_space<vmem>>, vector<24x64xbf16>
    %c24 = arith.constant 24 : index
    %c0_60 = arith.constant 0 : index
    %c0_61 = arith.constant 0 : index
    %65 = vector.load %arg9[%c24, %c0_60, %c0_61] : memref<30x64x32xbf16, #tpu.memory_space<vmem>>, vector<1x64x32xbf16>
    %66 = vector.shape_cast %65 : vector<1x64x32xbf16> to vector<64x32xbf16>
    %cst_62 = arith.constant dense<0.000000e+00> : vector<24x32xf32>
    %67 = tpu.matmul %64, %66, %cst_62 {dimension_numbers = #tpu.dot_dimension_numbers<[1], [0], [0], [1], [0, 0, 1, 1], [], []>} : vector<24x64xbf16>, vector<64x32xbf16>, vector<24x32xf32> -> vector<24x32xf32>
    %68 = arith.addf %63, %67 : vector<24x32xf32>
    %c18_63 = arith.constant 18 : index
    %c0_64 = arith.constant 0 : index
    %69 = vector.load %arg19[%c18_63, %c0_64] : memref<126x64xbf16, #tpu.memory_space<vmem>>, vector<24x64xbf16>
    %c27 = arith.constant 27 : index
    %c0_65 = arith.constant 0 : index
    %c0_66 = arith.constant 0 : index
    %70 = vector.load %arg9[%c27, %c0_65, %c0_66] : memref<30x64x32xbf16, #tpu.memory_space<vmem>>, vector<1x64x32xbf16>
    %71 = vector.shape_cast %70 : vector<1x64x32xbf16> to vector<64x32xbf16>
    %cst_67 = arith.constant dense<0.000000e+00> : vector<24x32xf32>
    %72 = tpu.matmul %69, %71, %cst_67 {dimension_numbers = #tpu.dot_dimension_numbers<[1], [0], [0], [1], [0, 0, 1, 1], [], []>} : vector<24x64xbf16>, vector<64x32xbf16>, vector<24x32xf32> -> vector<24x32xf32>
    %73 = arith.addf %68, %72 : vector<24x32xf32>
    %c42 = arith.constant 42 : index
    %c0_68 = arith.constant 0 : index
    %74 = vector.load %arg19[%c42, %c0_68] : memref<126x64xbf16, #tpu.memory_space<vmem>>, vector<24x64xbf16>
    %c1 = arith.constant 1 : index
    %c0_69 = arith.constant 0 : index
    %c0_70 = arith.constant 0 : index
    %75 = vector.load %arg9[%c1, %c0_69, %c0_70] : memref<30x64x32xbf16, #tpu.memory_space<vmem>>, vector<1x64x32xbf16>
    %76 = vector.shape_cast %75 : vector<1x64x32xbf16> to vector<64x32xbf16>
    %cst_71 = arith.constant dense<0.000000e+00> : vector<24x32xf32>
    %77 = tpu.matmul %74, %76, %cst_71 {dimension_numbers = #tpu.dot_dimension_numbers<[1], [0], [0], [1], [0, 0, 1, 1], [], []>} : vector<24x64xbf16>, vector<64x32xbf16>, vector<24x32xf32> -> vector<24x32xf32>
    %78 = arith.addf %73, %77 : vector<24x32xf32>
    %c44 = arith.constant 44 : index
    %c0_72 = arith.constant 0 : index
    %79 = vector.load %arg19[%c44, %c0_72] : memref<126x64xbf16, #tpu.memory_space<vmem>>, vector<24x64xbf16>
    %c4_73 = arith.constant 4 : index
    %c0_74 = arith.constant 0 : index
    %c0_75 = arith.constant 0 : index
    %80 = vector.load %arg9[%c4_73, %c0_74, %c0_75] : memref<30x64x32xbf16, #tpu.memory_space<vmem>>, vector<1x64x32xbf16>
    %81 = vector.shape_cast %80 : vector<1x64x32xbf16> to vector<64x32xbf16>
    %cst_76 = arith.constant dense<0.000000e+00> : vector<24x32xf32>
    %82 = tpu.matmul %79, %81, %cst_76 {dimension_numbers = #tpu.dot_dimension_numbers<[1], [0], [0], [1], [0, 0, 1, 1], [], []>} : vector<24x64xbf16>, vector<64x32xbf16>, vector<24x32xf32> -> vector<24x32xf32>
    %83 = arith.addf %78, %82 : vector<24x32xf32>
    %c46 = arith.constant 46 : index
    %c0_77 = arith.constant 0 : index
    %84 = vector.load %arg19[%c46, %c0_77] : memref<126x64xbf16, #tpu.memory_space<vmem>>, vector<24x64xbf16>
    %c7 = arith.constant 7 : index
    %c0_78 = arith.constant 0 : index
    %c0_79 = arith.constant 0 : index
    %85 = vector.load %arg9[%c7, %c0_78, %c0_79] : memref<30x64x32xbf16, #tpu.memory_space<vmem>>, vector<1x64x32xbf16>
    %86 = vector.shape_cast %85 : vector<1x64x32xbf16> to vector<64x32xbf16>
    %cst_80 = arith.constant dense<0.000000e+00> : vector<24x32xf32>
    %87 = tpu.matmul %84, %86, %cst_80 {dimension_numbers = #tpu.dot_dimension_numbers<[1], [0], [0], [1], [0, 0, 1, 1], [], []>} : vector<24x64xbf16>, vector<64x32xbf16>, vector<24x32xf32> -> vector<24x32xf32>
    %88 = arith.addf %83, %87 : vector<24x32xf32>
    %c48 = arith.constant 48 : index
    %c0_81 = arith.constant 0 : index
    %89 = vector.load %arg19[%c48, %c0_81] : memref<126x64xbf16, #tpu.memory_space<vmem>>, vector<24x64xbf16>
    %c10_82 = arith.constant 10 : index
    %c0_83 = arith.constant 0 : index
    %c0_84 = arith.constant 0 : index
    %90 = vector.load %arg9[%c10_82, %c0_83, %c0_84] : memref<30x64x32xbf16, #tpu.memory_space<vmem>>, vector<1x64x32xbf16>
    %91 = vector.shape_cast %90 : vector<1x64x32xbf16> to vector<64x32xbf16>
    %cst_85 = arith.constant dense<0.000000e+00> : vector<24x32xf32>
    %92 = tpu.matmul %89, %91, %cst_85 {dimension_numbers = #tpu.dot_dimension_numbers<[1], [0], [0], [1], [0, 0, 1, 1], [], []>} : vector<24x64xbf16>, vector<64x32xbf16>, vector<24x32xf32> -> vector<24x32xf32>
    %93 = arith.addf %88, %92 : vector<24x32xf32>
    %c50 = arith.constant 50 : index
    %c0_86 = arith.constant 0 : index
    %94 = vector.load %arg19[%c50, %c0_86] : memref<126x64xbf16, #tpu.memory_space<vmem>>, vector<24x64xbf16>
    %c13 = arith.constant 13 : index
    %c0_87 = arith.constant 0 : index
    %c0_88 = arith.constant 0 : index
    %95 = vector.load %arg9[%c13, %c0_87, %c0_88] : memref<30x64x32xbf16, #tpu.memory_space<vmem>>, vector<1x64x32xbf16>
    %96 = vector.shape_cast %95 : vector<1x64x32xbf16> to vector<64x32xbf16>
    %cst_89 = arith.constant dense<0.000000e+00> : vector<24x32xf32>
    %97 = tpu.matmul %94, %96, %cst_89 {dimension_numbers = #tpu.dot_dimension_numbers<[1], [0], [0], [1], [0, 0, 1, 1], [], []>} : vector<24x64xbf16>, vector<64x32xbf16>, vector<24x32xf32> -> vector<24x32xf32>
    %98 = arith.addf %93, %97 : vector<24x32xf32>
    %c52 = arith.constant 52 : index
    %c0_90 = arith.constant 0 : index
    %99 = vector.load %arg19[%c52, %c0_90] : memref<126x64xbf16, #tpu.memory_space<vmem>>, vector<24x64xbf16>
    %c16_91 = arith.constant 16 : index
    %c0_92 = arith.constant 0 : index
    %c0_93 = arith.constant 0 : index
    %100 = vector.load %arg9[%c16_91, %c0_92, %c0_93] : memref<30x64x32xbf16, #tpu.memory_space<vmem>>, vector<1x64x32xbf16>
    %101 = vector.shape_cast %100 : vector<1x64x32xbf16> to vector<64x32xbf16>
    %cst_94 = arith.constant dense<0.000000e+00> : vector<24x32xf32>
    %102 = tpu.matmul %99, %101, %cst_94 {dimension_numbers = #tpu.dot_dimension_numbers<[1], [0], [0], [1], [0, 0, 1, 1], [], []>} : vector<24x64xbf16>, vector<64x32xbf16>, vector<24x32xf32> -> vector<24x32xf32>
    %103 = arith.addf %98, %102 : vector<24x32xf32>
    %c54 = arith.constant 54 : index
    %c0_95 = arith.constant 0 : index
    %104 = vector.load %arg19[%c54, %c0_95] : memref<126x64xbf16, #tpu.memory_space<vmem>>, vector<24x64xbf16>
    %c19 = arith.constant 19 : index
    %c0_96 = arith.constant 0 : index
    %c0_97 = arith.constant 0 : index
    %105 = vector.load %arg9[%c19, %c0_96, %c0_97] : memref<30x64x32xbf16, #tpu.memory_space<vmem>>, vector<1x64x32xbf16>
    %106 = vector.shape_cast %105 : vector<1x64x32xbf16> to vector<64x32xbf16>
    %cst_98 = arith.constant dense<0.000000e+00> : vector<24x32xf32>
    %107 = tpu.matmul %104, %106, %cst_98 {dimension_numbers = #tpu.dot_dimension_numbers<[1], [0], [0], [1], [0, 0, 1, 1], [], []>} : vector<24x64xbf16>, vector<64x32xbf16>, vector<24x32xf32> -> vector<24x32xf32>
    %108 = arith.addf %103, %107 : vector<24x32xf32>
    %c56 = arith.constant 56 : index
    %c0_99 = arith.constant 0 : index
    %109 = vector.load %arg19[%c56, %c0_99] : memref<126x64xbf16, #tpu.memory_space<vmem>>, vector<24x64xbf16>
    %c22 = arith.constant 22 : index
    %c0_100 = arith.constant 0 : index
    %c0_101 = arith.constant 0 : index
    %110 = vector.load %arg9[%c22, %c0_100, %c0_101] : memref<30x64x32xbf16, #tpu.memory_space<vmem>>, vector<1x64x32xbf16>
    %111 = vector.shape_cast %110 : vector<1x64x32xbf16> to vector<64x32xbf16>
    %cst_102 = arith.constant dense<0.000000e+00> : vector<24x32xf32>
    %112 = tpu.matmul %109, %111, %cst_102 {dimension_numbers = #tpu.dot_dimension_numbers<[1], [0], [0], [1], [0, 0, 1, 1], [], []>} : vector<24x64xbf16>, vector<64x32xbf16>, vector<24x32xf32> -> vector<24x32xf32>
    %113 = arith.addf %108, %112 : vector<24x32xf32>
    %c58 = arith.constant 58 : index
    %c0_103 = arith.constant 0 : index
    %114 = vector.load %arg19[%c58, %c0_103] : memref<126x64xbf16, #tpu.memory_space<vmem>>, vector<24x64xbf16>
    %c25 = arith.constant 25 : index
    %c0_104 = arith.constant 0 : index
    %c0_105 = arith.constant 0 : index
    %115 = vector.load %arg9[%c25, %c0_104, %c0_105] : memref<30x64x32xbf16, #tpu.memory_space<vmem>>, vector<1x64x32xbf16>
    %116 = vector.shape_cast %115 : vector<1x64x32xbf16> to vector<64x32xbf16>
    %cst_106 = arith.constant dense<0.000000e+00> : vector<24x32xf32>
    %117 = tpu.matmul %114, %116, %cst_106 {dimension_numbers = #tpu.dot_dimension_numbers<[1], [0], [0], [1], [0, 0, 1, 1], [], []>} : vector<24x64xbf16>, vector<64x32xbf16>, vector<24x32xf32> -> vector<24x32xf32>
    %118 = arith.addf %113, %117 : vector<24x32xf32>
    %c60 = arith.constant 60 : index
    %c0_107 = arith.constant 0 : index
    %119 = vector.load %arg19[%c60, %c0_107] : memref<126x64xbf16, #tpu.memory_space<vmem>>, vector<24x64xbf16>
    %c28 = arith.constant 28 : index
    %c0_108 = arith.constant 0 : index
    %c0_109 = arith.constant 0 : index
    %120 = vector.load %arg9[%c28, %c0_108, %c0_109] : memref<30x64x32xbf16, #tpu.memory_space<vmem>>, vector<1x64x32xbf16>
    %121 = vector.shape_cast %120 : vector<1x64x32xbf16> to vector<64x32xbf16>
    %cst_110 = arith.constant dense<0.000000e+00> : vector<24x32xf32>
    %122 = tpu.matmul %119, %121, %cst_110 {dimension_numbers = #tpu.dot_dimension_numbers<[1], [0], [0], [1], [0, 0, 1, 1], [], []>} : vector<24x64xbf16>, vector<64x32xbf16>, vector<24x32xf32> -> vector<24x32xf32>
    %123 = arith.addf %118, %122 : vector<24x32xf32>
    %c84 = arith.constant 84 : index
    %c0_111 = arith.constant 0 : index
    %124 = vector.load %arg19[%c84, %c0_111] : memref<126x64xbf16, #tpu.memory_space<vmem>>, vector<24x64xbf16>
    %c2_112 = arith.constant 2 : index
    %c0_113 = arith.constant 0 : index
    %c0_114 = arith.constant 0 : index
    %125 = vector.load %arg9[%c2_112, %c0_113, %c0_114] : memref<30x64x32xbf16, #tpu.memory_space<vmem>>, vector<1x64x32xbf16>
    %126 = vector.shape_cast %125 : vector<1x64x32xbf16> to vector<64x32xbf16>
    %cst_115 = arith.constant dense<0.000000e+00> : vector<24x32xf32>
    %127 = tpu.matmul %124, %126, %cst_115 {dimension_numbers = #tpu.dot_dimension_numbers<[1], [0], [0], [1], [0, 0, 1, 1], [], []>} : vector<24x64xbf16>, vector<64x32xbf16>, vector<24x32xf32> -> vector<24x32xf32>
    %128 = arith.addf %123, %127 : vector<24x32xf32>
    %c86 = arith.constant 86 : index
    %c0_116 = arith.constant 0 : index
    %129 = vector.load %arg19[%c86, %c0_116] : memref<126x64xbf16, #tpu.memory_space<vmem>>, vector<24x64xbf16>
    %c5 = arith.constant 5 : index
    %c0_117 = arith.constant 0 : index
    %c0_118 = arith.constant 0 : index
    %130 = vector.load %arg9[%c5, %c0_117, %c0_118] : memref<30x64x32xbf16, #tpu.memory_space<vmem>>, vector<1x64x32xbf16>
    %131 = vector.shape_cast %130 : vector<1x64x32xbf16> to vector<64x32xbf16>
    %cst_119 = arith.constant dense<0.000000e+00> : vector<24x32xf32>
    %132 = tpu.matmul %129, %131, %cst_119 {dimension_numbers = #tpu.dot_dimension_numbers<[1], [0], [0], [1], [0, 0, 1, 1], [], []>} : vector<24x64xbf16>, vector<64x32xbf16>, vector<24x32xf32> -> vector<24x32xf32>
    %133 = arith.addf %128, %132 : vector<24x32xf32>
    %c88 = arith.constant 88 : index
    %c0_120 = arith.constant 0 : index
    %134 = vector.load %arg19[%c88, %c0_120] : memref<126x64xbf16, #tpu.memory_space<vmem>>, vector<24x64xbf16>
    %c8_121 = arith.constant 8 : index
    %c0_122 = arith.constant 0 : index
    %c0_123 = arith.constant 0 : index
    %135 = vector.load %arg9[%c8_121, %c0_122, %c0_123] : memref<30x64x32xbf16, #tpu.memory_space<vmem>>, vector<1x64x32xbf16>
    %136 = vector.shape_cast %135 : vector<1x64x32xbf16> to vector<64x32xbf16>
    %cst_124 = arith.constant dense<0.000000e+00> : vector<24x32xf32>
    %137 = tpu.matmul %134, %136, %cst_124 {dimension_numbers = #tpu.dot_dimension_numbers<[1], [0], [0], [1], [0, 0, 1, 1], [], []>} : vector<24x64xbf16>, vector<64x32xbf16>, vector<24x32xf32> -> vector<24x32xf32>
    %138 = arith.addf %133, %137 : vector<24x32xf32>
    %c90 = arith.constant 90 : index
    %c0_125 = arith.constant 0 : index
    %139 = vector.load %arg19[%c90, %c0_125] : memref<126x64xbf16, #tpu.memory_space<vmem>>, vector<24x64xbf16>
    %c11 = arith.constant 11 : index
    %c0_126 = arith.constant 0 : index
    %c0_127 = arith.constant 0 : index
    %140 = vector.load %arg9[%c11, %c0_126, %c0_127] : memref<30x64x32xbf16, #tpu.memory_space<vmem>>, vector<1x64x32xbf16>
    %141 = vector.shape_cast %140 : vector<1x64x32xbf16> to vector<64x32xbf16>
    %cst_128 = arith.constant dense<0.000000e+00> : vector<24x32xf32>
    %142 = tpu.matmul %139, %141, %cst_128 {dimension_numbers = #tpu.dot_dimension_numbers<[1], [0], [0], [1], [0, 0, 1, 1], [], []>} : vector<24x64xbf16>, vector<64x32xbf16>, vector<24x32xf32> -> vector<24x32xf32>
    %143 = arith.addf %138, %142 : vector<24x32xf32>
    %c92 = arith.constant 92 : index
    %c0_129 = arith.constant 0 : index
    %144 = vector.load %arg19[%c92, %c0_129] : memref<126x64xbf16, #tpu.memory_space<vmem>>, vector<24x64xbf16>
    %c14_130 = arith.constant 14 : index
    %c0_131 = arith.constant 0 : index
    %c0_132 = arith.constant 0 : index
    %145 = vector.load %arg9[%c14_130, %c0_131, %c0_132] : memref<30x64x32xbf16, #tpu.memory_space<vmem>>, vector<1x64x32xbf16>
    %146 = vector.shape_cast %145 : vector<1x64x32xbf16> to vector<64x32xbf16>
    %cst_133 = arith.constant dense<0.000000e+00> : vector<24x32xf32>
    %147 = tpu.matmul %144, %146, %cst_133 {dimension_numbers = #tpu.dot_dimension_numbers<[1], [0], [0], [1], [0, 0, 1, 1], [], []>} : vector<24x64xbf16>, vector<64x32xbf16>, vector<24x32xf32> -> vector<24x32xf32>
    %148 = arith.addf %143, %147 : vector<24x32xf32>
    %c94 = arith.constant 94 : index
    %c0_134 = arith.constant 0 : index
    %149 = vector.load %arg19[%c94, %c0_134] : memref<126x64xbf16, #tpu.memory_space<vmem>>, vector<24x64xbf16>
    %c17 = arith.constant 17 : index
    %c0_135 = arith.constant 0 : index
    %c0_136 = arith.constant 0 : index
    %150 = vector.load %arg9[%c17, %c0_135, %c0_136] : memref<30x64x32xbf16, #tpu.memory_space<vmem>>, vector<1x64x32xbf16>
    %151 = vector.shape_cast %150 : vector<1x64x32xbf16> to vector<64x32xbf16>
    %cst_137 = arith.constant dense<0.000000e+00> : vector<24x32xf32>
    %152 = tpu.matmul %149, %151, %cst_137 {dimension_numbers = #tpu.dot_dimension_numbers<[1], [0], [0], [1], [0, 0, 1, 1], [], []>} : vector<24x64xbf16>, vector<64x32xbf16>, vector<24x32xf32> -> vector<24x32xf32>
    %153 = arith.addf %148, %152 : vector<24x32xf32>
    %c96 = arith.constant 96 : index
    %c0_138 = arith.constant 0 : index
    %154 = vector.load %arg19[%c96, %c0_138] : memref<126x64xbf16, #tpu.memory_space<vmem>>, vector<24x64xbf16>
    %c20 = arith.constant 20 : index
    %c0_139 = arith.constant 0 : index
    %c0_140 = arith.constant 0 : index
    %155 = vector.load %arg9[%c20, %c0_139, %c0_140] : memref<30x64x32xbf16, #tpu.memory_space<vmem>>, vector<1x64x32xbf16>
    %156 = vector.shape_cast %155 : vector<1x64x32xbf16> to vector<64x32xbf16>
    %cst_141 = arith.constant dense<0.000000e+00> : vector<24x32xf32>
    %157 = tpu.matmul %154, %156, %cst_141 {dimension_numbers = #tpu.dot_dimension_numbers<[1], [0], [0], [1], [0, 0, 1, 1], [], []>} : vector<24x64xbf16>, vector<64x32xbf16>, vector<24x32xf32> -> vector<24x32xf32>
    %158 = arith.addf %153, %157 : vector<24x32xf32>
    %c98 = arith.constant 98 : index
    %c0_142 = arith.constant 0 : index
    %159 = vector.load %arg19[%c98, %c0_142] : memref<126x64xbf16, #tpu.memory_space<vmem>>, vector<24x64xbf16>
    %c23 = arith.constant 23 : index
    %c0_143 = arith.constant 0 : index
    %c0_144 = arith.constant 0 : index
    %160 = vector.load %arg9[%c23, %c0_143, %c0_144] : memref<30x64x32xbf16, #tpu.memory_space<vmem>>, vector<1x64x32xbf16>
    %161 = vector.shape_cast %160 : vector<1x64x32xbf16> to vector<64x32xbf16>
    %cst_145 = arith.constant dense<0.000000e+00> : vector<24x32xf32>
    %162 = tpu.matmul %159, %161, %cst_145 {dimension_numbers = #tpu.dot_dimension_numbers<[1], [0], [0], [1], [0, 0, 1, 1], [], []>} : vector<24x64xbf16>, vector<64x32xbf16>, vector<24x32xf32> -> vector<24x32xf32>
    %163 = arith.addf %158, %162 : vector<24x32xf32>
    %c100 = arith.constant 100 : index
    %c0_146 = arith.constant 0 : index
    %164 = vector.load %arg19[%c100, %c0_146] : memref<126x64xbf16, #tpu.memory_space<vmem>>, vector<24x64xbf16>
    %c26 = arith.constant 26 : index
    %c0_147 = arith.constant 0 : index
    %c0_148 = arith.constant 0 : index
    %165 = vector.load %arg9[%c26, %c0_147, %c0_148] : memref<30x64x32xbf16, #tpu.memory_space<vmem>>, vector<1x64x32xbf16>
    %166 = vector.shape_cast %165 : vector<1x64x32xbf16> to vector<64x32xbf16>
    %cst_149 = arith.constant dense<0.000000e+00> : vector<24x32xf32>
    %167 = tpu.matmul %164, %166, %cst_149 {dimension_numbers = #tpu.dot_dimension_numbers<[1], [0], [0], [1], [0, 0, 1, 1], [], []>} : vector<24x64xbf16>, vector<64x32xbf16>, vector<24x32xf32> -> vector<24x32xf32>
    %168 = arith.addf %163, %167 : vector<24x32xf32>
    %c102 = arith.constant 102 : index
    %c0_150 = arith.constant 0 : index
    %169 = vector.load %arg19[%c102, %c0_150] : memref<126x64xbf16, #tpu.memory_space<vmem>>, vector<24x64xbf16>
    %c29 = arith.constant 29 : index
    %c0_151 = arith.constant 0 : index
    %c0_152 = arith.constant 0 : index
    %170 = vector.load %arg9[%c29, %c0_151, %c0_152] : memref<30x64x32xbf16, #tpu.memory_space<vmem>>, vector<1x64x32xbf16>
    %171 = vector.shape_cast %170 : vector<1x64x32xbf16> to vector<64x32xbf16>
    %cst_153 = arith.constant dense<0.000000e+00> : vector<24x32xf32>
    %172 = tpu.matmul %169, %171, %cst_153 {dimension_numbers = #tpu.dot_dimension_numbers<[1], [0], [0], [1], [0, 0, 1, 1], [], []>} : vector<24x64xbf16>, vector<64x32xbf16>, vector<24x32xf32> -> vector<24x32xf32>
    %173 = arith.addf %168, %172 : vector<24x32xf32>
    %c0_154 = arith.constant 0 : index
    %c0_155 = arith.constant 0 : index
    %174 = vector.load %arg10[%c0_154, %c0_155] : memref<1x32xf32, #tpu.memory_space<vmem>>, vector<1x32xf32>
    %175 = vector.broadcast %174 : vector<1x32xf32> to vector<24x32xf32>
    %176 = arith.addf %173, %175 : vector<24x32xf32>
    %cst_156 = arith.constant 0.000000e+00 : f32
    %177 = vector.broadcast %cst_156 : f32 to vector<24x32xf32>
    %178 = arith.maximumf %176, %177 : vector<24x32xf32>
    %179 = arith.truncf %178 : vector<24x32xf32> to vector<24x32xbf16>
    %c0_157 = arith.constant 0 : index
    %c0_158 = arith.constant 0 : index
    %180 = vector.load %arg20[%c0_157, %c0_158] : memref<24x32xbf16, #tpu.memory_space<vmem>>, vector<24x32xbf16>
    tpu.vector_store %arg20[%c0_157, %c0_158], %179 {strides = array<i32>} : memref<24x32xbf16, #tpu.memory_space<vmem>>, vector<24x32xbf16>,
    %cst_159 = arith.constant 0.000000e+00 : f32
    %181 = vector.broadcast %cst_159 : f32 to vector<6x16xf32>
    %c0_160 = arith.constant 0 : index
    %c0_161 = arith.constant 0 : index
    %182 = vector.load %arg20[%c0_160, %c0_161] : memref<24x32xbf16, #tpu.memory_space<vmem>>, vector<6x32xbf16>
    %c0_162 = arith.constant 0 : index
    %c0_163 = arith.constant 0 : index
    %c0_164 = arith.constant 0 : index
    %183 = vector.load %arg11[%c0_162, %c0_163, %c0_164] : memref<10x32x16xbf16, #tpu.memory_space<vmem>>, vector<1x32x16xbf16>
    %184 = vector.shape_cast %183 : vector<1x32x16xbf16> to vector<32x16xbf16>
    %cst_165 = arith.constant dense<0.000000e+00> : vector<6x16xf32>
    %185 = tpu.matmul %182, %184, %cst_165 {dimension_numbers = #tpu.dot_dimension_numbers<[1], [0], [0], [1], [0, 0, 1, 1], [], []>} : vector<6x32xbf16>, vector<32x16xbf16>, vector<6x16xf32> -> vector<6x16xf32>
    %186 = arith.addf %181, %185 : vector<6x16xf32>
    %c2_166 = arith.constant 2 : index
    %c0_167 = arith.constant 0 : index
    %187 = vector.load %arg20[%c2_166, %c0_167] : memref<24x32xbf16, #tpu.memory_space<vmem>>, vector<6x32xbf16>
    %c1_168 = arith.constant 1 : index
    %c0_169 = arith.constant 0 : index
    %c0_170 = arith.constant 0 : index
    %188 = vector.load %arg11[%c1_168, %c0_169, %c0_170] : memref<10x32x16xbf16, #tpu.memory_space<vmem>>, vector<1x32x16xbf16>
    %189 = vector.shape_cast %188 : vector<1x32x16xbf16> to vector<32x16xbf16>
    %cst_171 = arith.constant dense<0.000000e+00> : vector<6x16xf32>
    %190 = tpu.matmul %187, %189, %cst_171 {dimension_numbers = #tpu.dot_dimension_numbers<[1], [0], [0], [1], [0, 0, 1, 1], [], []>} : vector<6x32xbf16>, vector<32x16xbf16>, vector<6x16xf32> -> vector<6x16xf32>
    %191 = arith.addf %186, %190 : vector<6x16xf32>
    %c4_172 = arith.constant 4 : index
    %c0_173 = arith.constant 0 : index
    %192 = vector.load %arg20[%c4_172, %c0_173] : memref<24x32xbf16, #tpu.memory_space<vmem>>, vector<6x32xbf16>
    %c2_174 = arith.constant 2 : index
    %c0_175 = arith.constant 0 : index
    %c0_176 = arith.constant 0 : index
    %193 = vector.load %arg11[%c2_174, %c0_175, %c0_176] : memref<10x32x16xbf16, #tpu.memory_space<vmem>>, vector<1x32x16xbf16>
    %194 = vector.shape_cast %193 : vector<1x32x16xbf16> to vector<32x16xbf16>
    %cst_177 = arith.constant dense<0.000000e+00> : vector<6x16xf32>
    %195 = tpu.matmul %192, %194, %cst_177 {dimension_numbers = #tpu.dot_dimension_numbers<[1], [0], [0], [1], [0, 0, 1, 1], [], []>} : vector<6x32xbf16>, vector<32x16xbf16>, vector<6x16xf32> -> vector<6x16xf32>
    %196 = arith.addf %191, %195 : vector<6x16xf32>
    %c6_178 = arith.constant 6 : index
    %c0_179 = arith.constant 0 : index
    %197 = vector.load %arg20[%c6_178, %c0_179] : memref<24x32xbf16, #tpu.memory_space<vmem>>, vector<6x32xbf16>
    %c3_180 = arith.constant 3 : index
    %c0_181 = arith.constant 0 : index
    %c0_182 = arith.constant 0 : index
    %198 = vector.load %arg11[%c3_180, %c0_181, %c0_182] : memref<10x32x16xbf16, #tpu.memory_space<vmem>>, vector<1x32x16xbf16>
    %199 = vector.shape_cast %198 : vector<1x32x16xbf16> to vector<32x16xbf16>
    %cst_183 = arith.constant dense<0.000000e+00> : vector<6x16xf32>
    %200 = tpu.matmul %197, %199, %cst_183 {dimension_numbers = #tpu.dot_dimension_numbers<[1], [0], [0], [1], [0, 0, 1, 1], [], []>} : vector<6x32xbf16>, vector<32x16xbf16>, vector<6x16xf32> -> vector<6x16xf32>
    %201 = arith.addf %196, %200 : vector<6x16xf32>
    %c8_184 = arith.constant 8 : index
    %c0_185 = arith.constant 0 : index
    %202 = vector.load %arg20[%c8_184, %c0_185] : memref<24x32xbf16, #tpu.memory_space<vmem>>, vector<6x32xbf16>
    %c4_186 = arith.constant 4 : index
    %c0_187 = arith.constant 0 : index
    %c0_188 = arith.constant 0 : index
    %203 = vector.load %arg11[%c4_186, %c0_187, %c0_188] : memref<10x32x16xbf16, #tpu.memory_space<vmem>>, vector<1x32x16xbf16>
    %204 = vector.shape_cast %203 : vector<1x32x16xbf16> to vector<32x16xbf16>
    %cst_189 = arith.constant dense<0.000000e+00> : vector<6x16xf32>
    %205 = tpu.matmul %202, %204, %cst_189 {dimension_numbers = #tpu.dot_dimension_numbers<[1], [0], [0], [1], [0, 0, 1, 1], [], []>} : vector<6x32xbf16>, vector<32x16xbf16>, vector<6x16xf32> -> vector<6x16xf32>
    %206 = arith.addf %201, %205 : vector<6x16xf32>
    %c10_190 = arith.constant 10 : index
    %c0_191 = arith.constant 0 : index
    %207 = vector.load %arg20[%c10_190, %c0_191] : memref<24x32xbf16, #tpu.memory_space<vmem>>, vector<6x32xbf16>
    %c5_192 = arith.constant 5 : index
    %c0_193 = arith.constant 0 : index
    %c0_194 = arith.constant 0 : index
    %208 = vector.load %arg11[%c5_192, %c0_193, %c0_194] : memref<10x32x16xbf16, #tpu.memory_space<vmem>>, vector<1x32x16xbf16>
    %209 = vector.shape_cast %208 : vector<1x32x16xbf16> to vector<32x16xbf16>
    %cst_195 = arith.constant dense<0.000000e+00> : vector<6x16xf32>
    %210 = tpu.matmul %207, %209, %cst_195 {dimension_numbers = #tpu.dot_dimension_numbers<[1], [0], [0], [1], [0, 0, 1, 1], [], []>} : vector<6x32xbf16>, vector<32x16xbf16>, vector<6x16xf32> -> vector<6x16xf32>
    %211 = arith.addf %206, %210 : vector<6x16xf32>
    %c12_196 = arith.constant 12 : index
    %c0_197 = arith.constant 0 : index
    %212 = vector.load %arg20[%c12_196, %c0_197] : memref<24x32xbf16, #tpu.memory_space<vmem>>, vector<6x32xbf16>
    %c6_198 = arith.constant 6 : index
    %c0_199 = arith.constant 0 : index
    %c0_200 = arith.constant 0 : index
    %213 = vector.load %arg11[%c6_198, %c0_199, %c0_200] : memref<10x32x16xbf16, #tpu.memory_space<vmem>>, vector<1x32x16xbf16>
    %214 = vector.shape_cast %213 : vector<1x32x16xbf16> to vector<32x16xbf16>
    %cst_201 = arith.constant dense<0.000000e+00> : vector<6x16xf32>
    %215 = tpu.matmul %212, %214, %cst_201 {dimension_numbers = #tpu.dot_dimension_numbers<[1], [0], [0], [1], [0, 0, 1, 1], [], []>} : vector<6x32xbf16>, vector<32x16xbf16>, vector<6x16xf32> -> vector<6x16xf32>
    %216 = arith.addf %211, %215 : vector<6x16xf32>
    %c14_202 = arith.constant 14 : index
    %c0_203 = arith.constant 0 : index
    %217 = vector.load %arg20[%c14_202, %c0_203] : memref<24x32xbf16, #tpu.memory_space<vmem>>, vector<6x32xbf16>
    %c7_204 = arith.constant 7 : index
    %c0_205 = arith.constant 0 : index
    %c0_206 = arith.constant 0 : index
    %218 = vector.load %arg11[%c7_204, %c0_205, %c0_206] : memref<10x32x16xbf16, #tpu.memory_space<vmem>>, vector<1x32x16xbf16>
    %219 = vector.shape_cast %218 : vector<1x32x16xbf16> to vector<32x16xbf16>
    %cst_207 = arith.constant dense<0.000000e+00> : vector<6x16xf32>
    %220 = tpu.matmul %217, %219, %cst_207 {dimension_numbers = #tpu.dot_dimension_numbers<[1], [0], [0], [1], [0, 0, 1, 1], [], []>} : vector<6x32xbf16>, vector<32x16xbf16>, vector<6x16xf32> -> vector<6x16xf32>
    %221 = arith.addf %216, %220 : vector<6x16xf32>
    %c16_208 = arith.constant 16 : index
    %c0_209 = arith.constant 0 : index
    %222 = vector.load %arg20[%c16_208, %c0_209] : memref<24x32xbf16, #tpu.memory_space<vmem>>, vector<6x32xbf16>
    %c8_210 = arith.constant 8 : index
    %c0_211 = arith.constant 0 : index
    %c0_212 = arith.constant 0 : index
    %223 = vector.load %arg11[%c8_210, %c0_211, %c0_212] : memref<10x32x16xbf16, #tpu.memory_space<vmem>>, vector<1x32x16xbf16>
    %224 = vector.shape_cast %223 : vector<1x32x16xbf16> to vector<32x16xbf16>
    %cst_213 = arith.constant dense<0.000000e+00> : vector<6x16xf32>
    %225 = tpu.matmul %222, %224, %cst_213 {dimension_numbers = #tpu.dot_dimension_numbers<[1], [0], [0], [1], [0, 0, 1, 1], [], []>} : vector<6x32xbf16>, vector<32x16xbf16>, vector<6x16xf32> -> vector<6x16xf32>
    %226 = arith.addf %221, %225 : vector<6x16xf32>
    %c18_214 = arith.constant 18 : index
    %c0_215 = arith.constant 0 : index
    %227 = vector.load %arg20[%c18_214, %c0_215] : memref<24x32xbf16, #tpu.memory_space<vmem>>, vector<6x32xbf16>
    %c9_216 = arith.constant 9 : index
    %c0_217 = arith.constant 0 : index
    %c0_218 = arith.constant 0 : index
    %228 = vector.load %arg11[%c9_216, %c0_217, %c0_218] : memref<10x32x16xbf16, #tpu.memory_space<vmem>>, vector<1x32x16xbf16>
    %229 = vector.shape_cast %228 : vector<1x32x16xbf16> to vector<32x16xbf16>
    %cst_219 = arith.constant dense<0.000000e+00> : vector<6x16xf32>
    %230 = tpu.matmul %227, %229, %cst_219 {dimension_numbers = #tpu.dot_dimension_numbers<[1], [0], [0], [1], [0, 0, 1, 1], [], []>} : vector<6x32xbf16>, vector<32x16xbf16>, vector<6x16xf32> -> vector<6x16xf32>
    %231 = arith.addf %226, %230 : vector<6x16xf32>
    %c0_220 = arith.constant 0 : index
    %c0_221 = arith.constant 0 : index
    %232 = vector.load %arg12[%c0_220, %c0_221] : memref<1x16xf32, #tpu.memory_space<vmem>>, vector<1x16xf32>
    %233 = vector.broadcast %232 : vector<1x16xf32> to vector<6x16xf32>
    %234 = arith.addf %231, %233 : vector<6x16xf32>
    %235 = arith.truncf %234 : vector<6x16xf32> to vector<6x16xbf16>
    %c0_222 = arith.constant 0 : index
    %c0_223 = arith.constant 0 : index
    %236 = vector.load %arg13[%c0_222, %c0_223] : memref<16x64xbf16, #tpu.memory_space<vmem>>, vector<16x64xbf16>
    %cst_224 = arith.constant dense<0.000000e+00> : vector<6x64xf32>
    %237 = tpu.matmul %235, %236, %cst_224 {dimension_numbers = #tpu.dot_dimension_numbers<[1], [0], [0], [1], [0, 0, 1, 1], [], []>} : vector<6x16xbf16>, vector<16x64xbf16>, vector<6x64xf32> -> vector<6x64xf32>
    %c0_225 = arith.constant 0 : index
    %c0_226 = arith.constant 0 : index
    %238 = vector.load %arg15[%c0_225, %c0_226] : memref<1x64xf32, #tpu.memory_space<vmem>>, vector<1x64xf32>
    %239 = vector.broadcast %238 : vector<1x64xf32> to vector<6x64xf32>
    %240 = arith.addf %237, %239 : vector<6x64xf32>
    %241 = vector.extract_strided_slice %240 {offsets = [0, 0], sizes = [2, 64], strides = [1, 1]} : vector<6x64xf32> to vector<2x64xf32>
    %242 = arith.truncf %6 : vector<2x16xf32> to vector<2x16xbf16>
    %c0_227 = arith.constant 0 : index
    %c0_228 = arith.constant 0 : index
    %243 = vector.load %arg14[%c0_227, %c0_228] : memref<16x64xbf16, #tpu.memory_space<vmem>>, vector<16x64xbf16>
    %cst_229 = arith.constant dense<0.000000e+00> : vector<2x64xf32>
    %244 = tpu.matmul %242, %243, %cst_229 {dimension_numbers = #tpu.dot_dimension_numbers<[1], [0], [0], [1], [0, 0, 1, 1], [], []>} : vector<2x16xbf16>, vector<16x64xbf16>, vector<2x64xf32> -> vector<2x64xf32>
    %245 = arith.addf %241, %244 : vector<2x64xf32>
    %246 = vector.extract_strided_slice %245 {offsets = [0, 0], sizes = [2, 16], strides = [1, 1]} : vector<2x64xf32> to vector<2x16xf32>
    %247 = arith.negf %246 : vector<2x16xf32>
    %248 = math.exp %247 : vector<2x16xf32>
    %cst_230 = arith.constant 1.000000e+00 : f32
    %249 = vector.broadcast %cst_230 : f32 to vector<2x16xf32>
    %250 = arith.addf %249, %248 : vector<2x16xf32>
    %251 = arith.divf %249, %250 : vector<2x16xf32>
    %252 = vector.extract_strided_slice %245 {offsets = [0, 16], sizes = [2, 16], strides = [1, 1]} : vector<2x64xf32> to vector<2x16xf32>
    %253 = arith.negf %252 : vector<2x16xf32>
    %254 = math.exp %253 : vector<2x16xf32>
    %cst_231 = arith.constant 1.000000e+00 : f32
    %255 = vector.broadcast %cst_231 : f32 to vector<2x16xf32>
    %256 = arith.addf %255, %254 : vector<2x16xf32>
    %257 = arith.divf %255, %256 : vector<2x16xf32>
    %258 = vector.extract_strided_slice %245 {offsets = [0, 32], sizes = [2, 16], strides = [1, 1]} : vector<2x64xf32> to vector<2x16xf32>
    %259 = math.tanh %258 : vector<2x16xf32>
    %260 = vector.extract_strided_slice %245 {offsets = [0, 48], sizes = [2, 16], strides = [1, 1]} : vector<2x64xf32> to vector<2x16xf32>
    %261 = arith.negf %260 : vector<2x16xf32>
    %262 = math.exp %261 : vector<2x16xf32>
    %cst_232 = arith.constant 1.000000e+00 : f32
    %263 = vector.broadcast %cst_232 : f32 to vector<2x16xf32>
    %264 = arith.addf %263, %262 : vector<2x16xf32>
    %265 = arith.divf %263, %264 : vector<2x16xf32>
    %266 = arith.mulf %257, %11 : vector<2x16xf32>
    %267 = arith.mulf %251, %259 : vector<2x16xf32>
    %268 = arith.addf %266, %267 : vector<2x16xf32>
    %269 = math.tanh %268 : vector<2x16xf32>
    %270 = arith.mulf %265, %269 : vector<2x16xf32>
    %271 = vector.extract_strided_slice %240 {offsets = [2, 0], sizes = [2, 64], strides = [1, 1]} : vector<6x64xf32> to vector<2x64xf32>
    %272 = arith.truncf %270 : vector<2x16xf32> to vector<2x16xbf16>
    %c0_233 = arith.constant 0 : index
    %c0_234 = arith.constant 0 : index
    %273 = vector.load %arg14[%c0_233, %c0_234] : memref<16x64xbf16, #tpu.memory_space<vmem>>, vector<16x64xbf16>
    %cst_235 = arith.constant dense<0.000000e+00> : vector<2x64xf32>
    %274 = tpu.matmul %272, %273, %cst_235 {dimension_numbers = #tpu.dot_dimension_numbers<[1], [0], [0], [1], [0, 0, 1, 1], [], []>} : vector<2x16xbf16>, vector<16x64xbf16>, vector<2x64xf32> -> vector<2x64xf32>
    %275 = arith.addf %271, %274 : vector<2x64xf32>
    %276 = vector.extract_strided_slice %275 {offsets = [0, 0], sizes = [2, 16], strides = [1, 1]} : vector<2x64xf32> to vector<2x16xf32>
    %277 = arith.negf %276 : vector<2x16xf32>
    %278 = math.exp %277 : vector<2x16xf32>
    %cst_236 = arith.constant 1.000000e+00 : f32
    %279 = vector.broadcast %cst_236 : f32 to vector<2x16xf32>
    %280 = arith.addf %279, %278 : vector<2x16xf32>
    %281 = arith.divf %279, %280 : vector<2x16xf32>
    %282 = vector.extract_strided_slice %275 {offsets = [0, 16], sizes = [2, 16], strides = [1, 1]} : vector<2x64xf32> to vector<2x16xf32>
    %283 = arith.negf %282 : vector<2x16xf32>
    %284 = math.exp %283 : vector<2x16xf32>
    %cst_237 = arith.constant 1.000000e+00 : f32
    %285 = vector.broadcast %cst_237 : f32 to vector<2x16xf32>
    %286 = arith.addf %285, %284 : vector<2x16xf32>
    %287 = arith.divf %285, %286 : vector<2x16xf32>
    %288 = vector.extract_strided_slice %275 {offsets = [0, 32], sizes = [2, 16], strides = [1, 1]} : vector<2x64xf32> to vector<2x16xf32>
    %289 = math.tanh %288 : vector<2x16xf32>
    %290 = vector.extract_strided_slice %275 {offsets = [0, 48], sizes = [2, 16], strides = [1, 1]} : vector<2x64xf32> to vector<2x16xf32>
    %291 = arith.negf %290 : vector<2x16xf32>
    %292 = math.exp %291 : vector<2x16xf32>
    %cst_238 = arith.constant 1.000000e+00 : f32
    %293 = vector.broadcast %cst_238 : f32 to vector<2x16xf32>
    %294 = arith.addf %293, %292 : vector<2x16xf32>
    %295 = arith.divf %293, %294 : vector<2x16xf32>
    %296 = arith.mulf %287, %268 : vector<2x16xf32>
    %297 = arith.mulf %281, %289 : vector<2x16xf32>
    %298 = arith.addf %296, %297 : vector<2x16xf32>
    %299 = math.tanh %298 : vector<2x16xf32>
    %300 = arith.mulf %295, %299 : vector<2x16xf32>
    %301 = vector.extract_strided_slice %240 {offsets = [4, 0], sizes = [2, 64], strides = [1, 1]} : vector<6x64xf32> to vector<2x64xf32>
    %302 = arith.truncf %300 : vector<2x16xf32> to vector<2x16xbf16>
    %c0_239 = arith.constant 0 : index
    %c0_240 = arith.constant 0 : index
    %303 = vector.load %arg14[%c0_239, %c0_240] : memref<16x64xbf16, #tpu.memory_space<vmem>>, vector<16x64xbf16>
    %cst_241 = arith.constant dense<0.000000e+00> : vector<2x64xf32>
    %304 = tpu.matmul %302, %303, %cst_241 {dimension_numbers = #tpu.dot_dimension_numbers<[1], [0], [0], [1], [0, 0, 1, 1], [], []>} : vector<2x16xbf16>, vector<16x64xbf16>, vector<2x64xf32> -> vector<2x64xf32>
    %305 = arith.addf %301, %304 : vector<2x64xf32>
    %306 = vector.extract_strided_slice %305 {offsets = [0, 0], sizes = [2, 16], strides = [1, 1]} : vector<2x64xf32> to vector<2x16xf32>
    %307 = arith.negf %306 : vector<2x16xf32>
    %308 = math.exp %307 : vector<2x16xf32>
    %cst_242 = arith.constant 1.000000e+00 : f32
    %309 = vector.broadcast %cst_242 : f32 to vector<2x16xf32>
    %310 = arith.addf %309, %308 : vector<2x16xf32>
    %311 = arith.divf %309, %310 : vector<2x16xf32>
    %312 = vector.extract_strided_slice %305 {offsets = [0, 16], sizes = [2, 16], strides = [1, 1]} : vector<2x64xf32> to vector<2x16xf32>
    %313 = arith.negf %312 : vector<2x16xf32>
    %314 = math.exp %313 : vector<2x16xf32>
    %cst_243 = arith.constant 1.000000e+00 : f32
    %315 = vector.broadcast %cst_243 : f32 to vector<2x16xf32>
    %316 = arith.addf %315, %314 : vector<2x16xf32>
    %317 = arith.divf %315, %316 : vector<2x16xf32>
    %318 = vector.extract_strided_slice %305 {offsets = [0, 32], sizes = [2, 16], strides = [1, 1]} : vector<2x64xf32> to vector<2x16xf32>
    %319 = math.tanh %318 : vector<2x16xf32>
    %320 = vector.extract_strided_slice %305 {offsets = [0, 48], sizes = [2, 16], strides = [1, 1]} : vector<2x64xf32> to vector<2x16xf32>
    %321 = arith.negf %320 : vector<2x16xf32>
    %322 = math.exp %321 : vector<2x16xf32>
    %cst_244 = arith.constant 1.000000e+00 : f32
    %323 = vector.broadcast %cst_244 : f32 to vector<2x16xf32>
    %324 = arith.addf %323, %322 : vector<2x16xf32>
    %325 = arith.divf %323, %324 : vector<2x16xf32>
    %326 = arith.mulf %317, %298 : vector<2x16xf32>
    %327 = arith.mulf %311, %319 : vector<2x16xf32>
    %328 = arith.addf %326, %327 : vector<2x16xf32>
    %329 = math.tanh %328 : vector<2x16xf32>
    %330 = arith.mulf %325, %329 : vector<2x16xf32>
    %c0_245 = arith.constant 0 : index
    %c0_246 = arith.constant 0 : index
    %331 = vector.load %arg16[%c0_245, %c0_246] : memref<1x16xf32, #tpu.memory_space<vmem>>, vector<1x16xf32>
    %332 = vector.broadcast %331 : vector<1x16xf32> to vector<2x16xf32>
    %333 = arith.mulf %330, %332 : vector<2x16xf32>
    %cst_247 = arith.constant dense<0.000000e+00> : vector<2xf32>
    %334 = vector.multi_reduction <add>, %333, %cst_247 [1] : vector<2x16xf32> to vector<2xf32>
    %335 = vector.shape_cast %334 : vector<2xf32> to vector<2x1xf32>
    %c0_248 = arith.constant 0 : index
    %c0_249 = arith.constant 0 : index
    %336 = vector.load %arg17[%c0_248, %c0_249] : memref<1x1xf32, #tpu.memory_space<vmem>>, vector<1x1xf32>
    %337 = vector.broadcast %336 : vector<1x1xf32> to vector<2x1xf32>
    %338 = arith.addf %335, %337 : vector<2x1xf32>
    %339 = vector.extract_strided_slice %338 {offsets = [0, 0], sizes = [1, 1], strides = [1, 1]} : vector<2x1xf32> to vector<1x1xf32>
    %340 = vector.extract_strided_slice %338 {offsets = [1, 0], sizes = [1, 1], strides = [1, 1]} : vector<2x1xf32> to vector<1x1xf32>
    %341 = arith.subf %339, %340 : vector<1x1xf32>
    %342 = arith.negf %341 : vector<1x1xf32>
    %343 = math.exp %342 : vector<1x1xf32>
    %cst_250 = arith.constant 1.000000e+00 : f32
    %344 = vector.broadcast %cst_250 : f32 to vector<1x1xf32>
    %345 = arith.addf %344, %343 : vector<1x1xf32>
    %346 = arith.divf %344, %345 : vector<1x1xf32>
    %c0_251 = arith.constant 0 : index
    %c0_252 = arith.constant 0 : index
    %c0_253 = arith.constant 0 : index
    %347 = vector.load %arg18[%c0_251, %c0_252, %c0_253] : memref<1x1x1xf32, #tpu.memory_space<vmem>>, vector<1x1x1xf32>
    %348 = vector.shape_cast %347 : vector<1x1x1xf32> to vector<1x1xf32>
    %349 = vector.shape_cast %346 : vector<1x1xf32> to vector<1x1x1xf32>
    tpu.vector_store %arg18[%c0_251, %c0_252, %c0_253], %349 {strides = array<i32>} : memref<1x1x1xf32, #tpu.memory_space<vmem>>, vector<1x1x1xf32>,
    return
  }
  func.func @transform_0(%arg0: i32) -> (i32, i32, i32) {
    %c0_i32 = arith.constant 0 : i32
    %c0_i32_0 = arith.constant 0 : i32
    %c0_i32_1 = arith.constant 0 : i32
    return %arg0, %c0_i32, %c0_i32_0 : i32, i32, i32
  }
  func.func @transform_1(%arg0: i32) -> (i32, i32, i32) {
    %c0_i32 = arith.constant 0 : i32
    %c0_i32_0 = arith.constant 0 : i32
    %c0_i32_1 = arith.constant 0 : i32
    return %arg0, %c0_i32, %c0_i32_0 : i32, i32, i32
  }
  func.func @transform_2(%arg0: i32) -> (i32, i32) {
    %c0_i32 = arith.constant 0 : i32
    %c0_i32_0 = arith.constant 0 : i32
    %c0_i32_1 = arith.constant 0 : i32
    return %c0_i32, %c0_i32_0 : i32, i32
  }
  func.func @transform_3(%arg0: i32) -> (i32, i32) {
    %c0_i32 = arith.constant 0 : i32
    %c0_i32_0 = arith.constant 0 : i32
    %c0_i32_1 = arith.constant 0 : i32
    return %c0_i32, %c0_i32_0 : i32, i32
  }
  func.func @transform_4(%arg0: i32) -> (i32, i32) {
    %c0_i32 = arith.constant 0 : i32
    %c0_i32_0 = arith.constant 0 : i32
    %c0_i32_1 = arith.constant 0 : i32
    return %c0_i32, %c0_i32_0 : i32, i32
  }
  func.func @transform_5(%arg0: i32) -> (i32, i32) {
    %c0_i32 = arith.constant 0 : i32
    %c0_i32_0 = arith.constant 0 : i32
    %c0_i32_1 = arith.constant 0 : i32
    return %c0_i32, %c0_i32_0 : i32, i32
  }
  func.func @transform_6(%arg0: i32) -> (i32, i32) {
    %c0_i32 = arith.constant 0 : i32
    %c0_i32_0 = arith.constant 0 : i32
    %c0_i32_1 = arith.constant 0 : i32
    return %c0_i32, %c0_i32_0 : i32, i32
  }
  func.func @transform_7(%arg0: i32) -> (i32, i32) {
    %c0_i32 = arith.constant 0 : i32
    %c0_i32_0 = arith.constant 0 : i32
    %c0_i32_1 = arith.constant 0 : i32
    return %c0_i32, %c0_i32_0 : i32, i32
  }
  func.func @transform_8(%arg0: i32) -> (i32, i32, i32) {
    %c0_i32 = arith.constant 0 : i32
    %c0_i32_0 = arith.constant 0 : i32
    %c0_i32_1 = arith.constant 0 : i32
    %c0_i32_2 = arith.constant 0 : i32
    return %c0_i32, %c0_i32_0, %c0_i32_1 : i32, i32, i32
  }
  func.func @transform_9(%arg0: i32) -> (i32, i32) {
    %c0_i32 = arith.constant 0 : i32
    %c0_i32_0 = arith.constant 0 : i32
    %c0_i32_1 = arith.constant 0 : i32
    return %c0_i32, %c0_i32_0 : i32, i32
  }
  func.func @transform_10(%arg0: i32) -> (i32, i32, i32) {
    %c0_i32 = arith.constant 0 : i32
    %c0_i32_0 = arith.constant 0 : i32
    %c0_i32_1 = arith.constant 0 : i32
    %c0_i32_2 = arith.constant 0 : i32
    return %c0_i32, %c0_i32_0, %c0_i32_1 : i32, i32, i32
  }
  func.func @transform_11(%arg0: i32) -> (i32, i32) {
    %c0_i32 = arith.constant 0 : i32
    %c0_i32_0 = arith.constant 0 : i32
    %c0_i32_1 = arith.constant 0 : i32
    return %c0_i32, %c0_i32_0 : i32, i32
  }
  func.func @transform_12(%arg0: i32) -> (i32, i32) {
    %c0_i32 = arith.constant 0 : i32
    %c0_i32_0 = arith.constant 0 : i32
    %c0_i32_1 = arith.constant 0 : i32
    return %c0_i32, %c0_i32_0 : i32, i32
  }
  func.func @transform_13(%arg0: i32) -> (i32, i32) {
    %c0_i32 = arith.constant 0 : i32
    %c0_i32_0 = arith.constant 0 : i32
    %c0_i32_1 = arith.constant 0 : i32
    return %c0_i32, %c0_i32_0 : i32, i32
  }
  func.func @transform_14(%arg0: i32) -> (i32, i32) {
    %c0_i32 = arith.constant 0 : i32
    %c0_i32_0 = arith.constant 0 : i32
    %c0_i32_1 = arith.constant 0 : i32
    return %c0_i32, %c0_i32_0 : i32, i32
  }
  func.func @transform_15(%arg0: i32) -> (i32, i32) {
    %c0_i32 = arith.constant 0 : i32
    %c0_i32_0 = arith.constant 0 : i32
    %c0_i32_1 = arith.constant 0 : i32
    return %c0_i32, %c0_i32_0 : i32, i32
  }
  func.func @transform_16(%arg0: i32) -> (i32, i32) {
    %c0_i32 = arith.constant 0 : i32
    %c0_i32_0 = arith.constant 0 : i32
    %c0_i32_1 = arith.constant 0 : i32
    return %c0_i32, %c0_i32_0 : i32, i32
  }
  func.func @transform_17(%arg0: i32) -> (i32, i32, i32) {
    %c0_i32 = arith.constant 0 : i32
    %c0_i32_0 = arith.constant 0 : i32
    %c0_i32_1 = arith.constant 0 : i32
    return %arg0, %c0_i32, %c0_i32_0 : i32, i32, i32
  }
}

</mosaic_0001>

<llo_original>
// kernel: rank_net.1
$region0: #{rank_net.1}
  #allocation0 [shape = 'u32[]', space=smem, size = 0x4, offset = 0x4, fixed_abs, tag = 'smem constant byte address 0x4 - core index']
  #allocation1 [shape = 'u32[144,128]{1,0:T(1,128)}', space=vmem, size = 0x12000, scoped, tag = 'internal scratch']
  #allocation2 [shape = 'bf16[126,64]{1,0:T(8,128)(2,1)}', space=vmem, size = 0x8000, scoped, tag = 'scratch operand']
  #allocation3 [shape = 'bf16[24,32]{1,0:T(8,128)(2,1)}', space=vmem, size = 0x1800, scoped, tag = 'scratch operand']
  #allocation4 [shape = 'f32[1,1]{1,0:T(1,128)S(1)}', space=vmem, size = 0x200, scoped, tag = 'scoped memory for rank_net.1']
  %s0 = inlined_call_operand.vmem [shape: bf16[2,126,120], index: 0, kind: input, shape index: {}]
  %s1 = inlined_call_operand.vmem [shape: f32[2,2,32], index: 1, kind: input, shape index: {}]
  %s2 = inlined_call_operand.vmem [shape: f32[32,16], index: 2, kind: input, shape index: {}]
  %s3 = inlined_call_operand.vmem [shape: f32[1,16], index: 3, kind: input, shape index: {}]
  %s4 = inlined_call_operand.vmem [shape: f32[32,16], index: 4, kind: input, shape index: {}]
  %s5 = inlined_call_operand.vmem [shape: f32[1,16], index: 5, kind: input, shape index: {}]
  %s6 = inlined_call_operand.vmem [shape: bf16[120,64], index: 6, kind: input, shape index: {}]
  %s7 = inlined_call_operand.vmem [shape: f32[1,64], index: 7, kind: input, shape index: {}]
  %s8 = inlined_call_operand.vmem [shape: bf16[30,64,32], index: 8, kind: input, shape index: {}]
  %s9 = inlined_call_operand.vmem [shape: f32[1,32], index: 9, kind: input, shape index: {}]
  %s10 = inlined_call_operand.vmem [shape: bf16[10,32,16], index: 10, kind: input, shape index: {}]
  %s11 = inlined_call_operand.vmem [shape: f32[1,16], index: 11, kind: input, shape index: {}]
  %s12 = inlined_call_operand.vmem [shape: bf16[16,64], index: 12, kind: input, shape index: {}]
  %s13 = inlined_call_operand.vmem [shape: bf16[16,64], index: 13, kind: input, shape index: {}]
  %s14 = inlined_call_operand.vmem [shape: f32[1,64], index: 14, kind: input, shape index: {}]
  %s15 = inlined_call_operand.vmem [shape: f32[1,16], index: 15, kind: input, shape index: {}]
  %s16 = inlined_call_operand.<no memory space> [shape: f32[1,1], index: 16, kind: input, shape index: {}]
  %s17 = inlined_call_operand.vmem [shape: f32[2,1,1], index: 17, kind: output, shape index: {}]
  %s18 = sld [smem:[#allocation0]]
  $region101: #{rank_net.1} parent=0
    _
  %s20 = ssub.s32 1, %s18
  %s21 = scalar_select 0, %s20, %s18
  %v22 = vstv %s16
  %23 = vst [vmem:[#allocation4] sm:$0x1] %v22
  loop: start=0, step=1, limit=4
  $region2: #{rank_net.1} parent=0 // loop_pre_header
    _
  $region3: #{rank_net.1} parent=0 // loop_header
    %s25 = sphi 0, %s29
    %p26 = scmp.ge.s32.totalorder %s25, 4
    %s35 = sphi 0, %s37
    %s38 = sphi 0, %s35
    %s39 = sphi 0, %s38
    %s55 = sphi 0, %s39
    %s61 = sphi 0, %s63
    %s64 = sphi 0, %s61
    %s65 = sphi 0, %s64
    %s81 = sphi 0, %s65
    %s85 = sphi 0, %s85
    %s87 = sphi 0, %s85
    %s88 = sphi 0, %s87
    %s102 = sphi 0, %s88
    %s106 = sphi 0, %s106
    %s108 = sphi 0, %s106
    %s109 = sphi 0, %s108
    %s123 = sphi 0, %s109
    %s127 = sphi 0, %s127
    %s129 = sphi 0, %s127
    %s130 = sphi 0, %s129
    %s144 = sphi 0, %s130
    %s148 = sphi 0, %s148
    %s150 = sphi 0, %s148
    %s151 = sphi 0, %s150
    %s165 = sphi 0, %s151
    %s169 = sphi 0, %s169
    %s171 = sphi 0, %s169
    %s172 = sphi 0, %s171
    %s186 = sphi 0, %s172
    %s190 = sphi 0, %s190
    %s192 = sphi 0, %s190
    %s193 = sphi 0, %s192
    %s207 = sphi 0, %s193
    %s211 = sphi 0, %s211
    %s213 = sphi 0, %s211
    %s214 = sphi 0, %s213
    %s228 = sphi 0, %s214
    %s232 = sphi 0, %s232
    %s234 = sphi 0, %s232
    %s235 = sphi 0, %s234
    %s249 = sphi 0, %s235
    %s253 = sphi 0, %s253
    %s255 = sphi 0, %s253
    %s256 = sphi 0, %s255
    %s270 = sphi 0, %s256
    %s274 = sphi 0, %s274
    %s276 = sphi 0, %s274
    %s277 = sphi 0, %s276
    %s291 = sphi 0, %s277
    %s295 = sphi 0, %s295
    %s297 = sphi 0, %s295
    %s298 = sphi 0, %s297
    %s312 = sphi 0, %s298
    %s316 = sphi 0, %s316
    %s318 = sphi 0, %s316
    %s319 = sphi 0, %s318
    %s333 = sphi 0, %s319
    %s337 = sphi 0, %s337
    %s339 = sphi 0, %s337
    %s340 = sphi 0, %s339
    %s354 = sphi 0, %s340
    %s358 = sphi 0, %s358
    %s360 = sphi 0, %s358
    %s361 = sphi 0, %s360
    %s375 = sphi 0, %s361
    %s379 = sphi 0, %s379
    %s381 = sphi 0, %s379
    %s382 = sphi 0, %s381
    %s396 = sphi 0, %s382
    %s402 = sphi 0, %s404
    %s405 = sphi 0, %s402
    %s406 = sphi 0, %s405
    %s422 = sphi 0, %s406
  $region4: #{rank_net.1} parent=0 // loop_header_branch
    %28 = sbr.rel (%p26) target = $region8
  $region5: #{rank_net.1} parent=0 // loop_body
    %s30 = ssub.s32 %s25, 1
    %s31 = ssub.s32 %s25, 2
    %s32 = sadd.s32 %s25, 1
    %s33 = ssub.s32 %s25, %s32
    %p34 = scmp.eq.s32.totalorder %s33, 0
    %s36 = sadd.s32 %s35, 1
    %s37 = scalar_select %p34, %s35, %s36
    %p40 = pneg %p34
    %p41 = scmp.eq.s32.totalorder %s25, 1
    %p42 = por %p40, %p41
    %p43 = scmp.ne.s32.totalorder %s35, %s38
    %p44 = scmp.eq.s32.totalorder %s25, 0
    %p45 = por %p43, %p44
    %p46 = scmp.ne.s32.totalorder %s35, %s38
    %p47 = scmp.eq.s32.totalorder %s30, 1
    %p48 = por %p46, %p47
    %p49 = scmp.ne.s32.totalorder %s38, %s39
    %p50 = scmp.eq.s32.totalorder %s30, 0
    %p51 = por %p49, %p50
    %p52 = scmp.ne.s32.totalorder %s38, %s39
    %p53 = scmp.eq.s32.totalorder %s31, 1
    %p54 = por %p52, %p53
    %p56 = scmp.ne.s32.totalorder %s39, %s55
    %p57 = scmp.eq.s32.totalorder %s31, 0
    %p58 = por %p56, %p57
    %s59 = ssub.s32 %s25, %s32
    %p60 = scmp.eq.s32.totalorder %s59, 0
    %s62 = sadd.s32 %s61, 1
    %s63 = scalar_select %p60, %s61, %s62
    %p66 = pneg %p60
    %p67 = scmp.eq.s32.totalorder %s25, 1
    %p68 = por %p66, %p67
    %p69 = scmp.ne.s32.totalorder %s61, %s64
    %p70 = scmp.eq.s32.totalorder %s25, 0
    %p71 = por %p69, %p70
    %p72 = scmp.ne.s32.totalorder %s61, %s64
    %p73 = scmp.eq.s32.totalorder %s30, 1
    %p74 = por %p72, %p73
    %p75 = scmp.ne.s32.totalorder %s64, %s65
    %p76 = scmp.eq.s32.totalorder %s30, 0
    %p77 = por %p75, %p76
    %p78 = scmp.ne.s32.totalorder %s64, %s65
    %p79 = scmp.eq.s32.totalorder %s31, 1
    %p80 = por %p78, %p79
    %p82 = scmp.ne.s32.totalorder %s65, %s81
    %p83 = scmp.eq.s32.totalorder %s31, 0
    %p84 = por %p82, %p83
    %s86 = sadd.s32 %s85, 1
    %p89 = scmp.eq.s32.totalorder %s25, 1
    %p90 = scmp.ne.s32.totalorder %s85, %s87
    %p91 = scmp.eq.s32.totalorder %s25, 0
    %p92 = por %p90, %p91
    %p93 = scmp.ne.s32.totalorder %s85, %s87
    %p94 = scmp.eq.s32.totalorder %s30, 1
    %p95 = por %p93, %p94
    %p96 = scmp.ne.s32.totalorder %s87, %s88
    %p97 = scmp.eq.s32.totalorder %s30, 0
    %p98 = por %p96, %p97
    %p99 = scmp.ne.s32.totalorder %s87, %s88
    %p100 = scmp.eq.s32.totalorder %s31, 1
    %p101 = por %p99, %p100
    %p103 = scmp.ne.s32.totalorder %s88, %s102
    %p104 = scmp.eq.s32.totalorder %s31, 0
    %p105 = por %p103, %p104
    %s107 = sadd.s32 %s106, 1
    %p110 = scmp.eq.s32.totalorder %s25, 1
    %p111 = scmp.ne.s32.totalorder %s106, %s108
    %p112 = scmp.eq.s32.totalorder %s25, 0
    %p113 = por %p111, %p112
    %p114 = scmp.ne.s32.totalorder %s106, %s108
    %p115 = scmp.eq.s32.totalorder %s30, 1
    %p116 = por %p114, %p115
    %p117 = scmp.ne.s32.totalorder %s108, %s109
    %p118 = scmp.eq.s32.totalorder %s30, 0
    %p119 = por %p117, %p118
    %p120 = scmp.ne.s32.totalorder %s108, %s109
    %p121 = scmp.eq.s32.totalorder %s31, 1
    %p122 = por %p120, %p121
    %p124 = scmp.ne.s32.totalorder %s109, %s123
    %p125 = scmp.eq.s32.totalorder %s31, 0
    %p126 = por %p124, %p125
    %s128 = sadd.s32 %s127, 1
    %p131 = scmp.eq.s32.totalorder %s25, 1
    %p132 = scmp.ne.s32.totalorder %s127, %s129
    %p133 = scmp.eq.s32.totalorder %s25, 0
    %p134 = por %p132, %p133
    %p135 = scmp.ne.s32.totalorder %s127, %s129
    %p136 = scmp.eq.s32.totalorder %s30, 1
    %p137 = por %p135, %p136
    %p138 = scmp.ne.s32.totalorder %s129, %s130
    %p139 = scmp.eq.s32.totalorder %s30, 0
    %p140 = por %p138, %p139
    %p141 = scmp.ne.s32.totalorder %s129, %s130
    %p142 = scmp.eq.s32.totalorder %s31, 1
    %p143 = por %p141, %p142
    %p145 = scmp.ne.s32.totalorder %s130, %s144
    %p146 = scmp.eq.s32.totalorder %s31, 0
    %p147 = por %p145, %p146
    %s149 = sadd.s32 %s148, 1
    %p152 = scmp.eq.s32.totalorder %s25, 1
    %p153 = scmp.ne.s32.totalorder %s148, %s150
    %p154 = scmp.eq.s32.totalorder %s25, 0
    %p155 = por %p153, %p154
    %p156 = scmp.ne.s32.totalorder %s148, %s150
    %p157 = scmp.eq.s32.totalorder %s30, 1
    %p158 = por %p156, %p157
    %p159 = scmp.ne.s32.totalorder %s150, %s151
    %p160 = scmp.eq.s32.totalorder %s30, 0
    %p161 = por %p159, %p160
    %p162 = scmp.ne.s32.totalorder %s150, %s151
    %p163 = scmp.eq.s32.totalorder %s31, 1
    %p164 = por %p162, %p163
    %p166 = scmp.ne.s32.totalorder %s151, %s165
    %p167 = scmp.eq.s32.totalorder %s31, 0
    %p168 = por %p166, %p167
    %s170 = sadd.s32 %s169, 1
    %p173 = scmp.eq.s32.totalorder %s25, 1
    %p174 = scmp.ne.s32.totalorder %s169, %s171
    %p175 = scmp.eq.s32.totalorder %s25, 0
    %p176 = por %p174, %p175
    %p177 = scmp.ne.s32.totalorder %s169, %s171
    %p178 = scmp.eq.s32.totalorder %s30, 1
    %p179 = por %p177, %p178
    %p180 = scmp.ne.s32.totalorder %s171, %s172
    %p181 = scmp.eq.s32.totalorder %s30, 0
    %p182 = por %p180, %p181
    %p183 = scmp.ne.s32.totalorder %s171, %s172
    %p184 = scmp.eq.s32.totalorder %s31, 1
    %p185 = por %p183, %p184
    %p187 = scmp.ne.s32.totalorder %s172, %s186
    %p188 = scmp.eq.s32.totalorder %s31, 0
    %p189 = por %p187, %p188
    %s191 = sadd.s32 %s190, 1
    %p194 = scmp.eq.s32.totalorder %s25, 1
    %p195 = scmp.ne.s32.totalorder %s190, %s192
    %p196 = scmp.eq.s32.totalorder %s25, 0
    %p197 = por %p195, %p196
    %p198 = scmp.ne.s32.totalorder %s190, %s192
    %p199 = scmp.eq.s32.totalorder %s30, 1
    %p200 = por %p198, %p199
    %p201 = scmp.ne.s32.totalorder %s192, %s193
    %p202 = scmp.eq.s32.totalorder %s30, 0
    %p203 = por %p201, %p202
    %p204 = scmp.ne.s32.totalorder %s192, %s193
    %p205 = scmp.eq.s32.totalorder %s31, 1
    %p206 = por %p204, %p205
    %p208 = scmp.ne.s32.totalorder %s193, %s207
    %p209 = scmp.eq.s32.totalorder %s31, 0
    %p210 = por %p208, %p209
    %s212 = sadd.s32 %s211, 1
    %p215 = scmp.eq.s32.totalorder %s25, 1
    %p216 = scmp.ne.s32.totalorder %s211, %s213
    %p217 = scmp.eq.s32.totalorder %s25, 0
    %p218 = por %p216, %p217
    %p219 = scmp.ne.s32.totalorder %s211, %s213
    %p220 = scmp.eq.s32.totalorder %s30, 1
    %p221 = por %p219, %p220
    %p222 = scmp.ne.s32.totalorder %s213, %s214
    %p223 = scmp.eq.s32.totalorder %s30, 0
    %p224 = por %p222, %p223
    %p225 = scmp.ne.s32.totalorder %s213, %s214
    %p226 = scmp.eq.s32.totalorder %s31, 1
    %p227 = por %p225, %p226
    %p229 = scmp.ne.s32.totalorder %s214, %s228
    %p230 = scmp.eq.s32.totalorder %s31, 0
    %p231 = por %p229, %p230
    %s233 = sadd.s32 %s232, 1
    %p236 = scmp.eq.s32.totalorder %s25, 1
    %p237 = scmp.ne.s32.totalorder %s232, %s234
    %p238 = scmp.eq.s32.totalorder %s25, 0
    %p239 = por %p237, %p238
    %p240 = scmp.ne.s32.totalorder %s232, %s234
    %p241 = scmp.eq.s32.totalorder %s30, 1
    %p242 = por %p240, %p241
    %p243 = scmp.ne.s32.totalorder %s234, %s235
    %p244 = scmp.eq.s32.totalorder %s30, 0
    %p245 = por %p243, %p244
    %p246 = scmp.ne.s32.totalorder %s234, %s235
    %p247 = scmp.eq.s32.totalorder %s31, 1
    %p248 = por %p246, %p247
    %p250 = scmp.ne.s32.totalorder %s235, %s249
    %p251 = scmp.eq.s32.totalorder %s31, 0
    %p252 = por %p250, %p251
    %s254 = sadd.s32 %s253, 1
    %p257 = scmp.eq.s32.totalorder %s25, 1
    %p258 = scmp.ne.s32.totalorder %s253, %s255
    %p259 = scmp.eq.s32.totalorder %s25, 0
    %p260 = por %p258, %p259
    %p261 = scmp.ne.s32.totalorder %s253, %s255
    %p262 = scmp.eq.s32.totalorder %s30, 1
    %p263 = por %p261, %p262
    %p264 = scmp.ne.s32.totalorder %s255, %s256
    %p265 = scmp.eq.s32.totalorder %s30, 0
    %p266 = por %p264, %p265
    %p267 = scmp.ne.s32.totalorder %s255, %s256
    %p268 = scmp.eq.s32.totalorder %s31, 1
    %p269 = por %p267, %p268
    %p271 = scmp.ne.s32.totalorder %s256, %s270
    %p272 = scmp.eq.s32.totalorder %s31, 0
    %p273 = por %p271, %p272
    %s275 = sadd.s32 %s274, 1
    %p278 = scmp.eq.s32.totalorder %s25, 1
    %p279 = scmp.ne.s32.totalorder %s274, %s276
    %p280 = scmp.eq.s32.totalorder %s25, 0
    %p281 = por %p279, %p280
    %p282 = scmp.ne.s32.totalorder %s274, %s276
    %p283 = scmp.eq.s32.totalorder %s30, 1
    %p284 = por %p282, %p283
    %p285 = scmp.ne.s32.totalorder %s276, %s277
    %p286 = scmp.eq.s32.totalorder %s30, 0
    %p287 = por %p285, %p286
    %p288 = scmp.ne.s32.totalorder %s276, %s277
    %p289 = scmp.eq.s32.totalorder %s31, 1
    %p290 = por %p288, %p289
    %p292 = scmp.ne.s32.totalorder %s277, %s291
    %p293 = scmp.eq.s32.totalorder %s31, 0
    %p294 = por %p292, %p293
    %s296 = sadd.s32 %s295, 1
    %p299 = scmp.eq.s32.totalorder %s25, 1
    %p300 = scmp.ne.s32.totalorder %s295, %s297
    %p301 = scmp.eq.s32.totalorder %s25, 0
    %p302 = por %p300, %p301
    %p303 = scmp.ne.s32.totalorder %s295, %s297
    %p304 = scmp.eq.s32.totalorder %s30, 1
    %p305 = por %p303, %p304
    %p306 = scmp.ne.s32.totalorder %s297, %s298
    %p307 = scmp.eq.s32.totalorder %s30, 0
    %p308 = por %p306, %p307
    %p309 = scmp.ne.s32.totalorder %s297, %s298
    %p310 = scmp.eq.s32.totalorder %s31, 1
    %p311 = por %p309, %p310
    %p313 = scmp.ne.s32.totalorder %s298, %s312
    %p314 = scmp.eq.s32.totalorder %s31, 0
    %p315 = por %p313, %p314
    %s317 = sadd.s32 %s316, 1
    %p320 = scmp.eq.s32.totalorder %s25, 1
    %p321 = scmp.ne.s32.totalorder %s316, %s318
    %p322 = scmp.eq.s32.totalorder %s25, 0
    %p323 = por %p321, %p322
    %p324 = scmp.ne.s32.totalorder %s316, %s318
    %p325 = scmp.eq.s32.totalorder %s30, 1
    %p326 = por %p324, %p325
    %p327 = scmp.ne.s32.totalorder %s318, %s319
    %p328 = scmp.eq.s32.totalorder %s30, 0
    %p329 = por %p327, %p328
    %p330 = scmp.ne.s32.totalorder %s318, %s319
    %p331 = scmp.eq.s32.totalorder %s31, 1
    %p332 = por %p330, %p331
    %p334 = scmp.ne.s32.totalorder %s319, %s333
    %p335 = scmp.eq.s32.totalorder %s31, 0
    %p336 = por %p334, %p335
    %s338 = sadd.s32 %s337, 1
    %p341 = scmp.eq.s32.totalorder %s25, 1
    %p342 = scmp.ne.s32.totalorder %s337, %s339
    %p343 = scmp.eq.s32.totalorder %s25, 0
    %p344 = por %p342, %p343
    %p345 = scmp.ne.s32.totalorder %s337, %s339
    %p346 = scmp.eq.s32.totalorder %s30, 1
    %p347 = por %p345, %p346
    %p348 = scmp.ne.s32.totalorder %s339, %s340
    %p349 = scmp.eq.s32.totalorder %s30, 0
    %p350 = por %p348, %p349
    %p351 = scmp.ne.s32.totalorder %s339, %s340
    %p352 = scmp.eq.s32.totalorder %s31, 1
    %p353 = por %p351, %p352
    %p355 = scmp.ne.s32.totalorder %s340, %s354
    %p356 = scmp.eq.s32.totalorder %s31, 0
    %p357 = por %p355, %p356
    %s359 = sadd.s32 %s358, 1
    %p362 = scmp.eq.s32.totalorder %s25, 1
    %p363 = scmp.ne.s32.totalorder %s358, %s360
    %p364 = scmp.eq.s32.totalorder %s25, 0
    %p365 = por %p363, %p364
    %p366 = scmp.ne.s32.totalorder %s358, %s360
    %p367 = scmp.eq.s32.totalorder %s30, 1
    %p368 = por %p366, %p367
    %p369 = scmp.ne.s32.totalorder %s360, %s361
    %p370 = scmp.eq.s32.totalorder %s30, 0
    %p371 = por %p369, %p370
    %p372 = scmp.ne.s32.totalorder %s360, %s361
    %p373 = scmp.eq.s32.totalorder %s31, 1
    %p374 = por %p372, %p373
    %p376 = scmp.ne.s32.totalorder %s361, %s375
    %p377 = scmp.eq.s32.totalorder %s31, 0
    %p378 = por %p376, %p377
    %s380 = sadd.s32 %s379, 1
    %p383 = scmp.eq.s32.totalorder %s25, 1
    %p384 = scmp.ne.s32.totalorder %s379, %s381
    %p385 = scmp.eq.s32.totalorder %s25, 0
    %p386 = por %p384, %p385
    %p387 = scmp.ne.s32.totalorder %s379, %s381
    %p388 = scmp.eq.s32.totalorder %s30, 1
    %p389 = por %p387, %p388
    %p390 = scmp.ne.s32.totalorder %s381, %s382
    %p391 = scmp.eq.s32.totalorder %s30, 0
    %p392 = por %p390, %p391
    %p393 = scmp.ne.s32.totalorder %s381, %s382
    %p394 = scmp.eq.s32.totalorder %s31, 1
    %p395 = por %p393, %p394
    %p397 = scmp.ne.s32.totalorder %s382, %s396
    %p398 = scmp.eq.s32.totalorder %s31, 0
    %p399 = por %p397, %p398
    %s400 = ssub.s32 %s25, %s32
    %p401 = scmp.eq.s32.totalorder %s400, 0
    %s403 = sadd.s32 %s402, 1
    %s404 = scalar_select %p401, %s402, %s403
    %p407 = pneg %p401
    %p408 = scmp.eq.s32.totalorder %s25, 1
    %p409 = por %p407, %p408
    %p410 = scmp.ne.s32.totalorder %s402, %s405
    %p411 = scmp.eq.s32.totalorder %s25, 0
    %p412 = por %p410, %p411
    %p413 = scmp.ne.s32.totalorder %s402, %s405
    %p414 = scmp.eq.s32.totalorder %s30, 1
    %p415 = por %p413, %p414
    %p416 = scmp.ne.s32.totalorder %s405, %s406
    %p417 = scmp.eq.s32.totalorder %s30, 0
    %p418 = por %p416, %p417
    %p419 = scmp.ne.s32.totalorder %s405, %s406
    %p420 = scmp.eq.s32.totalorder %s31, 1
    %p421 = por %p419, %p420
    %p423 = scmp.ne.s32.totalorder %s406, %s422
    %p424 = scmp.eq.s32.totalorder %s31, 0
    %p425 = por %p423, %p424
    %p426 = scmp.le.s32.totalorder 1, %s25
    %p427 = scmp.lt.s32.totalorder %s25, 3
    %p428 = pnand %p426, %p427
    %p429 = pneg %p428
    // Predicated region
    $region9: #{rank_net.1} parent=5 // pred_check
      _
    $region10: #{rank_net.1} parent=5 // pred_check_branch
      %431 = sbr.rel (%p428) target = $region12
    $region11: #{rank_net.1} parent=5 // pred_region
      %s432 = ssub.s32 %s25, 1
      // Predicated region
      $region13: #{rank_net.1} parent=11 // pred_check
        %p433 = pneg %p98
      $region14: #{rank_net.1} parent=11 // pred_check_branch
        %435 = sbr.rel (%p433) target = $region16
      $region15: #{rank_net.1} parent=11 // pred_region
        _
      $region16: #{rank_net.1} parent=11 // pred_fallthru
        _
      // Predicated region
      $region17: #{rank_net.1} parent=11 // pred_check
        %p436 = pneg %p119
      $region18: #{rank_net.1} parent=11 // pred_check_branch
        %438 = sbr.rel (%p436) target = $region20
      $region19: #{rank_net.1} parent=11 // pred_region
        _
      $region20: #{rank_net.1} parent=11 // pred_fallthru
        _
      // Predicated region
      $region21: #{rank_net.1} parent=11 // pred_check
        %p439 = pneg %p140
      $region22: #{rank_net.1} parent=11 // pred_check_branch
        %441 = sbr.rel (%p439) target = $region24
      $region23: #{rank_net.1} parent=11 // pred_region
        _
      $region24: #{rank_net.1} parent=11 // pred_fallthru
        _
      // Predicated region
      $region25: #{rank_net.1} parent=11 // pred_check
        %p442 = pneg %p161
      $region26: #{rank_net.1} parent=11 // pred_check_branch
        %444 = sbr.rel (%p442) target = $region28
      $region27: #{rank_net.1} parent=11 // pred_region
        _
      $region28: #{rank_net.1} parent=11 // pred_fallthru
        _
      // Predicated region
      $region29: #{rank_net.1} parent=11 // pred_check
        %p445 = pneg %p182
      $region30: #{rank_net.1} parent=11 // pred_check_branch
        %447 = sbr.rel (%p445) target = $region32
      $region31: #{rank_net.1} parent=11 // pred_region
        _
      $region32: #{rank_net.1} parent=11 // pred_fallthru
        _
      // Predicated region
      $region33: #{rank_net.1} parent=11 // pred_check
        %p448 = pneg %p203
      $region34: #{rank_net.1} parent=11 // pred_check_branch
        %450 = sbr.rel (%p448) target = $region36
      $region35: #{rank_net.1} parent=11 // pred_region
        _
      $region36: #{rank_net.1} parent=11 // pred_fallthru
        _
      // Predicated region
      $region37: #{rank_net.1} parent=11 // pred_check
        %p451 = pneg %p224
      $region38: #{rank_net.1} parent=11 // pred_check_branch
        %453 = sbr.rel (%p451) target = $region40
      $region39: #{rank_net.1} parent=11 // pred_region
        _
      $region40: #{rank_net.1} parent=11 // pred_fallthru
        _
      // Predicated region
      $region41: #{rank_net.1} parent=11 // pred_check
        %p454 = pneg %p245
      $region42: #{rank_net.1} parent=11 // pred_check_branch
        %456 = sbr.rel (%p454) target = $region44
      $region43: #{rank_net.1} parent=11 // pred_region
        _
      $region44: #{rank_net.1} parent=11 // pred_fallthru
        _
      // Predicated region
      $region45: #{rank_net.1} parent=11 // pred_check
        %p457 = pneg %p266
      $region46: #{rank_net.1} parent=11 // pred_check_branch
        %459 = sbr.rel (%p457) target = $region48
      $region47: #{rank_net.1} parent=11 // pred_region
        _
      $region48: #{rank_net.1} parent=11 // pred_fallthru
        _
      // Predicated region
      $region49: #{rank_net.1} parent=11 // pred_check
        %p460 = pneg %p287
      $region50: #{rank_net.1} parent=11 // pred_check_branch
        %462 = sbr.rel (%p460) target = $region52
      $region51: #{rank_net.1} parent=11 // pred_region
        _
      $region52: #{rank_net.1} parent=11 // pred_fallthru
        _
      // Predicated region
      $region53: #{rank_net.1} parent=11 // pred_check
        %p463 = pneg %p308
      $region54: #{rank_net.1} parent=11 // pred_check_branch
        %465 = sbr.rel (%p463) target = $region56
      $region55: #{rank_net.1} parent=11 // pred_region
        _
      $region56: #{rank_net.1} parent=11 // pred_fallthru
        _
      // Predicated region
      $region57: #{rank_net.1} parent=11 // pred_check
        %p466 = pneg %p329
      $region58: #{rank_net.1} parent=11 // pred_check_branch
        %468 = sbr.rel (%p466) target = $region60
      $region59: #{rank_net.1} parent=11 // pred_region
        _
      $region60: #{rank_net.1} parent=11 // pred_fallthru
        _
      // Predicated region
      $region61: #{rank_net.1} parent=11 // pred_check
        %p469 = pneg %p350
      $region62: #{rank_net.1} parent=11 // pred_check_branch
        %471 = sbr.rel (%p469) target = $region64
      $region63: #{rank_net.1} parent=11 // pred_region
        _
      $region64: #{rank_net.1} parent=11 // pred_fallthru
        _
      // Predicated region
      $region65: #{rank_net.1} parent=11 // pred_check
        %p472 = pneg %p371
      $region66: #{rank_net.1} parent=11 // pred_check_branch
        %474 = sbr.rel (%p472) target = $region68
      $region67: #{rank_net.1} parent=11 // pred_region
        _
      $region68: #{rank_net.1} parent=11 // pred_fallthru
        _
      // Predicated region
      $region69: #{rank_net.1} parent=11 // pred_check
        %p475 = pneg %p392
      $region70: #{rank_net.1} parent=11 // pred_check_branch
        %477 = sbr.rel (%p475) target = $region72
      $region71: #{rank_net.1} parent=11 // pred_region
        _
      $region72: #{rank_net.1} parent=11 // pred_fallthru
        _
    $region12: #{rank_net.1} parent=5 // pred_fallthru
      _
    %p478 = scmp.lt.s32.totalorder %s25, 2
    // Predicated region
    $region73: #{rank_net.1} parent=5 // pred_check
      %p479 = pneg %p478
    $region74: #{rank_net.1} parent=5 // pred_check_branch
      %481 = sbr.rel (%p479) target = $region76
    $region75: #{rank_net.1} parent=5 // pred_region
      // Predicated region
      $region77: #{rank_net.1} parent=75 // pred_check
        %p482 = pneg %p45
      $region78: #{rank_net.1} parent=75 // pred_check_branch
        %484 = sbr.rel (%p482) target = $region80
      $region79: #{rank_net.1} parent=75 // pred_region
        %p485 = scmp.lt.s32.totalorder %s25, 1
        %s486 = scalar_select %p485, %s25, 1
        %s487 = smul.addr %s486, 16
        %s488 = smul.addr %s487, 4
        %s489 = scalar_lea.vmem %s0, %s488
      $region80: #{rank_net.1} parent=75 // pred_fallthru
        _
      // Predicated region
      $region81: #{rank_net.1} parent=75 // pred_check
        %p490 = pneg %p71
      $region82: #{rank_net.1} parent=75 // pred_check_branch
        %492 = sbr.rel (%p490) target = $region84
      $region83: #{rank_net.1} parent=75 // pred_region
        %p493 = scmp.lt.s32.totalorder %s25, 1
        %s494 = scalar_select %p493, %s25, 1
        %s495 = smul.addr %s494, 2
        %s496 = scalar_lea.vmem %s1, %s495
      $region84: #{rank_net.1} parent=75 // pred_fallthru
        _
    $region76: #{rank_net.1} parent=5 // pred_fallthru
      _
    %p497 = scmp.le.s32.totalorder 1, %s25
    %p498 = scmp.lt.s32.totalorder %s25, 3
    %p499 = pnand %p497, %p498
    %p500 = pneg %p499
    // Predicated region
    $region85: #{rank_net.1} parent=5 // pred_check
      _
    $region86: #{rank_net.1} parent=5 // pred_check_branch
      %502 = sbr.rel (%p499) target = $region88
    $region87: #{rank_net.1} parent=5 // pred_region
      %s503 = ssub.s32 %s25, 1
      %p504 = scmp.lt.s32.totalorder %s30, 1
      %s505 = scalar_select %p504, %s30, 1
      %s506 = smul.addr %s505, 16
      %s507 = smul.addr %s506, 4
      %s508 = scalar_lea.vmem %s0, %s507
      %p509 = pneg %p51
      %p510 = pneg %p48
      %p511 = scmp.lt.s32.totalorder %s30, 1
      %s512 = scalar_select %p511, %s30, 1
      %s513 = smul.addr %s512, 2
      %s514 = scalar_lea.vmem %s1, %s513
      %p515 = pneg %p77
      %p516 = pneg %p74
      %p517 = pneg %p98
      %p518 = pneg %p95
      %p519 = pneg %p119
      %p520 = pneg %p116
      %p521 = pneg %p140
      %p522 = pneg %p137
      %p523 = pneg %p161
      %p524 = pneg %p158
      %p525 = pneg %p182
      %p526 = pneg %p179
      %p527 = pneg %p203
      %p528 = pneg %p200
      %p529 = pneg %p224
      %p530 = pneg %p221
      %p531 = pneg %p245
      %p532 = pneg %p242
      %p533 = pneg %p266
      %p534 = pneg %p263
      %p535 = pneg %p287
      %p536 = pneg %p284
      %p537 = pneg %p308
      %p538 = pneg %p305
      %p539 = pneg %p329
      %p540 = pneg %p326
      %p541 = pneg %p350
      %p542 = pneg %p347
      %p543 = pneg %p371
      %p544 = pneg %p368
      %p545 = pneg %p392
      %p546 = pneg %p389
      %p547 = pneg %p418
      %p548 = pneg %p415
      %p549 = scmp.lt.s32.totalorder %s30, 1
      %s550 = scalar_select %p549, %s30, 1
      %s551 = scalar_lea.vmem %s17, %s550
      %p552 = scmp.lt.s32.totalorder %s30, 1
      %s553 = scalar_select %p552, %s30, 1
      %s554 = smul.addr %s553, 16
      %s555 = smul.addr %s554, 4
      %s556 = scalar_lea.vmem %s0, %s555
      %p557 = scmp.lt.s32.totalorder %s30, 1
      %s558 = scalar_select %p557, %s30, 1
      %s559 = smul.addr %s558, 2
      %s560 = scalar_lea.vmem %s1, %s559
      %p561 = scmp.lt.s32.totalorder %s30, 1
      %s562 = scalar_select %p561, %s30, 1
      %s563 = scalar_lea.vmem %s17, %s562
      %v565 = vld [vmem:[%s560] sm:$0x3]
      %v566 = vld [vmem:[%s2] sm:$0xff]
      %v567 = vld [vmem:[%s2 + $0x8] sm:$0xff]
      %v568 = vld [vmem:[%s2 + $0x10] sm:$0xff]
      %v569 = vld [vmem:[%s2 + $0x18] sm:$0xff]
      %v570 = vld [vmem:[%s3] sm:$0x1]
      %v572 = vlaneseq
      %v573 = vshrl.u32 %v572, 7
      %v574 = vsub.s32 0, %v573
      %v575 = vrot.slane %v570, %v574
      %vm577 = vcmask 261120
      %v579 = vsel %vm577, %v565, 0
      %581 = vmatprep.subr.mxu0 0.0
      %582 = vmatpush1.msra.mxu0 %v566
      %583 = vmatprep.subr.mxu0 0.0
      %584 = vmatpush1.msra.mxu0 %v567
      %585 = vmatprep.subr.mxu0 0.0
      %586 = vmatpush1.msra.mxu0 %v568
      %587 = vmatprep.subr.mxu0 0.0
      %588 = vmatpush1.msra.mxu0 %v569
      %589 = vmatprep.subr.mxu0 0.0
      %590 = vmatpush1.msra.mxu0 0.0
      %591 = vmatprep.subr.mxu0 0.0
      %592 = vmatpush1.msra.mxu0 0.0
      %593 = vmatprep.subr.mxu0 0.0
      %594 = vmatpush1.msra.mxu0 0.0
      %595 = vmatprep.subr.mxu0 0.0
      %596 = vmatpush1.msra.mxu0 0.0
      %597 = vmatprep.subr.mxu0 0.0
      %598 = vmatpush1.msra.mxu0 0.0
      %599 = vmatprep.subr.mxu0 0.0
      %600 = vmatpush1.msra.mxu0 0.0
      %601 = vmatprep.subr.mxu0 0.0
      %602 = vmatpush1.msra.mxu0 0.0
      %603 = vmatprep.subr.mxu0 0.0
      %604 = vmatpush1.msra.mxu0 0.0
      %605 = vmatprep.subr.mxu0 0.0
      %606 = vmatpush1.msra.mxu0 0.0
      %607 = vmatprep.subr.mxu0 0.0
      %608 = vmatpush1.msra.mxu0 0.0
      %609 = vmatprep.subr.mxu0 0.0
      %610 = vmatpush1.msra.mxu0 0.0
      %611 = vmatprep.subr.mxu0 0.0
      %612 = vmatpush1.msra.mxu0 0.0
      %613 = vmatprep.subr.mxu0 0.0
      %614 = vmatpush1.msra.mxu0 0.0
      %615 = vmatprep.subr.mxu0 0.0
      %616 = vmatpush1.msra.mxu0 0.0
      %617 = vmatprep.subr.mxu0 0.0
      %618 = vmatpush1.msra.mxu0 0.0
      %619 = vmatprep.subr.mxu0 0.0
      %620 = vmatpush1.msra.mxu0 0.0
      %621 = vmatprep.subr.mxu0 0.0
      %622 = vmatpush1.msra.mxu0 0.0
      %623 = vmatprep.subr.mxu0 0.0
      %624 = vmatpush1.msra.mxu0 0.0
      %625 = vmatprep.subr.mxu0 0.0
      %626 = vmatpush1.msra.mxu0 0.0
      %627 = vmatprep.subr.mxu0 0.0
      %628 = vmatpush1.msra.mxu0 0.0
      %629 = vmatprep.subr.mxu0 0.0
      %630 = vmatpush1.msra.mxu0 0.0
      %631 = vmatprep.subr.mxu0 0.0
      %632 = vmatpush1.msra.mxu0 0.0
      %633 = vmatprep.subr.mxu0 0.0
      %634 = vmatpush1.msra.mxu0 0.0
      %635 = vmatprep.subr.mxu0 0.0
      %636 = vmatpush1.msra.mxu0 0.0
      %637 = vmatprep.subr.mxu0 0.0
      %638 = vmatpush1.msra.mxu0 0.0
      %639 = vmatprep.subr.mxu0 0.0
      %640 = vmatpush1.msra.mxu0 0.0
      %641 = vmatprep.subr.mxu0 0.0
      %642 = vmatpush1.msra.mxu0 0.0
      %643 = vmatprep.subr.mxu0 0.0
      %644 = vmatpush1.msra.mxu0 0.0
      %645 = vmatprep.mubr.f32.mxu0 0.0
      %646 = vmatmul.mubr.f32.gmra.mrb[0].mxu0 %v579
      %v647 = vpop.f32.mrb[0].mxu0
      %v648 = vadd.f32 %v575, %v647
      %v649 = vpop.f32.mrb[0].mxu0
      %650 = vdwg.mxu0
      %v651 = vld [vmem:[%s4] sm:$0xff]
      %v652 = vld [vmem:[%s4 + $0x8] sm:$0xff]
      %v653 = vld [vmem:[%s4 + $0x10] sm:$0xff]
      %v654 = vld [vmem:[%s4 + $0x18] sm:$0xff]
      %v655 = vld [vmem:[%s5] sm:$0x1]
      %v657 = vlaneseq
      %v658 = vshrl.u32 %v657, 7
      %v659 = vsub.s32 0, %v658
      %v660 = vrot.slane %v655, %v659
      %662 = vmatprep.subr.mxu0 0.0
      %663 = vmatpush1.msra.mxu0 %v651
      %664 = vmatprep.subr.mxu0 0.0
      %665 = vmatpush1.msra.mxu0 %v652
      %666 = vmatprep.subr.mxu0 0.0
      %667 = vmatpush1.msra.mxu0 %v653
      %668 = vmatprep.subr.mxu0 0.0
      %669 = vmatpush1.msra.mxu0 %v654
      %670 = vmatprep.subr.mxu0 0.0
      %671 = vmatpush1.msra.mxu0 0.0
      %672 = vmatprep.subr.mxu0 0.0
      %673 = vmatpush1.msra.mxu0 0.0
      %674 = vmatprep.subr.mxu0 0.0
      %675 = vmatpush1.msra.mxu0 0.0
      %676 = vmatprep.subr.mxu0 0.0
      %677 = vmatpush1.msra.mxu0 0.0
      %678 = vmatprep.subr.mxu0 0.0
      %679 = vmatpush1.msra.mxu0 0.0
      %680 = vmatprep.subr.mxu0 0.0
      %681 = vmatpush1.msra.mxu0 0.0
      %682 = vmatprep.subr.mxu0 0.0
      %683 = vmatpush1.msra.mxu0 0.0
      %684 = vmatprep.subr.mxu0 0.0
      %685 = vmatpush1.msra.mxu0 0.0
      %686 = vmatprep.subr.mxu0 0.0
      %687 = vmatpush1.msra.mxu0 0.0
      %688 = vmatprep.subr.mxu0 0.0
      %689 = vmatpush1.msra.mxu0 0.0
      %690 = vmatprep.subr.mxu0 0.0
      %691 = vmatpush1.msra.mxu0 0.0
      %692 = vmatprep.subr.mxu0 0.0
      %693 = vmatpush1.msra.mxu0 0.0
      %694 = vmatprep.subr.mxu0 0.0
      %695 = vmatpush1.msra.mxu0 0.0
      %696 = vmatprep.subr.mxu0 0.0
      %697 = vmatpush1.msra.mxu0 0.0
      %698 = vmatprep.subr.mxu0 0.0
      %699 = vmatpush1.msra.mxu0 0.0
      %700 = vmatprep.subr.mxu0 0.0
      %701 = vmatpush1.msra.mxu0 0.0
      %702 = vmatprep.subr.mxu0 0.0
      %703 = vmatpush1.msra.mxu0 0.0
      %704 = vmatprep.subr.mxu0 0.0
      %705 = vmatpush1.msra.mxu0 0.0
      %706 = vmatprep.subr.mxu0 0.0
      %707 = vmatpush1.msra.mxu0 0.0
      %708 = vmatprep.subr.mxu0 0.0
      %709 = vmatpush1.msra.mxu0 0.0
      %710 = vmatprep.subr.mxu0 0.0
      %711 = vmatpush1.msra.mxu0 0.0
      %712 = vmatprep.subr.mxu0 0.0
      %713 = vmatpush1.msra.mxu0 0.0
      %714 = vmatprep.subr.mxu0 0.0
      %715 = vmatpush1.msra.mxu0 0.0
      %716 = vmatprep.subr.mxu0 0.0
      %717 = vmatpush1.msra.mxu0 0.0
      %718 = vmatprep.subr.mxu0 0.0
      %719 = vmatpush1.msra.mxu0 0.0
      %720 = vmatprep.subr.mxu0 0.0
      %721 = vmatpush1.msra.mxu0 0.0
      %722 = vmatprep.subr.mxu0 0.0
      %723 = vmatpush1.msra.mxu0 0.0
      %724 = vmatprep.subr.mxu0 0.0
      %725 = vmatpush1.msra.mxu0 0.0
      %726 = vmatprep.mubr.f32.mxu0 0.0
      %727 = vmatmul.mubr.f32.gmra.mrb[0].mxu0 %v579
      %v728 = vpop.f32.mrb[0].mxu0
      %v729 = vadd.f32 %v660, %v728
      %v730 = vpop.f32.mrb[0].mxu0
      %731 = vdwg.mxu0
      %v732 = vld [vmem:[%s556] sm:$0xf]
      %v733 = vld [vmem:[%s556 + $0x4] sm:$0xf]
      %v734 = vld [vmem:[%s556 + $0x8] sm:$0xf]
      %v735 = vld [vmem:[%s556 + $0xc] sm:$0xf]
      %v736 = vld [vmem:[%s556 + $0x10] sm:$0xf]
      %v737 = vld [vmem:[%s556 + $0x14] sm:$0xf]
      %v738 = vld [vmem:[%s556 + $0x18] sm:$0xf]
      %v739 = vld [vmem:[%s556 + $0x1c] sm:$0xf]
      %v740 = vld [vmem:[%s556 + $0x20] sm:$0xf]
      %v741 = vld [vmem:[%s556 + $0x24] sm:$0xf]
      %v742 = vld [vmem:[%s556 + $0x28] sm:$0xf]
      %v743 = vld [vmem:[%s556 + $0x2c] sm:$0xf]
      %v744 = vld [vmem:[%s556 + $0x30] sm:$0xf]
      %v745 = vld [vmem:[%s556 + $0x34] sm:$0xf]
      %v746 = vld [vmem:[%s556 + $0x38] sm:$0xf]
      %v747 = vld [vmem:[%s556 + $0x3c] sm:$0x7]
      %v748 = vld [vmem:[%s6] sm:$0xf]
      %v749 = vld [vmem:[%s6 + $0x4] sm:$0xf]
      %v750 = vld [vmem:[%s6 + $0x8] sm:$0xf]
      %v751 = vld [vmem:[%s6 + $0xc] sm:$0xf]
      %v752 = vld [vmem:[%s6 + $0x10] sm:$0xf]
      %v753 = vld [vmem:[%s6 + $0x14] sm:$0xf]
      %v754 = vld [vmem:[%s6 + $0x18] sm:$0xf]
      %v755 = vld [vmem:[%s6 + $0x1c] sm:$0xf]
      %v756 = vld [vmem:[%s6 + $0x20] sm:$0xf]
      %v757 = vld [vmem:[%s6 + $0x24] sm:$0xf]
      %v758 = vld [vmem:[%s6 + $0x28] sm:$0xf]
      %v759 = vld [vmem:[%s6 + $0x2c] sm:$0xf]
      %v760 = vld [vmem:[%s6 + $0x30] sm:$0xf]
      %v761 = vld [vmem:[%s6 + $0x34] sm:$0xf]
      %v762 = vld [vmem:[%s6 + $0x38] sm:$0xf]
      %v763 = vld [vmem:[%s7] sm:$0x1]
      %v765 = vlaneseq
      %v766 = vshrl.u32 %v765, 7
      %v767 = vsub.s32 0, %v766
      %v768 = vrot.slane %v763, %v767
      %v786 = vunpack.c.l.b16 %v732
      %v787 = vunpack.c.l.b16 %v733
      %v788 = vunpack.c.l.b16 %v734
      %v789 = vunpack.c.l.b16 %v735
      %v790 = vunpack.c.l.b16 %v736
      %v791 = vunpack.c.l.b16 %v737
      %v792 = vunpack.c.l.b16 %v738
      %v793 = vunpack.c.l.b16 %v739
      %v794 = vunpack.c.l.b16 %v740
      %v795 = vunpack.c.l.b16 %v741
      %v796 = vunpack.c.l.b16 %v742
      %v797 = vunpack.c.l.b16 %v743
      %v798 = vunpack.c.l.b16 %v744
      %v799 = vunpack.c.l.b16 %v745
      %v800 = vunpack.c.l.b16 %v746
      %v801 = vunpack.c.l.b16 %v747
      %v802 = vpack.c.b16 %v787, %v786
      %v803 = vpack.c.b16 %v789, %v788
      %v804 = vpack.c.b16 %v791, %v790
      %v805 = vpack.c.b16 %v793, %v792
      %v806 = vpack.c.b16 %v795, %v794
      %v807 = vpack.c.b16 %v797, %v796
      %v808 = vpack.c.b16 %v799, %v798
      %v809 = vpack.c.b16 %v801, %v800
      %v825 = vunpack.c.l.b16 %v748
      %v826 = vunpack.c.l.b16 %v749
      %v827 = vunpack.c.l.b16 %v750
      %v828 = vunpack.c.l.b16 %v751
      %v829 = vunpack.c.l.b16 %v752
      %v830 = vunpack.c.l.b16 %v753
      %v831 = vunpack.c.l.b16 %v754
      %v832 = vunpack.c.l.b16 %v755
      %v833 = vunpack.c.l.b16 %v756
      %v834 = vunpack.c.l.b16 %v757
      %v835 = vunpack.c.l.b16 %v758
      %v836 = vunpack.c.l.b16 %v759
      %v837 = vunpack.c.l.b16 %v760
      %v838 = vunpack.c.l.b16 %v761
      %v839 = vunpack.c.l.b16 %v762
      %v840 = vpack.c.b16 %v826, %v825
      %v841 = vpack.c.b16 %v828, %v827
      %v842 = vpack.c.b16 %v830, %v829
      %v843 = vpack.c.b16 %v832, %v831
      %v844 = vpack.c.b16 %v834, %v833
      %v845 = vpack.c.b16 %v836, %v835
      %v846 = vpack.c.b16 %v838, %v837
      %v847 = vpack.c.b16 %v839, %v839
      %vm855 = vcmask 982016
      %v857 = vsel %vm855, %v802, 0
      %v860 = vsel %vm855, %v803, 0
      %v863 = vsel %vm855, %v804, 0
      %v866 = vsel %vm855, %v805, 0
      %v869 = vsel %vm855, %v806, 0
      %v872 = vsel %vm855, %v807, 0
      %v875 = vsel %vm855, %v808, 0
      %v878 = vsel %vm855, %v809, 0
      %vm880 = vcmask 1043456
      %v882 = vsel %vm880, %v847, 0
      %884 = vmatprep.subr.bf16.mxu0 0
      %885 = vmatpush1.bf16.msra.mxu0 %v840
      %886 = vmatprep.subr.bf16.mxu0 0
      %887 = vmatpush1.bf16.msra.mxu0 %v841
      %888 = vmatprep.subr.bf16.mxu0 0
      %889 = vmatpush1.bf16.msra.mxu0 %v842
      %890 = vmatprep.subr.bf16.mxu0 0
      %891 = vmatpush1.bf16.msra.mxu0 %v843
      %892 = vmatprep.subr.bf16.mxu0 0
      %893 = vmatpush1.bf16.msra.mxu0 %v844
      %894 = vmatprep.subr.bf16.mxu0 0
      %895 = vmatpush1.bf16.msra.mxu0 %v845
      %896 = vmatprep.subr.bf16.mxu0 0
      %897 = vmatpush1.bf16.msra.mxu0 %v846
      %898 = vmatprep.subr.bf16.mxu0 0
      %899 = vmatpush1.bf16.msra.mxu0 %v882
      %900 = vmatprep.subr.bf16.mxu0 0
      %901 = vmatpush1.bf16.msra.mxu0 0
      %902 = vmatprep.subr.bf16.mxu0 0
      %903 = vmatpush1.bf16.msra.mxu0 0
      %904 = vmatprep.subr.bf16.mxu0 0
      %905 = vmatpush1.bf16.msra.mxu0 0
      %906 = vmatprep.subr.bf16.mxu0 0
      %907 = vmatpush1.bf16.msra.mxu0 0
      %908 = vmatprep.subr.bf16.mxu0 0
      %909 = vmatpush1.bf16.msra.mxu0 0
      %910 = vmatprep.subr.bf16.mxu0 0
      %911 = vmatpush1.bf16.msra.mxu0 0
      %912 = vmatprep.subr.bf16.mxu0 0
      %913 = vmatpush1.bf16.msra.mxu0 0
      %914 = vmatprep.subr.bf16.mxu0 0
      %915 = vmatpush1.bf16.msra.mxu0 0
      %916 = vmatprep.mubr.bf16.mxu0 0
      %917 = vmatmul.mubr.bf16.gmra.mrb[0].mxu0 %v857
      %v918 = vpop.f32.mrb[0].mxu0
      %v919 = vadd.f32 %v768, %v918
      %v920 = vpop.f32.mrb[0].mxu0
      %v921 = vpop.f32.mrb[0].mxu0
      %v922 = vadd.f32 %v768, %v921
      %v923 = vpop.f32.mrb[0].mxu0
      %924 = vmatprep.mubr.bf16.mxu0 0
      %925 = vmatmul.mubr.bf16.gmra.mrb[0].mxu0 %v860
      %v926 = vpop.f32.mrb[0].mxu0
      %v927 = vadd.f32 %v768, %v926
      %v928 = vpop.f32.mrb[0].mxu0
      %v929 = vpop.f32.mrb[0].mxu0
      %v930 = vadd.f32 %v768, %v929
      %v931 = vpop.f32.mrb[0].mxu0
      %932 = vmatprep.mubr.bf16.mxu0 0
      %933 = vmatmul.mubr.bf16.gmra.mrb[0].mxu0 %v863
      %v934 = vpop.f32.mrb[0].mxu0
      %v935 = vadd.f32 %v768, %v934
      %v936 = vpop.f32.mrb[0].mxu0
      %v937 = vpop.f32.mrb[0].mxu0
      %v938 = vadd.f32 %v768, %v937
      %v939 = vpop.f32.mrb[0].mxu0
      %940 = vmatprep.mubr.bf16.mxu0 0
      %941 = vmatmul.mubr.bf16.gmra.mrb[0].mxu0 %v866
      %v942 = vpop.f32.mrb[0].mxu0
      %v943 = vadd.f32 %v768, %v942
      %v944 = vpop.f32.mrb[0].mxu0
      %v945 = vpop.f32.mrb[0].mxu0
      %v946 = vadd.f32 %v768, %v945
      %v947 = vpop.f32.mrb[0].mxu0
      %948 = vmatprep.mubr.bf16.mxu0 0
      %949 = vmatmul.mubr.bf16.gmra.mrb[0].mxu0 %v869
      %v950 = vpop.f32.mrb[0].mxu0
      %v951 = vadd.f32 %v768, %v950
      %v952 = vpop.f32.mrb[0].mxu0
      %v953 = vpop.f32.mrb[0].mxu0
      %v954 = vadd.f32 %v768, %v953
      %v955 = vpop.f32.mrb[0].mxu0
      %956 = vmatprep.mubr.bf16.mxu0 0
      %957 = vmatmul.mubr.bf16.gmra.mrb[0].mxu0 %v872
      %v958 = vpop.f32.mrb[0].mxu0
      %v959 = vadd.f32 %v768, %v958
      %v960 = vpop.f32.mrb[0].mxu0
      %v961 = vpop.f32.mrb[0].mxu0
      %v962 = vadd.f32 %v768, %v961
      %v963 = vpop.f32.mrb[0].mxu0
      %964 = vmatprep.mubr.bf16.mxu0 0
      %965 = vmatmul.mubr.bf16.gmra.mrb[0].mxu0 %v875
      %v966 = vpop.f32.mrb[0].mxu0
      %v967 = vadd.f32 %v768, %v966
      %v968 = vpop.f32.mrb[0].mxu0
      %v969 = vpop.f32.mrb[0].mxu0
      %v970 = vadd.f32 %v768, %v969
      %v971 = vpop.f32.mrb[0].mxu0
      %972 = vmatprep.mubr.bf16.mxu0 0
      %973 = vmatmul.mubr.bf16.gmra.mrb[0].mxu0 %v878
      %v974 = vpop.f32.mrb[0].mxu0
      %v975 = vadd.f32 %v768, %v974
      %v976 = vpop.f32.mrb[0].mxu0
      %v977 = vpop.f32.mrb[0].mxu0
      %v978 = vadd.f32 %v768, %v977
      %v979 = vpop.f32.mrb[0].mxu0
      %980 = vdwg.mxu0
      %v981 = vmax.f32 %v919, 0.0
      %v982 = vmax.f32 %v922, 0.0
      %v983 = vmax.f32 %v927, 0.0
      %v984 = vmax.f32 %v930, 0.0
      %v985 = vmax.f32 %v935, 0.0
      %v986 = vmax.f32 %v938, 0.0
      %v987 = vmax.f32 %v943, 0.0
      %v988 = vmax.f32 %v946, 0.0
      %v989 = vmax.f32 %v951, 0.0
      %v990 = vmax.f32 %v954, 0.0
      %v991 = vmax.f32 %v959, 0.0
      %v992 = vmax.f32 %v962, 0.0
      %v993 = vmax.f32 %v967, 0.0
      %v994 = vmax.f32 %v970, 0.0
      %v995 = vmax.f32 %v975, 0.0
      %v996 = vmax.f32 %v978, 0.0
      %v997 = vpack.c.bf16 %v982, %v981
      %v998 = vpack.c.bf16 %v984, %v983
      %v999 = vpack.c.bf16 %v986, %v985
      %v1000 = vpack.c.bf16 %v988, %v987
      %v1001 = vpack.c.bf16 %v990, %v989
      %v1002 = vpack.c.bf16 %v992, %v991
      %v1003 = vpack.c.bf16 %v994, %v993
      %v1004 = vpack.c.bf16 %v996, %v995
      %v1013 = vunpack.c.l.b16 %v997
      %v1014 = vunpack.c.h.b16 %v997
      %v1015 = vunpack.c.l.b16 %v998
      %v1016 = vunpack.c.h.b16 %v998
      %v1017 = vunpack.c.l.b16 %v999
      %v1018 = vunpack.c.h.b16 %v999
      %v1019 = vunpack.c.l.b16 %v1000
      %v1020 = vunpack.c.h.b16 %v1000
      %v1021 = vunpack.c.l.b16 %v1001
      %v1022 = vunpack.c.h.b16 %v1001
      %v1023 = vunpack.c.l.b16 %v1002
      %v1024 = vunpack.c.h.b16 %v1002
      %v1025 = vunpack.c.l.b16 %v1003
      %v1026 = vunpack.c.h.b16 %v1003
      %v1027 = vunpack.c.l.b16 %v1004
      %v1028 = vunpack.c.h.b16 %v1004
      %v1029 = vpack.c.b16 %v1013, %v1013
      %v1030 = vpack.c.b16 %v1014, %v1014
      %v1031 = vpack.c.b16 %v1015, %v1015
      %v1032 = vpack.c.b16 %v1016, %v1016
      %v1033 = vpack.c.b16 %v1017, %v1017
      %v1034 = vpack.c.b16 %v1018, %v1018
      %v1035 = vpack.c.b16 %v1019, %v1019
      %v1036 = vpack.c.b16 %v1020, %v1020
      %v1037 = vpack.c.b16 %v1021, %v1021
      %v1038 = vpack.c.b16 %v1022, %v1022
      %v1039 = vpack.c.b16 %v1023, %v1023
      %v1040 = vpack.c.b16 %v1024, %v1024
      %v1041 = vpack.c.b16 %v1025, %v1025
      %v1042 = vpack.c.b16 %v1026, %v1026
      %v1043 = vpack.c.b16 %v1027, %v1027
      %v1044 = vpack.c.b16 %v1028, %v1028
      %vm1061 = vcmask 519168
      %1062 = vst.msk [vmem:[#allocation2] sm:$0xf] %vm1061, %v1029
      %1063 = vst.msk [vmem:[#allocation2 + $0x4] sm:$0xf] %vm1061, %v1030
      %1064 = vst.msk [vmem:[#allocation2 + $0x8] sm:$0xf] %vm1061, %v1031
      %1065 = vst.msk [vmem:[#allocation2 + $0xc] sm:$0xf] %vm1061, %v1032
      %1066 = vst.msk [vmem:[#allocation2 + $0x10] sm:$0xf] %vm1061, %v1033
      %1067 = vst.msk [vmem:[#allocation2 + $0x14] sm:$0xf] %vm1061, %v1034
      %1068 = vst.msk [vmem:[#allocation2 + $0x18] sm:$0xf] %vm1061, %v1035
      %1069 = vst.msk [vmem:[#allocation2 + $0x1c] sm:$0xf] %vm1061, %v1036
      %1070 = vst.msk [vmem:[#allocation2 + $0x20] sm:$0xf] %vm1061, %v1037
      %1071 = vst.msk [vmem:[#allocation2 + $0x24] sm:$0xf] %vm1061, %v1038
      %1072 = vst.msk [vmem:[#allocation2 + $0x28] sm:$0xf] %vm1061, %v1039
      %1073 = vst.msk [vmem:[#allocation2 + $0x2c] sm:$0xf] %vm1061, %v1040
      %1074 = vst.msk [vmem:[#allocation2 + $0x30] sm:$0xf] %vm1061, %v1041
      %1075 = vst.msk [vmem:[#allocation2 + $0x34] sm:$0xf] %vm1061, %v1042
      %1076 = vst.msk [vmem:[#allocation2 + $0x38] sm:$0xf] %vm1061, %v1043
      %vm1077 = vcmask 518144
      %1078 = vst.msk [vmem:[#allocation2 + $0x3c] sm:$0x7] %vm1077, %v1044
      %v1079 = vld [vmem:[#allocation2] sm:$0xf]
      %v1080 = vld [vmem:[#allocation2 + $0x4] sm:$0xf]
      %v1081 = vld [vmem:[#allocation2 + $0x8] sm:$0xf]
      %v1082 = vld [vmem:[%s8] sm:$0xf]
      %v1083 = vld [vmem:[%s8 + $0x4] sm:$0xf]
      %v1084 = vld [vmem:[%s8 + $0x8] sm:$0xf]
      %v1085 = vld [vmem:[%s8 + $0xc] sm:$0xf]
      %v1086 = vld [vmem:[%s8 + $0x10] sm:$0xf]
      %v1087 = vld [vmem:[%s8 + $0x14] sm:$0xf]
      %v1088 = vld [vmem:[%s8 + $0x18] sm:$0xf]
      %v1089 = vld [vmem:[%s8 + $0x1c] sm:$0xf]
      %v1090 = vld [vmem:[#allocation2] sm:$0xe]
      %v1091 = vld [vmem:[#allocation2 + $0xc] sm:$0x1]
      %s1092 = scalar_lea.vmem %s8, 96
      %v1093 = vld [vmem:[%s1092] sm:$0xf]
      %v1094 = vld [vmem:[%s1092 + $0x4] sm:$0xf]
      %v1095 = vld [vmem:[%s1092 + $0x8] sm:$0xf]
      %v1096 = vld [vmem:[%s1092 + $0xc] sm:$0xf]
      %v1097 = vld [vmem:[%s1092 + $0x10] sm:$0xf]
      %v1098 = vld [vmem:[%s1092 + $0x14] sm:$0xf]
      %v1099 = vld [vmem:[%s1092 + $0x18] sm:$0xf]
      %v1100 = vld [vmem:[%s1092 + $0x1c] sm:$0xf]
      %v1105 = vunpack.c.l.b16 %v1090
      %v1106 = vunpack.c.l.b16 %v1080
      %v1107 = vunpack.c.l.b16 %v1081
      %v1108 = vunpack.c.l.b16 %v1091
      %v1109 = vpack.c.b16 %v1106, %v1105
      %v1110 = vpack.c.b16 %v1108, %v1107
      %vm1111 = vcmask 1046528
      %v1112 = vrot.slane %v1109, 1
      %v1113 = vrot.slane %v1110, 1
      %v1114 = vsel %vm1111, %v1112, %v1113
      %v1123 = vunpack.c.l.b16 %v1093
      %v1124 = vunpack.c.l.b16 %v1094
      %v1125 = vunpack.c.l.b16 %v1095
      %v1126 = vunpack.c.l.b16 %v1096
      %v1127 = vunpack.c.l.b16 %v1097
      %v1128 = vunpack.c.l.b16 %v1098
      %v1129 = vunpack.c.l.b16 %v1099
      %v1130 = vunpack.c.l.b16 %v1100
      %v1131 = vpack.c.b16 %v1124, %v1123
      %v1132 = vpack.c.b16 %v1126, %v1125
      %v1133 = vpack.c.b16 %v1128, %v1127
      %v1134 = vpack.c.b16 %v1130, %v1129
      %vm1139 = vcmask 523264
      %v1141 = vsel %vm1139, %v1114, 0
      %v1144 = vsel %vm1139, %v1113, 0
      %1146 = vmatprep.subr.bf16.mxu0 0
      %1147 = vmatpush1.bf16.msra.mxu0 %v1131
      %1148 = vmatprep.subr.bf16.mxu0 0
      %1149 = vmatpush1.bf16.msra.mxu0 %v1132
      %1150 = vmatprep.subr.bf16.mxu0 0
      %1151 = vmatpush1.bf16.msra.mxu0 %v1133
      %1152 = vmatprep.subr.bf16.mxu0 0
      %1153 = vmatpush1.bf16.msra.mxu0 %v1134
      %1154 = vmatprep.subr.bf16.mxu0 0
      %1155 = vmatpush1.bf16.msra.mxu0 0
      %1156 = vmatprep.subr.bf16.mxu0 0
      %1157 = vmatpush1.bf16.msra.mxu0 0
      %1158 = vmatprep.subr.bf16.mxu0 0
      %1159 = vmatpush1.bf16.msra.mxu0 0
      %1160 = vmatprep.subr.bf16.mxu0 0
      %1161 = vmatpush1.bf16.msra.mxu0 0
      %1162 = vmatprep.subr.bf16.mxu0 0
      %1163 = vmatpush1.bf16.msra.mxu0 0
      %1164 = vmatprep.subr.bf16.mxu0 0
      %1165 = vmatpush1.bf16.msra.mxu0 0
      %1166 = vmatprep.subr.bf16.mxu0 0
      %1167 = vmatpush1.bf16.msra.mxu0 0
      %1168 = vmatprep.subr.bf16.mxu0 0
      %1169 = vmatpush1.bf16.msra.mxu0 0
      %1170 = vmatprep.subr.bf16.mxu0 0
      %1171 = vmatpush1.bf16.msra.mxu0 0
      %1172 = vmatprep.subr.bf16.mxu0 0
      %1173 = vmatpush1.bf16.msra.mxu0 0
      %1174 = vmatprep.subr.bf16.mxu0 0
      %1175 = vmatpush1.bf16.msra.mxu0 0
      %1176 = vmatprep.subr.bf16.mxu0 0
      %1177 = vmatpush1.bf16.msra.mxu0 0
      %1178 = vmatprep.mubr.bf16.mxu0 0
      %1179 = vmatmul.mubr.bf16.gmra.mrb[0].mxu0 %v1141
      %v1180 = vpop.f32.mrb[0].mxu0
      %v1181 = vadd.f32 0.0, %v1180
      %v1182 = vpop.f32.mrb[0].mxu0
      %v1183 = vpop.f32.mrb[0].mxu0
      %v1184 = vadd.f32 0.0, %v1183
      %v1185 = vpop.f32.mrb[0].mxu0
      %1186 = vmatprep.mubr.bf16.mxu0 0
      %1187 = vmatmul.mubr.bf16.gmra.mrb[0].mxu0 %v1144
      %v1188 = vpop.f32.mrb[0].mxu0
      %v1189 = vadd.f32 0.0, %v1188
      %v1190 = vpop.f32.mrb[0].mxu0
      %v1191 = vpop.f32.mrb[0].mxu0
      %v1192 = vpop.f32.mrb[0].mxu0
      %1193 = vdwg.mxu0
      %v1195 = vunpack.c.l.b16 %v1079
      %v1196 = vpack.c.b16 %v1106, %v1195
      %v1197 = vpack.c.b16 %v1107, %v1107
      %v1206 = vunpack.c.l.b16 %v1082
      %v1207 = vunpack.c.l.b16 %v1083
      %v1208 = vunpack.c.l.b16 %v1084
      %v1209 = vunpack.c.l.b16 %v1085
      %v1210 = vunpack.c.l.b16 %v1086
      %v1211 = vunpack.c.l.b16 %v1087
      %v1212 = vunpack.c.l.b16 %v1088
      %v1213 = vunpack.c.l.b16 %v1089
      %v1214 = vpack.c.b16 %v1207, %v1206
      %v1215 = vpack.c.b16 %v1209, %v1208
      %v1216 = vpack.c.b16 %v1211, %v1210
      %v1217 = vpack.c.b16 %v1213, %v1212
      %v1223 = vsel %vm1139, %v1196, 0
      %v1226 = vsel %vm1139, %v1197, 0
      %1228 = vmatprep.subr.bf16.mxu0 0
      %1229 = vmatpush1.bf16.msra.mxu0 %v1214
      %1230 = vmatprep.subr.bf16.mxu0 0
      %1231 = vmatpush1.bf16.msra.mxu0 %v1215
      %1232 = vmatprep.subr.bf16.mxu0 0
      %1233 = vmatpush1.bf16.msra.mxu0 %v1216
      %1234 = vmatprep.subr.bf16.mxu0 0
      %1235 = vmatpush1.bf16.msra.mxu0 %v1217
      %1236 = vmatprep.subr.bf16.mxu0 0
      %1237 = vmatpush1.bf16.msra.mxu0 0
      %1238 = vmatprep.subr.bf16.mxu0 0
      %1239 = vmatpush1.bf16.msra.mxu0 0
      %1240 = vmatprep.subr.bf16.mxu0 0
      %1241 = vmatpush1.bf16.msra.mxu0 0
      %1242 = vmatprep.subr.bf16.mxu0 0
      %1243 = vmatpush1.bf16.msra.mxu0 0
      %1244 = vmatprep.subr.bf16.mxu0 0
      %1245 = vmatpush1.bf16.msra.mxu0 0
      %1246 = vmatprep.subr.bf16.mxu0 0
      %1247 = vmatpush1.bf16.msra.mxu0 0
      %1248 = vmatprep.subr.bf16.mxu0 0
      %1249 = vmatpush1.bf16.msra.mxu0 0
      %1250 = vmatprep.subr.bf16.mxu0 0
      %1251 = vmatpush1.bf16.msra.mxu0 0
      %1252 = vmatprep.subr.bf16.mxu0 0
      %1253 = vmatpush1.bf16.msra.mxu0 0
      %1254 = vmatprep.subr.bf16.mxu0 0
      %1255 = vmatpush1.bf16.msra.mxu0 0
      %1256 = vmatprep.subr.bf16.mxu0 0
      %1257 = vmatpush1.bf16.msra.mxu0 0
      %1258 = vmatprep.subr.bf16.mxu0 0
      %1259 = vmatpush1.bf16.msra.mxu0 0
      %1260 = vmatprep.mubr.bf16.mxu0 0
      %1261 = vmatmul.mubr.bf16.gmra.mrb[0].mxu0 %v1223
      %v1262 = vpop.f32.mrb[0].mxu0
      %v1263 = vadd.f32 %v1181, %v1262
      %v1264 = vpop.f32.mrb[0].mxu0
      %v1265 = vpop.f32.mrb[0].mxu0
      %v1266 = vadd.f32 %v1184, %v1265
      %v1267 = vpop.f32.mrb[0].mxu0
      %1268 = vmatprep.mubr.bf16.mxu0 0
      %1269 = vmatmul.mubr.bf16.gmra.mrb[0].mxu0 %v1226
      %v1270 = vpop.f32.mrb[0].mxu0
      %v1271 = vadd.f32 %v1189, %v1270
      %v1272 = vpop.f32.mrb[0].mxu0
      %v1273 = vpop.f32.mrb[0].mxu0
      %v1274 = vpop.f32.mrb[0].mxu0
      %1275 = vdwg.mxu0
      %v1276 = vld [vmem:[#allocation2] sm:$0xc]
      %v1277 = vld [vmem:[#allocation2 + $0xc] sm:$0x3]
      %s1278 = scalar_lea.vmem %s8, 192
      %v1279 = vld [vmem:[%s1278] sm:$0xf]
      %v1280 = vld [vmem:[%s1278 + $0x4] sm:$0xf]
      %v1281 = vld [vmem:[%s1278 + $0x8] sm:$0xf]
      %v1282 = vld [vmem:[%s1278 + $0xc] sm:$0xf]
      %v1283 = vld [vmem:[%s1278 + $0x10] sm:$0xf]
      %v1284 = vld [vmem:[%s1278 + $0x14] sm:$0xf]
      %v1285 = vld [vmem:[%s1278 + $0x18] sm:$0xf]
      %v1286 = vld [vmem:[%s1278 + $0x1c] sm:$0xf]
      %v1289 = vunpack.c.l.b16 %v1276
      %v1290 = vunpack.c.l.b16 %v1277
      %v1291 = vpack.c.b16 %v1106, %v1289
      %v1292 = vpack.c.b16 %v1290, %v1107
      %vm1293 = vcmask 1045504
      %v1294 = vrot.slane %v1291, 2
      %v1295 = vrot.slane %v1292, 2
      %v1296 = vsel %vm1293, %v1294, %v1295
      %v1305 = vunpack.c.l.b16 %v1279
      %v1306 = vunpack.c.l.b16 %v1280
      %v1307 = vunpack.c.l.b16 %v1281
      %v1308 = vunpack.c.l.b16 %v1282
      %v1309 = vunpack.c.l.b16 %v1283
      %v1310 = vunpack.c.l.b16 %v1284
      %v1311 = vunpack.c.l.b16 %v1285
      %v1312 = vunpack.c.l.b16 %v1286
      %v1313 = vpack.c.b16 %v1306, %v1305
      %v1314 = vpack.c.b16 %v1308, %v1307
      %v1315 = vpack.c.b16 %v1310, %v1309
      %v1316 = vpack.c.b16 %v1312, %v1311
      %v1322 = vsel %vm1139, %v1296, 0
      %v1325 = vsel %vm1139, %v1295, 0
      %1327 = vmatprep.subr.bf16.mxu0 0
      %1328 = vmatpush1.bf16.msra.mxu0 %v1313
      %1329 = vmatprep.subr.bf16.mxu0 0
      %1330 = vmatpush1.bf16.msra.mxu0 %v1314
      %1331 = vmatprep.subr.bf16.mxu0 0
      %1332 = vmatpush1.bf16.msra.mxu0 %v1315
      %1333 = vmatprep.subr.bf16.mxu0 0
      %1334 = vmatpush1.bf16.msra.mxu0 %v1316
      %1335 = vmatprep.subr.bf16.mxu0 0
      %1336 = vmatpush1.bf16.msra.mxu0 0
      %1337 = vmatprep.subr.bf16.mxu0 0
      %1338 = vmatpush1.bf16.msra.mxu0 0
      %1339 = vmatprep.subr.bf16.mxu0 0
      %1340 = vmatpush1.bf16.msra.mxu0 0
      %1341 = vmatprep.subr.bf16.mxu0 0
      %1342 = vmatpush1.bf16.msra.mxu0 0
      %1343 = vmatprep.subr.bf16.mxu0 0
      %1344 = vmatpush1.bf16.msra.mxu0 0
      %1345 = vmatprep.subr.bf16.mxu0 0
      %1346 = vmatpush1.bf16.msra.mxu0 0
      %1347 = vmatprep.subr.bf16.mxu0 0
      %1348 = vmatpush1.bf16.msra.mxu0 0
      %1349 = vmatprep.subr.bf16.mxu0 0
      %1350 = vmatpush1.bf16.msra.mxu0 0
      %1351 = vmatprep.subr.bf16.mxu0 0
      %1352 = vmatpush1.bf16.msra.mxu0 0
      %1353 = vmatprep.subr.bf16.mxu0 0
      %1354 = vmatpush1.bf16.msra.mxu0 0
      %1355 = vmatprep.subr.bf16.mxu0 0
      %1356 = vmatpush1.bf16.msra.mxu0 0
      %1357 = vmatprep.subr.bf16.mxu0 0
      %1358 = vmatpush1.bf16.msra.mxu0 0
      %1359 = vmatprep.mubr.bf16.mxu0 0
      %1360 = vmatmul.mubr.bf16.gmra.mrb[0].mxu0 %v1322
      %v1361 = vpop.f32.mrb[0].mxu0
      %v1362 = vadd.f32 0.0, %v1361
      %v1363 = vpop.f32.mrb[0].mxu0
      %v1364 = vpop.f32.mrb[0].mxu0
      %v1365 = vadd.f32 0.0, %v1364
      %v1366 = vpop.f32.mrb[0].mxu0
      %1367 = vmatprep.mubr.bf16.mxu0 0
      %1368 = vmatmul.mubr.bf16.gmra.mrb[0].mxu0 %v1325
      %v1369 = vpop.f32.mrb[0].mxu0
      %v1370 = vadd.f32 0.0, %v1369
      %v1371 = vpop.f32.mrb[0].mxu0
      %v1372 = vpop.f32.mrb[0].mxu0
      %v1373 = vpop.f32.mrb[0].mxu0
      %1374 = vdwg.mxu0
      %v1375 = vadd.f32 %v1263, %v1362
      %v1376 = vadd.f32 %v1266, %v1365
      %v1377 = vadd.f32 %v1271, %v1370
      %v1378 = vld [vmem:[#allocation2] sm:$0x8]
      %v1379 = vld [vmem:[#allocation2 + $0xc] sm:$0x7]
      %s1380 = scalar_lea.vmem %s8, 288
      %v1381 = vld [vmem:[%s1380] sm:$0xf]
      %v1382 = vld [vmem:[%s1380 + $0x4] sm:$0xf]
      %v1383 = vld [vmem:[%s1380 + $0x8] sm:$0xf]
      %v1384 = vld [vmem:[%s1380 + $0xc] sm:$0xf]
      %v1385 = vld [vmem:[%s1380 + $0x10] sm:$0xf]
      %v1386 = vld [vmem:[%s1380 + $0x14] sm:$0xf]
      %v1387 = vld [vmem:[%s1380 + $0x18] sm:$0xf]
      %v1388 = vld [vmem:[%s1380 + $0x1c] sm:$0xf]
      %v1391 = vunpack.c.l.b16 %v1378
      %v1392 = vunpack.c.l.b16 %v1379
      %v1393 = vpack.c.b16 %v1106, %v1391
      %v1394 = vpack.c.b16 %v1392, %v1107
      %vm1395 = vcmask 1044480
      %v1396 = vrot.slane %v1393, 3
      %v1397 = vrot.slane %v1394, 3
      %v1398 = vsel %vm1395, %v1396, %v1397
      %v1407 = vunpack.c.l.b16 %v1381
      %v1408 = vunpack.c.l.b16 %v1382
      %v1409 = vunpack.c.l.b16 %v1383
      %v1410 = vunpack.c.l.b16 %v1384
      %v1411 = vunpack.c.l.b16 %v1385
      %v1412 = vunpack.c.l.b16 %v1386
      %v1413 = vunpack.c.l.b16 %v1387
      %v1414 = vunpack.c.l.b16 %v1388
      %v1415 = vpack.c.b16 %v1408, %v1407
      %v1416 = vpack.c.b16 %v1410, %v1409
      %v1417 = vpack.c.b16 %v1412, %v1411
      %v1418 = vpack.c.b16 %v1414, %v1413
      %v1424 = vsel %vm1139, %v1398, 0
      %v1427 = vsel %vm1139, %v1397, 0
      %1429 = vmatprep.subr.bf16.mxu0 0
      %1430 = vmatpush1.bf16.msra.mxu0 %v1415
      %1431 = vmatprep.subr.bf16.mxu0 0
      %1432 = vmatpush1.bf16.msra.mxu0 %v1416
      %1433 = vmatprep.subr.bf16.mxu0 0
      %1434 = vmatpush1.bf16.msra.mxu0 %v1417
      %1435 = vmatprep.subr.bf16.mxu0 0
      %1436 = vmatpush1.bf16.msra.mxu0 %v1418
      %1437 = vmatprep.subr.bf16.mxu0 0
      %1438 = vmatpush1.bf16.msra.mxu0 0
      %1439 = vmatprep.subr.bf16.mxu0 0
      %1440 = vmatpush1.bf16.msra.mxu0 0
      %1441 = vmatprep.subr.bf16.mxu0 0
      %1442 = vmatpush1.bf16.msra.mxu0 0
      %1443 = vmatprep.subr.bf16.mxu0 0
      %1444 = vmatpush1.bf16.msra.mxu0 0
      %1445 = vmatprep.subr.bf16.mxu0 0
      %1446 = vmatpush1.bf16.msra.mxu0 0
      %1447 = vmatprep.subr.bf16.mxu0 0
      %1448 = vmatpush1.bf16.msra.mxu0 0
      %1449 = vmatprep.subr.bf16.mxu0 0
      %1450 = vmatpush1.bf16.msra.mxu0 0
      %1451 = vmatprep.subr.bf16.mxu0 0
      %1452 = vmatpush1.bf16.msra.mxu0 0
      %1453 = vmatprep.subr.bf16.mxu0 0
      %1454 = vmatpush1.bf16.msra.mxu0 0
      %1455 = vmatprep.subr.bf16.mxu0 0
      %1456 = vmatpush1.bf16.msra.mxu0 0
      %1457 = vmatprep.subr.bf16.mxu0 0
      %1458 = vmatpush1.bf16.msra.mxu0 0
      %1459 = vmatprep.subr.bf16.mxu0 0
      %1460 = vmatpush1.bf16.msra.mxu0 0
      %1461 = vmatprep.mubr.bf16.mxu0 0
      %1462 = vmatmul.mubr.bf16.gmra.mrb[0].mxu0 %v1424
      %v1463 = vpop.f32.mrb[0].mxu0
      %v1464 = vadd.f32 0.0, %v1463
      %v1465 = vpop.f32.mrb[0].mxu0
      %v1466 = vpop.f32.mrb[0].mxu0
      %v1467 = vadd.f32 0.0, %v1466
      %v1468 = vpop.f32.mrb[0].mxu0
      %1469 = vmatprep.mubr.bf16.mxu0 0
      %1470 = vmatmul.mubr.bf16.gmra.mrb[0].mxu0 %v1427
      %v1471 = vpop.f32.mrb[0].mxu0
      %v1472 = vadd.f32 0.0, %v1471
      %v1473 = vpop.f32.mrb[0].mxu0
      %v1474 = vpop.f32.mrb[0].mxu0
      %v1475 = vpop.f32.mrb[0].mxu0
      %1476 = vdwg.mxu0
      %v1477 = vadd.f32 %v1375, %v1464
      %v1478 = vadd.f32 %v1376, %v1467
      %v1479 = vadd.f32 %v1377, %v1472
      %v1480 = vld [vmem:[#allocation2 + $0xc] sm:$0xf]
      %s1481 = scalar_lea.vmem %s8, 384
      %v1482 = vld [vmem:[%s1481] sm:$0xf]
      %v1483 = vld [vmem:[%s1481 + $0x4] sm:$0xf]
      %v1484 = vld [vmem:[%s1481 + $0x8] sm:$0xf]
      %v1485 = vld [vmem:[%s1481 + $0xc] sm:$0xf]
      %v1486 = vld [vmem:[%s1481 + $0x10] sm:$0xf]
      %v1487 = vld [vmem:[%s1481 + $0x14] sm:$0xf]
      %v1488 = vld [vmem:[%s1481 + $0x18] sm:$0xf]
      %v1489 = vld [vmem:[%s1481 + $0x1c] sm:$0xf]
      %v1491 = vunpack.c.l.b16 %v1480
      %v1492 = vpack.c.b16 %v1107, %v1106
      %v1493 = vpack.c.b16 %v1491, %v1491
      %v1502 = vunpack.c.l.b16 %v1482
      %v1503 = vunpack.c.l.b16 %v1483
      %v1504 = vunpack.c.l.b16 %v1484
      %v1505 = vunpack.c.l.b16 %v1485
      %v1506 = vunpack.c.l.b16 %v1486
      %v1507 = vunpack.c.l.b16 %v1487
      %v1508 = vunpack.c.l.b16 %v1488
      %v1509 = vunpack.c.l.b16 %v1489
      %v1510 = vpack.c.b16 %v1503, %v1502
      %v1511 = vpack.c.b16 %v1505, %v1504
      %v1512 = vpack.c.b16 %v1507, %v1506
      %v1513 = vpack.c.b16 %v1509, %v1508
      %v1519 = vsel %vm1139, %v1492, 0
      %v1522 = vsel %vm1139, %v1493, 0
      %1524 = vmatprep.subr.bf16.mxu0 0
      %1525 = vmatpush1.bf16.msra.mxu0 %v1510
      %1526 = vmatprep.subr.bf16.mxu0 0
      %1527 = vmatpush1.bf16.msra.mxu0 %v1511
      %1528 = vmatprep.subr.bf16.mxu0 0
      %1529 = vmatpush1.bf16.msra.mxu0 %v1512
      %1530 = vmatprep.subr.bf16.mxu0 0
      %1531 = vmatpush1.bf16.msra.mxu0 %v1513
      %1532 = vmatprep.subr.bf16.mxu0 0
      %1533 = vmatpush1.bf16.msra.mxu0 0
      %1534 = vmatprep.subr.bf16.mxu0 0
      %1535 = vmatpush1.bf16.msra.mxu0 0
      %1536 = vmatprep.subr.bf16.mxu0 0
      %1537 = vmatpush1.bf16.msra.mxu0 0
      %1538 = vmatprep.subr.bf16.mxu0 0
      %1539 = vmatpush1.bf16.msra.mxu0 0
      %1540 = vmatprep.subr.bf16.mxu0 0
      %1541 = vmatpush1.bf16.msra.mxu0 0
      %1542 = vmatprep.subr.bf16.mxu0 0
      %1543 = vmatpush1.bf16.msra.mxu0 0
      %1544 = vmatprep.subr.bf16.mxu0 0
      %1545 = vmatpush1.bf16.msra.mxu0 0
      %1546 = vmatprep.subr.bf16.mxu0 0
      %1547 = vmatpush1.bf16.msra.mxu0 0
      %1548 = vmatprep.subr.bf16.mxu0 0
      %1549 = vmatpush1.bf16.msra.mxu0 0
      %1550 = vmatprep.subr.bf16.mxu0 0
      %1551 = vmatpush1.bf16.msra.mxu0 0
      %1552 = vmatprep.subr.bf16.mxu0 0
      %1553 = vmatpush1.bf16.msra.mxu0 0
      %1554 = vmatprep.subr.bf16.mxu0 0
      %1555 = vmatpush1.bf16.msra.mxu0 0
      %1556 = vmatprep.mubr.bf16.mxu0 0
      %1557 = vmatmul.mubr.bf16.gmra.mrb[0].mxu0 %v1519
      %v1558 = vpop.f32.mrb[0].mxu0
      %v1559 = vadd.f32 0.0, %v1558
      %v1560 = vpop.f32.mrb[0].mxu0
      %v1561 = vpop.f32.mrb[0].mxu0
      %v1562 = vadd.f32 0.0, %v1561
      %v1563 = vpop.f32.mrb[0].mxu0
      %1564 = vmatprep.mubr.bf16.mxu0 0
      %1565 = vmatmul.mubr.bf16.gmra.mrb[0].mxu0 %v1522
      %v1566 = vpop.f32.mrb[0].mxu0
      %v1567 = vadd.f32 0.0, %v1566
      %v1568 = vpop.f32.mrb[0].mxu0
      %v1569 = vpop.f32.mrb[0].mxu0
      %v1570 = vpop.f32.mrb[0].mxu0
      %1571 = vdwg.mxu0
      %v1572 = vadd.f32 %v1477, %v1559
      %v1573 = vadd.f32 %v1478, %v1562
      %v1574 = vadd.f32 %v1479, %v1567
      %v1575 = vld [vmem:[#allocation2 + $0x4] sm:$0xe]
      %v1576 = vld [vmem:[#allocation2 + $0x8] sm:$0xf]
      %v1577 = vld [vmem:[#allocation2 + $0xc] sm:$0xf]
      %v1578 = vld [vmem:[#allocation2 + $0x10] sm:$0x1]
      %s1579 = scalar_lea.vmem %s8, 480
      %v1580 = vld [vmem:[%s1579] sm:$0xf]
      %v1581 = vld [vmem:[%s1579 + $0x4] sm:$0xf]
      %v1582 = vld [vmem:[%s1579 + $0x8] sm:$0xf]
      %v1583 = vld [vmem:[%s1579 + $0xc] sm:$0xf]
      %v1584 = vld [vmem:[%s1579 + $0x10] sm:$0xf]
      %v1585 = vld [vmem:[%s1579 + $0x14] sm:$0xf]
      %v1586 = vld [vmem:[%s1579 + $0x18] sm:$0xf]
      %v1587 = vld [vmem:[%s1579 + $0x1c] sm:$0xf]
      %v1592 = vunpack.c.l.b16 %v1575
      %v1593 = vunpack.c.l.b16 %v1576
      %v1594 = vunpack.c.l.b16 %v1577
      %v1595 = vunpack.c.l.b16 %v1578
      %v1596 = vpack.c.b16 %v1593, %v1592
      %v1597 = vpack.c.b16 %v1595, %v1594
      %v1598 = vrot.slane %v1596, 1
      %v1599 = vrot.slane %v1597, 1
      %v1600 = vsel %vm1111, %v1598, %v1599
      %v1609 = vunpack.c.l.b16 %v1580
      %v1610 = vunpack.c.l.b16 %v1581
      %v1611 = vunpack.c.l.b16 %v1582
      %v1612 = vunpack.c.l.b16 %v1583
      %v1613 = vunpack.c.l.b16 %v1584
      %v1614 = vunpack.c.l.b16 %v1585
      %v1615 = vunpack.c.l.b16 %v1586
      %v1616 = vunpack.c.l.b16 %v1587
      %v1617 = vpack.c.b16 %v1610, %v1609
      %v1618 = vpack.c.b16 %v1612, %v1611
      %v1619 = vpack.c.b16 %v1614, %v1613
      %v1620 = vpack.c.b16 %v1616, %v1615
      %v1626 = vsel %vm1139, %v1600, 0
      %v1629 = vsel %vm1139, %v1599, 0
      %1631 = vmatprep.subr.bf16.mxu0 0
      %1632 = vmatpush1.bf16.msra.mxu0 %v1617
      %1633 = vmatprep.subr.bf16.mxu0 0
      %1634 = vmatpush1.bf16.msra.mxu0 %v1618
      %1635 = vmatprep.subr.bf16.mxu0 0
      %1636 = vmatpush1.bf16.msra.mxu0 %v1619
      %1637 = vmatprep.subr.bf16.mxu0 0
      %1638 = vmatpush1.bf16.msra.mxu0 %v1620
      %1639 = vmatprep.subr.bf16.mxu0 0
      %1640 = vmatpush1.bf16.msra.mxu0 0
      %1641 = vmatprep.subr.bf16.mxu0 0
      %1642 = vmatpush1.bf16.msra.mxu0 0
      %1643 = vmatprep.subr.bf16.mxu0 0
      %1644 = vmatpush1.bf16.msra.mxu0 0
      %1645 = vmatprep.subr.bf16.mxu0 0
      %1646 = vmatpush1.bf16.msra.mxu0 0
      %1647 = vmatprep.subr.bf16.mxu0 0
      %1648 = vmatpush1.bf16.msra.mxu0 0
      %1649 = vmatprep.subr.bf16.mxu0 0
      %1650 = vmatpush1.bf16.msra.mxu0 0
      %1651 = vmatprep.subr.bf16.mxu0 0
      %1652 = vmatpush1.bf16.msra.mxu0 0
      %1653 = vmatprep.subr.bf16.mxu0 0
      %1654 = vmatpush1.bf16.msra.mxu0 0
      %1655 = vmatprep.subr.bf16.mxu0 0
      %1656 = vmatpush1.bf16.msra.mxu0 0
      %1657 = vmatprep.subr.bf16.mxu0 0
      %1658 = vmatpush1.bf16.msra.mxu0 0
      %1659 = vmatprep.subr.bf16.mxu0 0
      %1660 = vmatpush1.bf16.msra.mxu0 0
      %1661 = vmatprep.subr.bf16.mxu0 0
      %1662 = vmatpush1.bf16.msra.mxu0 0
      %1663 = vmatprep.mubr.bf16.mxu0 0
      %1664 = vmatmul.mubr.bf16.gmra.mrb[0].mxu0 %v1626
      %v1665 = vpop.f32.mrb[0].mxu0
      %v1666 = vadd.f32 0.0, %v1665
      %v1667 = vpop.f32.mrb[0].mxu0
      %v1668 = vpop.f32.mrb[0].mxu0
      %v1669 = vadd.f32 0.0, %v1668
      %v1670 = vpop.f32.mrb[0].mxu0
      %1671 = vmatprep.mubr.bf16.mxu0 0
      %1672 = vmatmul.mubr.bf16.gmra.mrb[0].mxu0 %v1629
      %v1673 = vpop.f32.mrb[0].mxu0
      %v1674 = vadd.f32 0.0, %v1673
      %v1675 = vpop.f32.mrb[0].mxu0
      %v1676 = vpop.f32.mrb[0].mxu0
      %v1677 = vpop.f32.mrb[0].mxu0
      %1678 = vdwg.mxu0
      %v1679 = vadd.f32 %v1572, %v1666
      %v1680 = vadd.f32 %v1573, %v1669
      %v1681 = vadd.f32 %v1574, %v1674
      %v1682 = vld [vmem:[#allocation2 + $0x4] sm:$0xc]
      %v1683 = vld [vmem:[#allocation2 + $0x10] sm:$0x3]
      %s1684 = scalar_lea.vmem %s8, 576
      %v1685 = vld [vmem:[%s1684] sm:$0xf]
      %v1686 = vld [vmem:[%s1684 + $0x4] sm:$0xf]
      %v1687 = vld [vmem:[%s1684 + $0x8] sm:$0xf]
      %v1688 = vld [vmem:[%s1684 + $0xc] sm:$0xf]
      %v1689 = vld [vmem:[%s1684 + $0x10] sm:$0xf]
      %v1690 = vld [vmem:[%s1684 + $0x14] sm:$0xf]
      %v1691 = vld [vmem:[%s1684 + $0x18] sm:$0xf]
      %v1692 = vld [vmem:[%s1684 + $0x1c] sm:$0xf]
      %v1695 = vunpack.c.l.b16 %v1682
      %v1696 = vunpack.c.l.b16 %v1683
      %v1697 = vpack.c.b16 %v1593, %v1695
      %v1698 = vpack.c.b16 %v1696, %v1594
      %v1699 = vrot.slane %v1697, 2
      %v1700 = vrot.slane %v1698, 2
      %v1701 = vsel %vm1293, %v1699, %v1700
      %v1710 = vunpack.c.l.b16 %v1685
      %v1711 = vunpack.c.l.b16 %v1686
      %v1712 = vunpack.c.l.b16 %v1687
      %v1713 = vunpack.c.l.b16 %v1688
      %v1714 = vunpack.c.l.b16 %v1689
      %v1715 = vunpack.c.l.b16 %v1690
      %v1716 = vunpack.c.l.b16 %v1691
      %v1717 = vunpack.c.l.b16 %v1692
      %v1718 = vpack.c.b16 %v1711, %v1710
      %v1719 = vpack.c.b16 %v1713, %v1712
      %v1720 = vpack.c.b16 %v1715, %v1714
      %v1721 = vpack.c.b16 %v1717, %v1716
      %v1727 = vsel %vm1139, %v1701, 0
      %v1730 = vsel %vm1139, %v1700, 0
      %1732 = vmatprep.subr.bf16.mxu0 0
      %1733 = vmatpush1.bf16.msra.mxu0 %v1718
      %1734 = vmatprep.subr.bf16.mxu0 0
      %1735 = vmatpush1.bf16.msra.mxu0 %v1719
      %1736 = vmatprep.subr.bf16.mxu0 0
      %1737 = vmatpush1.bf16.msra.mxu0 %v1720
      %1738 = vmatprep.subr.bf16.mxu0 0
      %1739 = vmatpush1.bf16.msra.mxu0 %v1721
      %1740 = vmatprep.subr.bf16.mxu0 0
      %1741 = vmatpush1.bf16.msra.mxu0 0
      %1742 = vmatprep.subr.bf16.mxu0 0
      %1743 = vmatpush1.bf16.msra.mxu0 0
      %1744 = vmatprep.subr.bf16.mxu0 0
      %1745 = vmatpush1.bf16.msra.mxu0 0
      %1746 = vmatprep.subr.bf16.mxu0 0
      %1747 = vmatpush1.bf16.msra.mxu0 0
      %1748 = vmatprep.subr.bf16.mxu0 0
      %1749 = vmatpush1.bf16.msra.mxu0 0
      %1750 = vmatprep.subr.bf16.mxu0 0
      %1751 = vmatpush1.bf16.msra.mxu0 0
      %1752 = vmatprep.subr.bf16.mxu0 0
      %1753 = vmatpush1.bf16.msra.mxu0 0
      %1754 = vmatprep.subr.bf16.mxu0 0
      %1755 = vmatpush1.bf16.msra.mxu0 0
      %1756 = vmatprep.subr.bf16.mxu0 0
      %1757 = vmatpush1.bf16.msra.mxu0 0
      %1758 = vmatprep.subr.bf16.mxu0 0
      %1759 = vmatpush1.bf16.msra.mxu0 0
      %1760 = vmatprep.subr.bf16.mxu0 0
      %1761 = vmatpush1.bf16.msra.mxu0 0
      %1762 = vmatprep.subr.bf16.mxu0 0
      %1763 = vmatpush1.bf16.msra.mxu0 0
      %1764 = vmatprep.mubr.bf16.mxu0 0
      %1765 = vmatmul.mubr.bf16.gmra.mrb[0].mxu0 %v1727
      %v1766 = vpop.f32.mrb[0].mxu0
      %v1767 = vadd.f32 0.0, %v1766
      %v1768 = vpop.f32.mrb[0].mxu0
      %v1769 = vpop.f32.mrb[0].mxu0
      %v1770 = vadd.f32 0.0, %v1769
      %v1771 = vpop.f32.mrb[0].mxu0
      %1772 = vmatprep.mubr.bf16.mxu0 0
      %1773 = vmatmul.mubr.bf16.gmra.mrb[0].mxu0 %v1730
      %v1774 = vpop.f32.mrb[0].mxu0
      %v1775 = vadd.f32 0.0, %v1774
      %v1776 = vpop.f32.mrb[0].mxu0
      %v1777 = vpop.f32.mrb[0].mxu0
      %v1778 = vpop.f32.mrb[0].mxu0
      %1779 = vdwg.mxu0
      %v1780 = vadd.f32 %v1679, %v1767
      %v1781 = vadd.f32 %v1680, %v1770
      %v1782 = vadd.f32 %v1681, %v1775
      %v1783 = vld [vmem:[#allocation2 + $0x4] sm:$0x8]
      %v1784 = vld [vmem:[#allocation2 + $0x10] sm:$0x7]
      %s1785 = scalar_lea.vmem %s8, 672
      %v1786 = vld [vmem:[%s1785] sm:$0xf]
      %v1787 = vld [vmem:[%s1785 + $0x4] sm:$0xf]
      %v1788 = vld [vmem:[%s1785 + $0x8] sm:$0xf]
      %v1789 = vld [vmem:[%s1785 + $0xc] sm:$0xf]
      %v1790 = vld [vmem:[%s1785 + $0x10] sm:$0xf]
      %v1791 = vld [vmem:[%s1785 + $0x14] sm:$0xf]
      %v1792 = vld [vmem:[%s1785 + $0x18] sm:$0xf]
      %v1793 = vld [vmem:[%s1785 + $0x1c] sm:$0xf]
      %v1796 = vunpack.c.l.b16 %v1783
      %v1797 = vunpack.c.l.b16 %v1784
      %v1798 = vpack.c.b16 %v1593, %v1796
      %v1799 = vpack.c.b16 %v1797, %v1594
      %v1800 = vrot.slane %v1798, 3
      %v1801 = vrot.slane %v1799, 3
      %v1802 = vsel %vm1395, %v1800, %v1801
      %v1811 = vunpack.c.l.b16 %v1786
      %v1812 = vunpack.c.l.b16 %v1787
      %v1813 = vunpack.c.l.b16 %v1788
      %v1814 = vunpack.c.l.b16 %v1789
      %v1815 = vunpack.c.l.b16 %v1790
      %v1816 = vunpack.c.l.b16 %v1791
      %v1817 = vunpack.c.l.b16 %v1792
      %v1818 = vunpack.c.l.b16 %v1793
      %v1819 = vpack.c.b16 %v1812, %v1811
      %v1820 = vpack.c.b16 %v1814, %v1813
      %v1821 = vpack.c.b16 %v1816, %v1815
      %v1822 = vpack.c.b16 %v1818, %v1817
      %v1828 = vsel %vm1139, %v1802, 0
      %v1831 = vsel %vm1139, %v1801, 0
      %1833 = vmatprep.subr.bf16.mxu0 0
      %1834 = vmatpush1.bf16.msra.mxu0 %v1819
      %1835 = vmatprep.subr.bf16.mxu0 0
      %1836 = vmatpush1.bf16.msra.mxu0 %v1820
      %1837 = vmatprep.subr.bf16.mxu0 0
      %1838 = vmatpush1.bf16.msra.mxu0 %v1821
      %1839 = vmatprep.subr.bf16.mxu0 0
      %1840 = vmatpush1.bf16.msra.mxu0 %v1822
      %1841 = vmatprep.subr.bf16.mxu0 0
      %1842 = vmatpush1.bf16.msra.mxu0 0
      %1843 = vmatprep.subr.bf16.mxu0 0
      %1844 = vmatpush1.bf16.msra.mxu0 0
      %1845 = vmatprep.subr.bf16.mxu0 0
      %1846 = vmatpush1.bf16.msra.mxu0 0
      %1847 = vmatprep.subr.bf16.mxu0 0
      %1848 = vmatpush1.bf16.msra.mxu0 0
      %1849 = vmatprep.subr.bf16.mxu0 0
      %1850 = vmatpush1.bf16.msra.mxu0 0
      %1851 = vmatprep.subr.bf16.mxu0 0
      %1852 = vmatpush1.bf16.msra.mxu0 0
      %1853 = vmatprep.subr.bf16.mxu0 0
      %1854 = vmatpush1.bf16.msra.mxu0 0
      %1855 = vmatprep.subr.bf16.mxu0 0
      %1856 = vmatpush1.bf16.msra.mxu0 0
      %1857 = vmatprep.subr.bf16.mxu0 0
      %1858 = vmatpush1.bf16.msra.mxu0 0
      %1859 = vmatprep.subr.bf16.mxu0 0
      %1860 = vmatpush1.bf16.msra.mxu0 0
      %1861 = vmatprep.subr.bf16.mxu0 0
      %1862 = vmatpush1.bf16.msra.mxu0 0
      %1863 = vmatprep.subr.bf16.mxu0 0
      %1864 = vmatpush1.bf16.msra.mxu0 0
      %1865 = vmatprep.mubr.bf16.mxu0 0
      %1866 = vmatmul.mubr.bf16.gmra.mrb[0].mxu0 %v1828
      %v1867 = vpop.f32.mrb[0].mxu0
      %v1868 = vadd.f32 0.0, %v1867
      %v1869 = vpop.f32.mrb[0].mxu0
      %v1870 = vpop.f32.mrb[0].mxu0
      %v1871 = vadd.f32 0.0, %v1870
      %v1872 = vpop.f32.mrb[0].mxu0
      %1873 = vmatprep.mubr.bf16.mxu0 0
      %1874 = vmatmul.mubr.bf16.gmra.mrb[0].mxu0 %v1831
      %v1875 = vpop.f32.mrb[0].mxu0
      %v1876 = vadd.f32 0.0, %v1875
      %v1877 = vpop.f32.mrb[0].mxu0
      %v1878 = vpop.f32.mrb[0].mxu0
      %v1879 = vpop.f32.mrb[0].mxu0
      %1880 = vdwg.mxu0
      %v1881 = vadd.f32 %v1780, %v1868
      %v1882 = vadd.f32 %v1781, %v1871
      %v1883 = vadd.f32 %v1782, %v1876
      %v1884 = vld [vmem:[#allocation2 + $0x10] sm:$0xf]
      %s1885 = scalar_lea.vmem %s8, 768
      %v1886 = vld [vmem:[%s1885] sm:$0xf]
      %v1887 = vld [vmem:[%s1885 + $0x4] sm:$0xf]
      %v1888 = vld [vmem:[%s1885 + $0x8] sm:$0xf]
      %v1889 = vld [vmem:[%s1885 + $0xc] sm:$0xf]
      %v1890 = vld [vmem:[%s1885 + $0x10] sm:$0xf]
      %v1891 = vld [vmem:[%s1885 + $0x14] sm:$0xf]
      %v1892 = vld [vmem:[%s1885 + $0x18] sm:$0xf]
      %v1893 = vld [vmem:[%s1885 + $0x1c] sm:$0xf]
      %v1895 = vunpack.c.l.b16 %v1884
      %v1896 = vpack.c.b16 %v1594, %v1593
      %v1897 = vpack.c.b16 %v1895, %v1895
      %v1906 = vunpack.c.l.b16 %v1886
      %v1907 = vunpack.c.l.b16 %v1887
      %v1908 = vunpack.c.l.b16 %v1888
      %v1909 = vunpack.c.l.b16 %v1889
      %v1910 = vunpack.c.l.b16 %v1890
      %v1911 = vunpack.c.l.b16 %v1891
      %v1912 = vunpack.c.l.b16 %v1892
      %v1913 = vunpack.c.l.b16 %v1893
      %v1914 = vpack.c.b16 %v1907, %v1906
      %v1915 = vpack.c.b16 %v1909, %v1908
      %v1916 = vpack.c.b16 %v1911, %v1910
      %v1917 = vpack.c.b16 %v1913, %v1912
      %v1923 = vsel %vm1139, %v1896, 0
      %v1926 = vsel %vm1139, %v1897, 0
      %1928 = vmatprep.subr.bf16.mxu0 0
      %1929 = vmatpush1.bf16.msra.mxu0 %v1914
      %1930 = vmatprep.subr.bf16.mxu0 0
      %1931 = vmatpush1.bf16.msra.mxu0 %v1915
      %1932 = vmatprep.subr.bf16.mxu0 0
      %1933 = vmatpush1.bf16.msra.mxu0 %v1916
      %1934 = vmatprep.subr.bf16.mxu0 0
      %1935 = vmatpush1.bf16.msra.mxu0 %v1917
      %1936 = vmatprep.subr.bf16.mxu0 0
      %1937 = vmatpush1.bf16.msra.mxu0 0
      %1938 = vmatprep.subr.bf16.mxu0 0
      %1939 = vmatpush1.bf16.msra.mxu0 0
      %1940 = vmatprep.subr.bf16.mxu0 0
      %1941 = vmatpush1.bf16.msra.mxu0 0
      %1942 = vmatprep.subr.bf16.mxu0 0
      %1943 = vmatpush1.bf16.msra.mxu0 0
      %1944 = vmatprep.subr.bf16.mxu0 0
      %1945 = vmatpush1.bf16.msra.mxu0 0
      %1946 = vmatprep.subr.bf16.mxu0 0
      %1947 = vmatpush1.bf16.msra.mxu0 0
      %1948 = vmatprep.subr.bf16.mxu0 0
      %1949 = vmatpush1.bf16.msra.mxu0 0
      %1950 = vmatprep.subr.bf16.mxu0 0
      %1951 = vmatpush1.bf16.msra.mxu0 0
      %1952 = vmatprep.subr.bf16.mxu0 0
      %1953 = vmatpush1.bf16.msra.mxu0 0
      %1954 = vmatprep.subr.bf16.mxu0 0
      %1955 = vmatpush1.bf16.msra.mxu0 0
      %1956 = vmatprep.subr.bf16.mxu0 0
      %1957 = vmatpush1.bf16.msra.mxu0 0
      %1958 = vmatprep.subr.bf16.mxu0 0
      %1959 = vmatpush1.bf16.msra.mxu0 0
      %1960 = vmatprep.mubr.bf16.mxu0 0
      %1961 = vmatmul.mubr.bf16.gmra.mrb[0].mxu0 %v1923
      %v1962 = vpop.f32.mrb[0].mxu0
      %v1963 = vadd.f32 0.0, %v1962
      %v1964 = vpop.f32.mrb[0].mxu0
      %v1965 = vpop.f32.mrb[0].mxu0
      %v1966 = vadd.f32 0.0, %v1965
      %v1967 = vpop.f32.mrb[0].mxu0
      %1968 = vmatprep.mubr.bf16.mxu0 0
      %1969 = vmatmul.mubr.bf16.gmra.mrb[0].mxu0 %v1926
      %v1970 = vpop.f32.mrb[0].mxu0
      %v1971 = vadd.f32 0.0, %v1970
      %v1972 = vpop.f32.mrb[0].mxu0
      %v1973 = vpop.f32.mrb[0].mxu0
      %v1974 = vpop.f32.mrb[0].mxu0
      %1975 = vdwg.mxu0
      %v1976 = vadd.f32 %v1881, %v1963
      %v1977 = vadd.f32 %v1882, %v1966
      %v1978 = vadd.f32 %v1883, %v1971
      %v1979 = vld [vmem:[#allocation2 + $0x8] sm:$0xe]
      %v1980 = vld [vmem:[#allocation2 + $0xc] sm:$0xf]
      %v1981 = vld [vmem:[#allocation2 + $0x10] sm:$0xf]
      %v1982 = vld [vmem:[#allocation2 + $0x14] sm:$0x1]
      %s1983 = scalar_lea.vmem %s8, 864
      %v1984 = vld [vmem:[%s1983] sm:$0xf]
      %v1985 = vld [vmem:[%s1983 + $0x4] sm:$0xf]
      %v1986 = vld [vmem:[%s1983 + $0x8] sm:$0xf]
      %v1987 = vld [vmem:[%s1983 + $0xc] sm:$0xf]
      %v1988 = vld [vmem:[%s1983 + $0x10] sm:$0xf]
      %v1989 = vld [vmem:[%s1983 + $0x14] sm:$0xf]
      %v1990 = vld [vmem:[%s1983 + $0x18] sm:$0xf]
      %v1991 = vld [vmem:[%s1983 + $0x1c] sm:$0xf]
      %v1996 = vunpack.c.l.b16 %v1979
      %v1997 = vunpack.c.l.b16 %v1980
      %v1998 = vunpack.c.l.b16 %v1981
      %v1999 = vunpack.c.l.b16 %v1982
      %v2000 = vpack.c.b16 %v1997, %v1996
      %v2001 = vpack.c.b16 %v1999, %v1998
      %v2002 = vrot.slane %v2000, 1
      %v2003 = vrot.slane %v2001, 1
      %v2004 = vsel %vm1111, %v2002, %v2003
      %v2013 = vunpack.c.l.b16 %v1984
      %v2014 = vunpack.c.l.b16 %v1985
      %v2015 = vunpack.c.l.b16 %v1986
      %v2016 = vunpack.c.l.b16 %v1987
      %v2017 = vunpack.c.l.b16 %v1988
      %v2018 = vunpack.c.l.b16 %v1989
      %v2019 = vunpack.c.l.b16 %v1990
      %v2020 = vunpack.c.l.b16 %v1991
      %v2021 = vpack.c.b16 %v2014, %v2013
      %v2022 = vpack.c.b16 %v2016, %v2015
      %v2023 = vpack.c.b16 %v2018, %v2017
      %v2024 = vpack.c.b16 %v2020, %v2019
      %v2030 = vsel %vm1139, %v2004, 0
      %v2033 = vsel %vm1139, %v2003, 0
      %2035 = vmatprep.subr.bf16.mxu0 0
      %2036 = vmatpush1.bf16.msra.mxu0 %v2021
      %2037 = vmatprep.subr.bf16.mxu0 0
      %2038 = vmatpush1.bf16.msra.mxu0 %v2022
      %2039 = vmatprep.subr.bf16.mxu0 0
      %2040 = vmatpush1.bf16.msra.mxu0 %v2023
      %2041 = vmatprep.subr.bf16.mxu0 0
      %2042 = vmatpush1.bf16.msra.mxu0 %v2024
      %2043 = vmatprep.subr.bf16.mxu0 0
      %2044 = vmatpush1.bf16.msra.mxu0 0
      %2045 = vmatprep.subr.bf16.mxu0 0
      %2046 = vmatpush1.bf16.msra.mxu0 0
      %2047 = vmatprep.subr.bf16.mxu0 0
      %2048 = vmatpush1.bf16.msra.mxu0 0
      %2049 = vmatprep.subr.bf16.mxu0 0
      %2050 = vmatpush1.bf16.msra.mxu0 0
      %2051 = vmatprep.subr.bf16.mxu0 0
      %2052 = vmatpush1.bf16.msra.mxu0 0
      %2053 = vmatprep.subr.bf16.mxu0 0
      %2054 = vmatpush1.bf16.msra.mxu0 0
      %2055 = vmatprep.subr.bf16.mxu0 0
      %2056 = vmatpush1.bf16.msra.mxu0 0
      %2057 = vmatprep.subr.bf16.mxu0 0
      %2058 = vmatpush1.bf16.msra.mxu0 0
      %2059 = vmatprep.subr.bf16.mxu0 0
      %2060 = vmatpush1.bf16.msra.mxu0 0
      %2061 = vmatprep.subr.bf16.mxu0 0
      %2062 = vmatpush1.bf16.msra.mxu0 0
      %2063 = vmatprep.subr.bf16.mxu0 0
      %2064 = vmatpush1.bf16.msra.mxu0 0
      %2065 = vmatprep.subr.bf16.mxu0 0
      %2066 = vmatpush1.bf16.msra.mxu0 0
      %2067 = vmatprep.mubr.bf16.mxu0 0
      %2068 = vmatmul.mubr.bf16.gmra.mrb[0].mxu0 %v2030
      %v2069 = vpop.f32.mrb[0].mxu0
      %v2070 = vadd.f32 0.0, %v2069
      %v2071 = vpop.f32.mrb[0].mxu0
      %v2072 = vpop.f32.mrb[0].mxu0
      %v2073 = vadd.f32 0.0, %v2072
      %v2074 = vpop.f32.mrb[0].mxu0
      %2075 = vmatprep.mubr.bf16.mxu0 0
      %2076 = vmatmul.mubr.bf16.gmra.mrb[0].mxu0 %v2033
      %v2077 = vpop.f32.mrb[0].mxu0
      %v2078 = vadd.f32 0.0, %v2077
      %v2079 = vpop.f32.mrb[0].mxu0
      %v2080 = vpop.f32.mrb[0].mxu0
      %v2081 = vpop.f32.mrb[0].mxu0
      %2082 = vdwg.mxu0
      %v2083 = vadd.f32 %v1976, %v2070
      %v2084 = vadd.f32 %v1977, %v2073
      %v2085 = vadd.f32 %v1978, %v2078
      %v2086 = vld [vmem:[#allocation2 + $0x14] sm:$0xe]
      %v2087 = vld [vmem:[#allocation2 + $0x18] sm:$0xf]
      %v2088 = vld [vmem:[#allocation2 + $0x1c] sm:$0xf]
      %v2089 = vld [vmem:[#allocation2 + $0x20] sm:$0x1]
      %s2090 = scalar_lea.vmem %s8, 32
      %v2091 = vld [vmem:[%s2090] sm:$0xf]
      %v2092 = vld [vmem:[%s2090 + $0x4] sm:$0xf]
      %v2093 = vld [vmem:[%s2090 + $0x8] sm:$0xf]
      %v2094 = vld [vmem:[%s2090 + $0xc] sm:$0xf]
      %v2095 = vld [vmem:[%s2090 + $0x10] sm:$0xf]
      %v2096 = vld [vmem:[%s2090 + $0x14] sm:$0xf]
      %v2097 = vld [vmem:[%s2090 + $0x18] sm:$0xf]
      %v2098 = vld [vmem:[%s2090 + $0x1c] sm:$0xf]
      %v2103 = vunpack.c.l.b16 %v2086
      %v2104 = vunpack.c.l.b16 %v2087
      %v2105 = vunpack.c.l.b16 %v2088
      %v2106 = vunpack.c.l.b16 %v2089
      %v2107 = vpack.c.b16 %v2104, %v2103
      %v2108 = vpack.c.b16 %v2106, %v2105
      %v2109 = vrot.slane %v2107, 1
      %v2110 = vrot.slane %v2108, 1
      %v2111 = vsel %vm1111, %v2109, %v2110
      %v2120 = vunpack.c.l.b16 %v2091
      %v2121 = vunpack.c.l.b16 %v2092
      %v2122 = vunpack.c.l.b16 %v2093
      %v2123 = vunpack.c.l.b16 %v2094
      %v2124 = vunpack.c.l.b16 %v2095
      %v2125 = vunpack.c.l.b16 %v2096
      %v2126 = vunpack.c.l.b16 %v2097
      %v2127 = vunpack.c.l.b16 %v2098
      %v2128 = vpack.c.b16 %v2121, %v2120
      %v2129 = vpack.c.b16 %v2123, %v2122
      %v2130 = vpack.c.b16 %v2125, %v2124
      %v2131 = vpack.c.b16 %v2127, %v2126
      %v2137 = vsel %vm1139, %v2111, 0
      %v2140 = vsel %vm1139, %v2110, 0
      %2142 = vmatprep.subr.bf16.mxu0 0
      %2143 = vmatpush1.bf16.msra.mxu0 %v2128
      %2144 = vmatprep.subr.bf16.mxu0 0
      %2145 = vmatpush1.bf16.msra.mxu0 %v2129
      %2146 = vmatprep.subr.bf16.mxu0 0
      %2147 = vmatpush1.bf16.msra.mxu0 %v2130
      %2148 = vmatprep.subr.bf16.mxu0 0
      %2149 = vmatpush1.bf16.msra.mxu0 %v2131
      %2150 = vmatprep.subr.bf16.mxu0 0
      %2151 = vmatpush1.bf16.msra.mxu0 0
      %2152 = vmatprep.subr.bf16.mxu0 0
      %2153 = vmatpush1.bf16.msra.mxu0 0
      %2154 = vmatprep.subr.bf16.mxu0 0
      %2155 = vmatpush1.bf16.msra.mxu0 0
      %2156 = vmatprep.subr.bf16.mxu0 0
      %2157 = vmatpush1.bf16.msra.mxu0 0
      %2158 = vmatprep.subr.bf16.mxu0 0
      %2159 = vmatpush1.bf16.msra.mxu0 0
      %2160 = vmatprep.subr.bf16.mxu0 0
      %2161 = vmatpush1.bf16.msra.mxu0 0
      %2162 = vmatprep.subr.bf16.mxu0 0
      %2163 = vmatpush1.bf16.msra.mxu0 0
      %2164 = vmatprep.subr.bf16.mxu0 0
      %2165 = vmatpush1.bf16.msra.mxu0 0
      %2166 = vmatprep.subr.bf16.mxu0 0
      %2167 = vmatpush1.bf16.msra.mxu0 0
      %2168 = vmatprep.subr.bf16.mxu0 0
      %2169 = vmatpush1.bf16.msra.mxu0 0
      %2170 = vmatprep.subr.bf16.mxu0 0
      %2171 = vmatpush1.bf16.msra.mxu0 0
      %2172 = vmatprep.subr.bf16.mxu0 0
      %2173 = vmatpush1.bf16.msra.mxu0 0
      %2174 = vmatprep.mubr.bf16.mxu0 0
      %2175 = vmatmul.mubr.bf16.gmra.mrb[0].mxu0 %v2137
      %v2176 = vpop.f32.mrb[0].mxu0
      %v2177 = vadd.f32 0.0, %v2176
      %v2178 = vpop.f32.mrb[0].mxu0
      %v2179 = vpop.f32.mrb[0].mxu0
      %v2180 = vadd.f32 0.0, %v2179
      %v2181 = vpop.f32.mrb[0].mxu0
      %2182 = vmatprep.mubr.bf16.mxu0 0
      %2183 = vmatmul.mubr.bf16.gmra.mrb[0].mxu0 %v2140
      %v2184 = vpop.f32.mrb[0].mxu0
      %v2185 = vadd.f32 0.0, %v2184
      %v2186 = vpop.f32.mrb[0].mxu0
      %v2187 = vpop.f32.mrb[0].mxu0
      %v2188 = vpop.f32.mrb[0].mxu0
      %2189 = vdwg.mxu0
      %v2190 = vadd.f32 %v2083, %v2177
      %v2191 = vadd.f32 %v2084, %v2180
      %v2192 = vadd.f32 %v2085, %v2185
      %v2193 = vld [vmem:[#allocation2 + $0x14] sm:$0xc]
      %v2194 = vld [vmem:[#allocation2 + $0x20] sm:$0x3]
      %s2195 = scalar_lea.vmem %s8, 128
      %v2196 = vld [vmem:[%s2195] sm:$0xf]
      %v2197 = vld [vmem:[%s2195 + $0x4] sm:$0xf]
      %v2198 = vld [vmem:[%s2195 + $0x8] sm:$0xf]
      %v2199 = vld [vmem:[%s2195 + $0xc] sm:$0xf]
      %v2200 = vld [vmem:[%s2195 + $0x10] sm:$0xf]
      %v2201 = vld [vmem:[%s2195 + $0x14] sm:$0xf]
      %v2202 = vld [vmem:[%s2195 + $0x18] sm:$0xf]
      %v2203 = vld [vmem:[%s2195 + $0x1c] sm:$0xf]
      %v2206 = vunpack.c.l.b16 %v2193
      %v2207 = vunpack.c.l.b16 %v2194
      %v2208 = vpack.c.b16 %v2104, %v2206
      %v2209 = vpack.c.b16 %v2207, %v2105
      %v2210 = vrot.slane %v2208, 2
      %v2211 = vrot.slane %v2209, 2
      %v2212 = vsel %vm1293, %v2210, %v2211
      %v2221 = vunpack.c.l.b16 %v2196
      %v2222 = vunpack.c.l.b16 %v2197
      %v2223 = vunpack.c.l.b16 %v2198
      %v2224 = vunpack.c.l.b16 %v2199
      %v2225 = vunpack.c.l.b16 %v2200
      %v2226 = vunpack.c.l.b16 %v2201
      %v2227 = vunpack.c.l.b16 %v2202
      %v2228 = vunpack.c.l.b16 %v2203
      %v2229 = vpack.c.b16 %v2222, %v2221
      %v2230 = vpack.c.b16 %v2224, %v2223
      %v2231 = vpack.c.b16 %v2226, %v2225
      %v2232 = vpack.c.b16 %v2228, %v2227
      %v2238 = vsel %vm1139, %v2212, 0
      %v2241 = vsel %vm1139, %v2211, 0
      %2243 = vmatprep.subr.bf16.mxu0 0
      %2244 = vmatpush1.bf16.msra.mxu0 %v2229
      %2245 = vmatprep.subr.bf16.mxu0 0
      %2246 = vmatpush1.bf16.msra.mxu0 %v2230
      %2247 = vmatprep.subr.bf16.mxu0 0
      %2248 = vmatpush1.bf16.msra.mxu0 %v2231
      %2249 = vmatprep.subr.bf16.mxu0 0
      %2250 = vmatpush1.bf16.msra.mxu0 %v2232
      %2251 = vmatprep.subr.bf16.mxu0 0
      %2252 = vmatpush1.bf16.msra.mxu0 0
      %2253 = vmatprep.subr.bf16.mxu0 0
      %2254 = vmatpush1.bf16.msra.mxu0 0
      %2255 = vmatprep.subr.bf16.mxu0 0
      %2256 = vmatpush1.bf16.msra.mxu0 0
      %2257 = vmatprep.subr.bf16.mxu0 0
      %2258 = vmatpush1.bf16.msra.mxu0 0
      %2259 = vmatprep.subr.bf16.mxu0 0
      %2260 = vmatpush1.bf16.msra.mxu0 0
      %2261 = vmatprep.subr.bf16.mxu0 0
      %2262 = vmatpush1.bf16.msra.mxu0 0
      %2263 = vmatprep.subr.bf16.mxu0 0
      %2264 = vmatpush1.bf16.msra.mxu0 0
      %2265 = vmatprep.subr.bf16.mxu0 0
      %2266 = vmatpush1.bf16.msra.mxu0 0
      %2267 = vmatprep.subr.bf16.mxu0 0
      %2268 = vmatpush1.bf16.msra.mxu0 0
      %2269 = vmatprep.subr.bf16.mxu0 0
      %2270 = vmatpush1.bf16.msra.mxu0 0
      %2271 = vmatprep.subr.bf16.mxu0 0
      %2272 = vmatpush1.bf16.msra.mxu0 0
      %2273 = vmatprep.subr.bf16.mxu0 0
      %2274 = vmatpush1.bf16.msra.mxu0 0
      %2275 = vmatprep.mubr.bf16.mxu0 0
      %2276 = vmatmul.mubr.bf16.gmra.mrb[0].mxu0 %v2238
      %v2277 = vpop.f32.mrb[0].mxu0
      %v2278 = vadd.f32 0.0, %v2277
      %v2279 = vpop.f32.mrb[0].mxu0
      %v2280 = vpop.f32.mrb[0].mxu0
      %v2281 = vadd.f32 0.0, %v2280
      %v2282 = vpop.f32.mrb[0].mxu0
      %2283 = vmatprep.mubr.bf16.mxu0 0
      %2284 = vmatmul.mubr.bf16.gmra.mrb[0].mxu0 %v2241
      %v2285 = vpop.f32.mrb[0].mxu0
      %v2286 = vadd.f32 0.0, %v2285
      %v2287 = vpop.f32.mrb[0].mxu0
      %v2288 = vpop.f32.mrb[0].mxu0
      %v2289 = vpop.f32.mrb[0].mxu0
      %2290 = vdwg.mxu0
      %v2291 = vadd.f32 %v2190, %v2278
      %v2292 = vadd.f32 %v2191, %v2281
      %v2293 = vadd.f32 %v2192, %v2286
      %v2294 = vld [vmem:[#allocation2 + $0x14] sm:$0x8]
      %v2295 = vld [vmem:[#allocation2 + $0x20] sm:$0x7]
      %s2296 = scalar_lea.vmem %s8, 224
      %v2297 = vld [vmem:[%s2296] sm:$0xf]
      %v2298 = vld [vmem:[%s2296 + $0x4] sm:$0xf]
      %v2299 = vld [vmem:[%s2296 + $0x8] sm:$0xf]
      %v2300 = vld [vmem:[%s2296 + $0xc] sm:$0xf]
      %v2301 = vld [vmem:[%s2296 + $0x10] sm:$0xf]
      %v2302 = vld [vmem:[%s2296 + $0x14] sm:$0xf]
      %v2303 = vld [vmem:[%s2296 + $0x18] sm:$0xf]
      %v2304 = vld [vmem:[%s2296 + $0x1c] sm:$0xf]
      %v2307 = vunpack.c.l.b16 %v2294
      %v2308 = vunpack.c.l.b16 %v2295
      %v2309 = vpack.c.b16 %v2104, %v2307
      %v2310 = vpack.c.b16 %v2308, %v2105
      %v2311 = vrot.slane %v2309, 3
      %v2312 = vrot.slane %v2310, 3
      %v2313 = vsel %vm1395, %v2311, %v2312
      %v2322 = vunpack.c.l.b16 %v2297
      %v2323 = vunpack.c.l.b16 %v2298
      %v2324 = vunpack.c.l.b16 %v2299
      %v2325 = vunpack.c.l.b16 %v2300
      %v2326 = vunpack.c.l.b16 %v2301
      %v2327 = vunpack.c.l.b16 %v2302
      %v2328 = vunpack.c.l.b16 %v2303
      %v2329 = vunpack.c.l.b16 %v2304
      %v2330 = vpack.c.b16 %v2323, %v2322
      %v2331 = vpack.c.b16 %v2325, %v2324
      %v2332 = vpack.c.b16 %v2327, %v2326
      %v2333 = vpack.c.b16 %v2329, %v2328
      %v2339 = vsel %vm1139, %v2313, 0
      %v2342 = vsel %vm1139, %v2312, 0
      %2344 = vmatprep.subr.bf16.mxu0 0
      %2345 = vmatpush1.bf16.msra.mxu0 %v2330
      %2346 = vmatprep.subr.bf16.mxu0 0
      %2347 = vmatpush1.bf16.msra.mxu0 %v2331
      %2348 = vmatprep.subr.bf16.mxu0 0
      %2349 = vmatpush1.bf16.msra.mxu0 %v2332
      %2350 = vmatprep.subr.bf16.mxu0 0
      %2351 = vmatpush1.bf16.msra.mxu0 %v2333
      %2352 = vmatprep.subr.bf16.mxu0 0
      %2353 = vmatpush1.bf16.msra.mxu0 0
      %2354 = vmatprep.subr.bf16.mxu0 0
      %2355 = vmatpush1.bf16.msra.mxu0 0
      %2356 = vmatprep.subr.bf16.mxu0 0
      %2357 = vmatpush1.bf16.msra.mxu0 0
      %2358 = vmatprep.subr.bf16.mxu0 0
      %2359 = vmatpush1.bf16.msra.mxu0 0
      %2360 = vmatprep.subr.bf16.mxu0 0
      %2361 = vmatpush1.bf16.msra.mxu0 0
      %2362 = vmatprep.subr.bf16.mxu0 0
      %2363 = vmatpush1.bf16.msra.mxu0 0
      %2364 = vmatprep.subr.bf16.mxu0 0
      %2365 = vmatpush1.bf16.msra.mxu0 0
      %2366 = vmatprep.subr.bf16.mxu0 0
      %2367 = vmatpush1.bf16.msra.mxu0 0
      %2368 = vmatprep.subr.bf16.mxu0 0
      %2369 = vmatpush1.bf16.msra.mxu0 0
      %2370 = vmatprep.subr.bf16.mxu0 0
      %2371 = vmatpush1.bf16.msra.mxu0 0
      %2372 = vmatprep.subr.bf16.mxu0 0
      %2373 = vmatpush1.bf16.msra.mxu0 0
      %2374 = vmatprep.subr.bf16.mxu0 0
      %2375 = vmatpush1.bf16.msra.mxu0 0
      %2376 = vmatprep.mubr.bf16.mxu0 0
      %2377 = vmatmul.mubr.bf16.gmra.mrb[0].mxu0 %v2339
      %v2378 = vpop.f32.mrb[0].mxu0
      %v2379 = vadd.f32 0.0, %v2378
      %v2380 = vpop.f32.mrb[0].mxu0
      %v2381 = vpop.f32.mrb[0].mxu0
      %v2382 = vadd.f32 0.0, %v2381
      %v2383 = vpop.f32.mrb[0].mxu0
      %2384 = vmatprep.mubr.bf16.mxu0 0
      %2385 = vmatmul.mubr.bf16.gmra.mrb[0].mxu0 %v2342
      %v2386 = vpop.f32.mrb[0].mxu0
      %v2387 = vadd.f32 0.0, %v2386
      %v2388 = vpop.f32.mrb[0].mxu0
      %v2389 = vpop.f32.mrb[0].mxu0
      %v2390 = vpop.f32.mrb[0].mxu0
      %2391 = vdwg.mxu0
      %v2392 = vadd.f32 %v2291, %v2379
      %v2393 = vadd.f32 %v2292, %v2382
      %v2394 = vadd.f32 %v2293, %v2387
      %v2395 = vld [vmem:[#allocation2 + $0x20] sm:$0xf]
      %s2396 = scalar_lea.vmem %s8, 320
      %v2397 = vld [vmem:[%s2396] sm:$0xf]
      %v2398 = vld [vmem:[%s2396 + $0x4] sm:$0xf]
      %v2399 = vld [vmem:[%s2396 + $0x8] sm:$0xf]
      %v2400 = vld [vmem:[%s2396 + $0xc] sm:$0xf]
      %v2401 = vld [vmem:[%s2396 + $0x10] sm:$0xf]
      %v2402 = vld [vmem:[%s2396 + $0x14] sm:$0xf]
      %v2403 = vld [vmem:[%s2396 + $0x18] sm:$0xf]
      %v2404 = vld [vmem:[%s2396 + $0x1c] sm:$0xf]
      %v2406 = vunpack.c.l.b16 %v2395
      %v2407 = vpack.c.b16 %v2105, %v2104
      %v2408 = vpack.c.b16 %v2406, %v2406
      %v2417 = vunpack.c.l.b16 %v2397
      %v2418 = vunpack.c.l.b16 %v2398
      %v2419 = vunpack.c.l.b16 %v2399
      %v2420 = vunpack.c.l.b16 %v2400
      %v2421 = vunpack.c.l.b16 %v2401
      %v2422 = vunpack.c.l.b16 %v2402
      %v2423 = vunpack.c.l.b16 %v2403
      %v2424 = vunpack.c.l.b16 %v2404
      %v2425 = vpack.c.b16 %v2418, %v2417
      %v2426 = vpack.c.b16 %v2420, %v2419
      %v2427 = vpack.c.b16 %v2422, %v2421
      %v2428 = vpack.c.b16 %v2424, %v2423
      %v2434 = vsel %vm1139, %v2407, 0
      %v2437 = vsel %vm1139, %v2408, 0
      %2439 = vmatprep.subr.bf16.mxu0 0
      %2440 = vmatpush1.bf16.msra.mxu0 %v2425
      %2441 = vmatprep.subr.bf16.mxu0 0
      %2442 = vmatpush1.bf16.msra.mxu0 %v2426
      %2443 = vmatprep.subr.bf16.mxu0 0
      %2444 = vmatpush1.bf16.msra.mxu0 %v2427
      %2445 = vmatprep.subr.bf16.mxu0 0
      %2446 = vmatpush1.bf16.msra.mxu0 %v2428
      %2447 = vmatprep.subr.bf16.mxu0 0
      %2448 = vmatpush1.bf16.msra.mxu0 0
      %2449 = vmatprep.subr.bf16.mxu0 0
      %2450 = vmatpush1.bf16.msra.mxu0 0
      %2451 = vmatprep.subr.bf16.mxu0 0
      %2452 = vmatpush1.bf16.msra.mxu0 0
      %2453 = vmatprep.subr.bf16.mxu0 0
      %2454 = vmatpush1.bf16.msra.mxu0 0
      %2455 = vmatprep.subr.bf16.mxu0 0
      %2456 = vmatpush1.bf16.msra.mxu0 0
      %2457 = vmatprep.subr.bf16.mxu0 0
      %2458 = vmatpush1.bf16.msra.mxu0 0
      %2459 = vmatprep.subr.bf16.mxu0 0
      %2460 = vmatpush1.bf16.msra.mxu0 0
      %2461 = vmatprep.subr.bf16.mxu0 0
      %2462 = vmatpush1.bf16.msra.mxu0 0
      %2463 = vmatprep.subr.bf16.mxu0 0
      %2464 = vmatpush1.bf16.msra.mxu0 0
      %2465 = vmatprep.subr.bf16.mxu0 0
      %2466 = vmatpush1.bf16.msra.mxu0 0
      %2467 = vmatprep.subr.bf16.mxu0 0
      %2468 = vmatpush1.bf16.msra.mxu0 0
      %2469 = vmatprep.subr.bf16.mxu0 0
      %2470 = vmatpush1.bf16.msra.mxu0 0
      %2471 = vmatprep.mubr.bf16.mxu0 0
      %2472 = vmatmul.mubr.bf16.gmra.mrb[0].mxu0 %v2434
      %v2473 = vpop.f32.mrb[0].mxu0
      %v2474 = vadd.f32 0.0, %v2473
      %v2475 = vpop.f32.mrb[0].mxu0
      %v2476 = vpop.f32.mrb[0].mxu0
      %v2477 = vadd.f32 0.0, %v2476
      %v2478 = vpop.f32.mrb[0].mxu0
      %2479 = vmatprep.mubr.bf16.mxu0 0
      %2480 = vmatmul.mubr.bf16.gmra.mrb[0].mxu0 %v2437
      %v2481 = vpop.f32.mrb[0].mxu0
      %v2482 = vadd.f32 0.0, %v2481
      %v2483 = vpop.f32.mrb[0].mxu0
      %v2484 = vpop.f32.mrb[0].mxu0
      %v2485 = vpop.f32.mrb[0].mxu0
      %2486 = vdwg.mxu0
      %v2487 = vadd.f32 %v2392, %v2474
      %v2488 = vadd.f32 %v2393, %v2477
      %v2489 = vadd.f32 %v2394, %v2482
      %v2490 = vld [vmem:[#allocation2 + $0x18] sm:$0xe]
      %v2491 = vld [vmem:[#allocation2 + $0x1c] sm:$0xf]
      %v2492 = vld [vmem:[#allocation2 + $0x20] sm:$0xf]
      %v2493 = vld [vmem:[#allocation2 + $0x24] sm:$0x1]
      %s2494 = scalar_lea.vmem %s8, 416
      %v2495 = vld [vmem:[%s2494] sm:$0xf]
      %v2496 = vld [vmem:[%s2494 + $0x4] sm:$0xf]
      %v2497 = vld [vmem:[%s2494 + $0x8] sm:$0xf]
      %v2498 = vld [vmem:[%s2494 + $0xc] sm:$0xf]
      %v2499 = vld [vmem:[%s2494 + $0x10] sm:$0xf]
      %v2500 = vld [vmem:[%s2494 + $0x14] sm:$0xf]
      %v2501 = vld [vmem:[%s2494 + $0x18] sm:$0xf]
      %v2502 = vld [vmem:[%s2494 + $0x1c] sm:$0xf]
      %v2507 = vunpack.c.l.b16 %v2490
      %v2508 = vunpack.c.l.b16 %v2491
      %v2509 = vunpack.c.l.b16 %v2492
      %v2510 = vunpack.c.l.b16 %v2493
      %v2511 = vpack.c.b16 %v2508, %v2507
      %v2512 = vpack.c.b16 %v2510, %v2509
      %v2513 = vrot.slane %v2511, 1
      %v2514 = vrot.slane %v2512, 1
      %v2515 = vsel %vm1111, %v2513, %v2514
      %v2524 = vunpack.c.l.b16 %v2495
      %v2525 = vunpack.c.l.b16 %v2496
      %v2526 = vunpack.c.l.b16 %v2497
      %v2527 = vunpack.c.l.b16 %v2498
      %v2528 = vunpack.c.l.b16 %v2499
      %v2529 = vunpack.c.l.b16 %v2500
      %v2530 = vunpack.c.l.b16 %v2501
      %v2531 = vunpack.c.l.b16 %v2502
      %v2532 = vpack.c.b16 %v2525, %v2524
      %v2533 = vpack.c.b16 %v2527, %v2526
      %v2534 = vpack.c.b16 %v2529, %v2528
      %v2535 = vpack.c.b16 %v2531, %v2530
      %v2541 = vsel %vm1139, %v2515, 0
      %v2544 = vsel %vm1139, %v2514, 0
      %2546 = vmatprep.subr.bf16.mxu0 0
      %2547 = vmatpush1.bf16.msra.mxu0 %v2532
      %2548 = vmatprep.subr.bf16.mxu0 0
      %2549 = vmatpush1.bf16.msra.mxu0 %v2533
      %2550 = vmatprep.subr.bf16.mxu0 0
      %2551 = vmatpush1.bf16.msra.mxu0 %v2534
      %2552 = vmatprep.subr.bf16.mxu0 0
      %2553 = vmatpush1.bf16.msra.mxu0 %v2535
      %2554 = vmatprep.subr.bf16.mxu0 0
      %2555 = vmatpush1.bf16.msra.mxu0 0
      %2556 = vmatprep.subr.bf16.mxu0 0
      %2557 = vmatpush1.bf16.msra.mxu0 0
      %2558 = vmatprep.subr.bf16.mxu0 0
      %2559 = vmatpush1.bf16.msra.mxu0 0
      %2560 = vmatprep.subr.bf16.mxu0 0
      %2561 = vmatpush1.bf16.msra.mxu0 0
      %2562 = vmatprep.subr.bf16.mxu0 0
      %2563 = vmatpush1.bf16.msra.mxu0 0
      %2564 = vmatprep.subr.bf16.mxu0 0
      %2565 = vmatpush1.bf16.msra.mxu0 0
      %2566 = vmatprep.subr.bf16.mxu0 0
      %2567 = vmatpush1.bf16.msra.mxu0 0
      %2568 = vmatprep.subr.bf16.mxu0 0
      %2569 = vmatpush1.bf16.msra.mxu0 0
      %2570 = vmatprep.subr.bf16.mxu0 0
      %2571 = vmatpush1.bf16.msra.mxu0 0
      %2572 = vmatprep.subr.bf16.mxu0 0
      %2573 = vmatpush1.bf16.msra.mxu0 0
      %2574 = vmatprep.subr.bf16.mxu0 0
      %2575 = vmatpush1.bf16.msra.mxu0 0
      %2576 = vmatprep.subr.bf16.mxu0 0
      %2577 = vmatpush1.bf16.msra.mxu0 0
      %2578 = vmatprep.mubr.bf16.mxu0 0
      %2579 = vmatmul.mubr.bf16.gmra.mrb[0].mxu0 %v2541
      %v2580 = vpop.f32.mrb[0].mxu0
      %v2581 = vadd.f32 0.0, %v2580
      %v2582 = vpop.f32.mrb[0].mxu0
      %v2583 = vpop.f32.mrb[0].mxu0
      %v2584 = vadd.f32 0.0, %v2583
      %v2585 = vpop.f32.mrb[0].mxu0
      %2586 = vmatprep.mubr.bf16.mxu0 0
      %2587 = vmatmul.mubr.bf16.gmra.mrb[0].mxu0 %v2544
      %v2588 = vpop.f32.mrb[0].mxu0
      %v2589 = vadd.f32 0.0, %v2588
      %v2590 = vpop.f32.mrb[0].mxu0
      %v2591 = vpop.f32.mrb[0].mxu0
      %v2592 = vpop.f32.mrb[0].mxu0
      %2593 = vdwg.mxu0
      %v2594 = vadd.f32 %v2487, %v2581
      %v2595 = vadd.f32 %v2488, %v2584
      %v2596 = vadd.f32 %v2489, %v2589
      %v2597 = vld [vmem:[#allocation2 + $0x18] sm:$0xc]
      %v2598 = vld [vmem:[#allocation2 + $0x24] sm:$0x3]
      %s2599 = scalar_lea.vmem %s8, 512
      %v2600 = vld [vmem:[%s2599] sm:$0xf]
      %v2601 = vld [vmem:[%s2599 + $0x4] sm:$0xf]
      %v2602 = vld [vmem:[%s2599 + $0x8] sm:$0xf]
      %v2603 = vld [vmem:[%s2599 + $0xc] sm:$0xf]
      %v2604 = vld [vmem:[%s2599 + $0x10] sm:$0xf]
      %v2605 = vld [vmem:[%s2599 + $0x14] sm:$0xf]
      %v2606 = vld [vmem:[%s2599 + $0x18] sm:$0xf]
      %v2607 = vld [vmem:[%s2599 + $0x1c] sm:$0xf]
      %v2610 = vunpack.c.l.b16 %v2597
      %v2611 = vunpack.c.l.b16 %v2598
      %v2612 = vpack.c.b16 %v2508, %v2610
      %v2613 = vpack.c.b16 %v2611, %v2509
      %v2614 = vrot.slane %v2612, 2
      %v2615 = vrot.slane %v2613, 2
      %v2616 = vsel %vm1293, %v2614, %v2615
      %v2625 = vunpack.c.l.b16 %v2600
      %v2626 = vunpack.c.l.b16 %v2601
      %v2627 = vunpack.c.l.b16 %v2602
      %v2628 = vunpack.c.l.b16 %v2603
      %v2629 = vunpack.c.l.b16 %v2604
      %v2630 = vunpack.c.l.b16 %v2605
      %v2631 = vunpack.c.l.b16 %v2606
      %v2632 = vunpack.c.l.b16 %v2607
      %v2633 = vpack.c.b16 %v2626, %v2625
      %v2634 = vpack.c.b16 %v2628, %v2627
      %v2635 = vpack.c.b16 %v2630, %v2629
      %v2636 = vpack.c.b16 %v2632, %v2631
      %v2642 = vsel %vm1139, %v2616, 0
      %v2645 = vsel %vm1139, %v2615, 0
      %2647 = vmatprep.subr.bf16.mxu0 0
      %2648 = vmatpush1.bf16.msra.mxu0 %v2633
      %2649 = vmatprep.subr.bf16.mxu0 0
      %2650 = vmatpush1.bf16.msra.mxu0 %v2634
      %2651 = vmatprep.subr.bf16.mxu0 0
      %2652 = vmatpush1.bf16.msra.mxu0 %v2635
      %2653 = vmatprep.subr.bf16.mxu0 0
      %2654 = vmatpush1.bf16.msra.mxu0 %v2636
      %2655 = vmatprep.subr.bf16.mxu0 0
      %2656 = vmatpush1.bf16.msra.mxu0 0
      %2657 = vmatprep.subr.bf16.mxu0 0
      %2658 = vmatpush1.bf16.msra.mxu0 0
      %2659 = vmatprep.subr.bf16.mxu0 0
      %2660 = vmatpush1.bf16.msra.mxu0 0
      %2661 = vmatprep.subr.bf16.mxu0 0
      %2662 = vmatpush1.bf16.msra.mxu0 0
      %2663 = vmatprep.subr.bf16.mxu0 0
      %2664 = vmatpush1.bf16.msra.mxu0 0
      %2665 = vmatprep.subr.bf16.mxu0 0
      %2666 = vmatpush1.bf16.msra.mxu0 0
      %2667 = vmatprep.subr.bf16.mxu0 0
      %2668 = vmatpush1.bf16.msra.mxu0 0
      %2669 = vmatprep.subr.bf16.mxu0 0
      %2670 = vmatpush1.bf16.msra.mxu0 0
      %2671 = vmatprep.subr.bf16.mxu0 0
      %2672 = vmatpush1.bf16.msra.mxu0 0
      %2673 = vmatprep.subr.bf16.mxu0 0
      %2674 = vmatpush1.bf16.msra.mxu0 0
      %2675 = vmatprep.subr.bf16.mxu0 0
      %2676 = vmatpush1.bf16.msra.mxu0 0
      %2677 = vmatprep.subr.bf16.mxu0 0
      %2678 = vmatpush1.bf16.msra.mxu0 0
      %2679 = vmatprep.mubr.bf16.mxu0 0
      %2680 = vmatmul.mubr.bf16.gmra.mrb[0].mxu0 %v2642
      %v2681 = vpop.f32.mrb[0].mxu0
      %v2682 = vadd.f32 0.0, %v2681
      %v2683 = vpop.f32.mrb[0].mxu0
      %v2684 = vpop.f32.mrb[0].mxu0
      %v2685 = vadd.f32 0.0, %v2684
      %v2686 = vpop.f32.mrb[0].mxu0
      %2687 = vmatprep.mubr.bf16.mxu0 0
      %2688 = vmatmul.mubr.bf16.gmra.mrb[0].mxu0 %v2645
      %v2689 = vpop.f32.mrb[0].mxu0
      %v2690 = vadd.f32 0.0, %v2689
      %v2691 = vpop.f32.mrb[0].mxu0
      %v2692 = vpop.f32.mrb[0].mxu0
      %v2693 = vpop.f32.mrb[0].mxu0
      %2694 = vdwg.mxu0
      %v2695 = vadd.f32 %v2594, %v2682
      %v2696 = vadd.f32 %v2595, %v2685
      %v2697 = vadd.f32 %v2596, %v2690
      %v2698 = vld [vmem:[#allocation2 + $0x18] sm:$0x8]
      %v2699 = vld [vmem:[#allocation2 + $0x24] sm:$0x7]
      %s2700 = scalar_lea.vmem %s8, 608
      %v2701 = vld [vmem:[%s2700] sm:$0xf]
      %v2702 = vld [vmem:[%s2700 + $0x4] sm:$0xf]
      %v2703 = vld [vmem:[%s2700 + $0x8] sm:$0xf]
      %v2704 = vld [vmem:[%s2700 + $0xc] sm:$0xf]
      %v2705 = vld [vmem:[%s2700 + $0x10] sm:$0xf]
      %v2706 = vld [vmem:[%s2700 + $0x14] sm:$0xf]
      %v2707 = vld [vmem:[%s2700 + $0x18] sm:$0xf]
      %v2708 = vld [vmem:[%s2700 + $0x1c] sm:$0xf]
      %v2711 = vunpack.c.l.b16 %v2698
      %v2712 = vunpack.c.l.b16 %v2699
      %v2713 = vpack.c.b16 %v2508, %v2711
      %v2714 = vpack.c.b16 %v2712, %v2509
      %v2715 = vrot.slane %v2713, 3
      %v2716 = vrot.slane %v2714, 3
      %v2717 = vsel %vm1395, %v2715, %v2716
      %v2726 = vunpack.c.l.b16 %v2701
      %v2727 = vunpack.c.l.b16 %v2702
      %v2728 = vunpack.c.l.b16 %v2703
      %v2729 = vunpack.c.l.b16 %v2704
      %v2730 = vunpack.c.l.b16 %v2705
      %v2731 = vunpack.c.l.b16 %v2706
      %v2732 = vunpack.c.l.b16 %v2707
      %v2733 = vunpack.c.l.b16 %v2708
      %v2734 = vpack.c.b16 %v2727, %v2726
      %v2735 = vpack.c.b16 %v2729, %v2728
      %v2736 = vpack.c.b16 %v2731, %v2730
      %v2737 = vpack.c.b16 %v2733, %v2732
      %v2743 = vsel %vm1139, %v2717, 0
      %v2746 = vsel %vm1139, %v2716, 0
      %2748 = vmatprep.subr.bf16.mxu0 0
      %2749 = vmatpush1.bf16.msra.mxu0 %v2734
      %2750 = vmatprep.subr.bf16.mxu0 0
      %2751 = vmatpush1.bf16.msra.mxu0 %v2735
      %2752 = vmatprep.subr.bf16.mxu0 0
      %2753 = vmatpush1.bf16.msra.mxu0 %v2736
      %2754 = vmatprep.subr.bf16.mxu0 0
      %2755 = vmatpush1.bf16.msra.mxu0 %v2737
      %2756 = vmatprep.subr.bf16.mxu0 0
      %2757 = vmatpush1.bf16.msra.mxu0 0
      %2758 = vmatprep.subr.bf16.mxu0 0
      %2759 = vmatpush1.bf16.msra.mxu0 0
      %2760 = vmatprep.subr.bf16.mxu0 0
      %2761 = vmatpush1.bf16.msra.mxu0 0
      %2762 = vmatprep.subr.bf16.mxu0 0
      %2763 = vmatpush1.bf16.msra.mxu0 0
      %2764 = vmatprep.subr.bf16.mxu0 0
      %2765 = vmatpush1.bf16.msra.mxu0 0
      %2766 = vmatprep.subr.bf16.mxu0 0
      %2767 = vmatpush1.bf16.msra.mxu0 0
      %2768 = vmatprep.subr.bf16.mxu0 0
      %2769 = vmatpush1.bf16.msra.mxu0 0
      %2770 = vmatprep.subr.bf16.mxu0 0
      %2771 = vmatpush1.bf16.msra.mxu0 0
      %2772 = vmatprep.subr.bf16.mxu0 0
      %2773 = vmatpush1.bf16.msra.mxu0 0
      %2774 = vmatprep.subr.bf16.mxu0 0
      %2775 = vmatpush1.bf16.msra.mxu0 0
      %2776 = vmatprep.subr.bf16.mxu0 0
      %2777 = vmatpush1.bf16.msra.mxu0 0
      %2778 = vmatprep.subr.bf16.mxu0 0
      %2779 = vmatpush1.bf16.msra.mxu0 0
      %2780 = vmatprep.mubr.bf16.mxu0 0
      %2781 = vmatmul.mubr.bf16.gmra.mrb[0].mxu0 %v2743
      %v2782 = vpop.f32.mrb[0].mxu0
      %v2783 = vadd.f32 0.0, %v2782
      %v2784 = vpop.f32.mrb[0].mxu0
      %v2785 = vpop.f32.mrb[0].mxu0
      %v2786 = vadd.f32 0.0, %v2785
      %v2787 = vpop.f32.mrb[0].mxu0
      %2788 = vmatprep.mubr.bf16.mxu0 0
      %2789 = vmatmul.mubr.bf16.gmra.mrb[0].mxu0 %v2746
      %v2790 = vpop.f32.mrb[0].mxu0
      %v2791 = vadd.f32 0.0, %v2790
      %v2792 = vpop.f32.mrb[0].mxu0
      %v2793 = vpop.f32.mrb[0].mxu0
      %v2794 = vpop.f32.mrb[0].mxu0
      %2795 = vdwg.mxu0
      %v2796 = vadd.f32 %v2695, %v2783
      %v2797 = vadd.f32 %v2696, %v2786
      %v2798 = vadd.f32 %v2697, %v2791
      %v2799 = vld [vmem:[#allocation2 + $0x24] sm:$0xf]
      %s2800 = scalar_lea.vmem %s8, 704
      %v2801 = vld [vmem:[%s2800] sm:$0xf]
      %v2802 = vld [vmem:[%s2800 + $0x4] sm:$0xf]
      %v2803 = vld [vmem:[%s2800 + $0x8] sm:$0xf]
      %v2804 = vld [vmem:[%s2800 + $0xc] sm:$0xf]
      %v2805 = vld [vmem:[%s2800 + $0x10] sm:$0xf]
      %v2806 = vld [vmem:[%s2800 + $0x14] sm:$0xf]
      %v2807 = vld [vmem:[%s2800 + $0x18] sm:$0xf]
      %v2808 = vld [vmem:[%s2800 + $0x1c] sm:$0xf]
      %v2810 = vunpack.c.l.b16 %v2799
      %v2811 = vpack.c.b16 %v2509, %v2508
      %v2812 = vpack.c.b16 %v2810, %v2810
      %v2821 = vunpack.c.l.b16 %v2801
      %v2822 = vunpack.c.l.b16 %v2802
      %v2823 = vunpack.c.l.b16 %v2803
      %v2824 = vunpack.c.l.b16 %v2804
      %v2825 = vunpack.c.l.b16 %v2805
      %v2826 = vunpack.c.l.b16 %v2806
      %v2827 = vunpack.c.l.b16 %v2807
      %v2828 = vunpack.c.l.b16 %v2808
      %v2829 = vpack.c.b16 %v2822, %v2821
      %v2830 = vpack.c.b16 %v2824, %v2823
      %v2831 = vpack.c.b16 %v2826, %v2825
      %v2832 = vpack.c.b16 %v2828, %v2827
      %v2838 = vsel %vm1139, %v2811, 0
      %v2841 = vsel %vm1139, %v2812, 0
      %2843 = vmatprep.subr.bf16.mxu0 0
      %2844 = vmatpush1.bf16.msra.mxu0 %v2829
      %2845 = vmatprep.subr.bf16.mxu0 0
      %2846 = vmatpush1.bf16.msra.mxu0 %v2830
      %2847 = vmatprep.subr.bf16.mxu0 0
      %2848 = vmatpush1.bf16.msra.mxu0 %v2831
      %2849 = vmatprep.subr.bf16.mxu0 0
      %2850 = vmatpush1.bf16.msra.mxu0 %v2832
      %2851 = vmatprep.subr.bf16.mxu0 0
      %2852 = vmatpush1.bf16.msra.mxu0 0
      %2853 = vmatprep.subr.bf16.mxu0 0
      %2854 = vmatpush1.bf16.msra.mxu0 0
      %2855 = vmatprep.subr.bf16.mxu0 0
      %2856 = vmatpush1.bf16.msra.mxu0 0
      %2857 = vmatprep.subr.bf16.mxu0 0
      %2858 = vmatpush1.bf16.msra.mxu0 0
      %2859 = vmatprep.subr.bf16.mxu0 0
      %2860 = vmatpush1.bf16.msra.mxu0 0
      %2861 = vmatprep.subr.bf16.mxu0 0
      %2862 = vmatpush1.bf16.msra.mxu0 0
      %2863 = vmatprep.subr.bf16.mxu0 0
      %2864 = vmatpush1.bf16.msra.mxu0 0
      %2865 = vmatprep.subr.bf16.mxu0 0
      %2866 = vmatpush1.bf16.msra.mxu0 0
      %2867 = vmatprep.subr.bf16.mxu0 0
      %2868 = vmatpush1.bf16.msra.mxu0 0
      %2869 = vmatprep.subr.bf16.mxu0 0
      %2870 = vmatpush1.bf16.msra.mxu0 0
      %2871 = vmatprep.subr.bf16.mxu0 0
      %2872 = vmatpush1.bf16.msra.mxu0 0
      %2873 = vmatprep.subr.bf16.mxu0 0
      %2874 = vmatpush1.bf16.msra.mxu0 0
      %2875 = vmatprep.mubr.bf16.mxu0 0
      %2876 = vmatmul.mubr.bf16.gmra.mrb[0].mxu0 %v2838
      %v2877 = vpop.f32.mrb[0].mxu0
      %v2878 = vadd.f32 0.0, %v2877
      %v2879 = vpop.f32.mrb[0].mxu0
      %v2880 = vpop.f32.mrb[0].mxu0
      %v2881 = vadd.f32 0.0, %v2880
      %v2882 = vpop.f32.mrb[0].mxu0
      %2883 = vmatprep.mubr.bf16.mxu0 0
      %2884 = vmatmul.mubr.bf16.gmra.mrb[0].mxu0 %v2841
      %v2885 = vpop.f32.mrb[0].mxu0
      %v2886 = vadd.f32 0.0, %v2885
      %v2887 = vpop.f32.mrb[0].mxu0
      %v2888 = vpop.f32.mrb[0].mxu0
      %v2889 = vpop.f32.mrb[0].mxu0
      %2890 = vdwg.mxu0
      %v2891 = vadd.f32 %v2796, %v2878
      %v2892 = vadd.f32 %v2797, %v2881
      %v2893 = vadd.f32 %v2798, %v2886
      %v2894 = vld [vmem:[#allocation2 + $0x1c] sm:$0xe]
      %v2895 = vld [vmem:[#allocation2 + $0x20] sm:$0xf]
      %v2896 = vld [vmem:[#allocation2 + $0x24] sm:$0xf]
      %v2897 = vld [vmem:[#allocation2 + $0x28] sm:$0x1]
      %s2898 = scalar_lea.vmem %s8, 800
      %v2899 = vld [vmem:[%s2898] sm:$0xf]
      %v2900 = vld [vmem:[%s2898 + $0x4] sm:$0xf]
      %v2901 = vld [vmem:[%s2898 + $0x8] sm:$0xf]
      %v2902 = vld [vmem:[%s2898 + $0xc] sm:$0xf]
      %v2903 = vld [vmem:[%s2898 + $0x10] sm:$0xf]
      %v2904 = vld [vmem:[%s2898 + $0x14] sm:$0xf]
      %v2905 = vld [vmem:[%s2898 + $0x18] sm:$0xf]
      %v2906 = vld [vmem:[%s2898 + $0x1c] sm:$0xf]
      %v2911 = vunpack.c.l.b16 %v2894
      %v2912 = vunpack.c.l.b16 %v2895
      %v2913 = vunpack.c.l.b16 %v2896
      %v2914 = vunpack.c.l.b16 %v2897
      %v2915 = vpack.c.b16 %v2912, %v2911
      %v2916 = vpack.c.b16 %v2914, %v2913
      %v2917 = vrot.slane %v2915, 1
      %v2918 = vrot.slane %v2916, 1
      %v2919 = vsel %vm1111, %v2917, %v2918
      %v2928 = vunpack.c.l.b16 %v2899
      %v2929 = vunpack.c.l.b16 %v2900
      %v2930 = vunpack.c.l.b16 %v2901
      %v2931 = vunpack.c.l.b16 %v2902
      %v2932 = vunpack.c.l.b16 %v2903
      %v2933 = vunpack.c.l.b16 %v2904
      %v2934 = vunpack.c.l.b16 %v2905
      %v2935 = vunpack.c.l.b16 %v2906
      %v2936 = vpack.c.b16 %v2929, %v2928
      %v2937 = vpack.c.b16 %v2931, %v2930
      %v2938 = vpack.c.b16 %v2933, %v2932
      %v2939 = vpack.c.b16 %v2935, %v2934
      %v2945 = vsel %vm1139, %v2919, 0
      %v2948 = vsel %vm1139, %v2918, 0
      %2950 = vmatprep.subr.bf16.mxu0 0
      %2951 = vmatpush1.bf16.msra.mxu0 %v2936
      %2952 = vmatprep.subr.bf16.mxu0 0
      %2953 = vmatpush1.bf16.msra.mxu0 %v2937
      %2954 = vmatprep.subr.bf16.mxu0 0
      %2955 = vmatpush1.bf16.msra.mxu0 %v2938
      %2956 = vmatprep.subr.bf16.mxu0 0
      %2957 = vmatpush1.bf16.msra.mxu0 %v2939
      %2958 = vmatprep.subr.bf16.mxu0 0
      %2959 = vmatpush1.bf16.msra.mxu0 0
      %2960 = vmatprep.subr.bf16.mxu0 0
      %2961 = vmatpush1.bf16.msra.mxu0 0
      %2962 = vmatprep.subr.bf16.mxu0 0
      %2963 = vmatpush1.bf16.msra.mxu0 0
      %2964 = vmatprep.subr.bf16.mxu0 0
      %2965 = vmatpush1.bf16.msra.mxu0 0
      %2966 = vmatprep.subr.bf16.mxu0 0
      %2967 = vmatpush1.bf16.msra.mxu0 0
      %2968 = vmatprep.subr.bf16.mxu0 0
      %2969 = vmatpush1.bf16.msra.mxu0 0
      %2970 = vmatprep.subr.bf16.mxu0 0
      %2971 = vmatpush1.bf16.msra.mxu0 0
      %2972 = vmatprep.subr.bf16.mxu0 0
      %2973 = vmatpush1.bf16.msra.mxu0 0
      %2974 = vmatprep.subr.bf16.mxu0 0
      %2975 = vmatpush1.bf16.msra.mxu0 0
      %2976 = vmatprep.subr.bf16.mxu0 0
      %2977 = vmatpush1.bf16.msra.mxu0 0
      %2978 = vmatprep.subr.bf16.mxu0 0
      %2979 = vmatpush1.bf16.msra.mxu0 0
      %2980 = vmatprep.subr.bf16.mxu0 0
      %2981 = vmatpush1.bf16.msra.mxu0 0
      %2982 = vmatprep.mubr.bf16.mxu0 0
      %2983 = vmatmul.mubr.bf16.gmra.mrb[0].mxu0 %v2945
      %v2984 = vpop.f32.mrb[0].mxu0
      %v2985 = vadd.f32 0.0, %v2984
      %v2986 = vpop.f32.mrb[0].mxu0
      %v2987 = vpop.f32.mrb[0].mxu0
      %v2988 = vadd.f32 0.0, %v2987
      %v2989 = vpop.f32.mrb[0].mxu0
      %2990 = vmatprep.mubr.bf16.mxu0 0
      %2991 = vmatmul.mubr.bf16.gmra.mrb[0].mxu0 %v2948
      %v2992 = vpop.f32.mrb[0].mxu0
      %v2993 = vadd.f32 0.0, %v2992
      %v2994 = vpop.f32.mrb[0].mxu0
      %v2995 = vpop.f32.mrb[0].mxu0
      %v2996 = vpop.f32.mrb[0].mxu0
      %2997 = vdwg.mxu0
      %v2998 = vadd.f32 %v2891, %v2985
      %v2999 = vadd.f32 %v2892, %v2988
      %v3000 = vadd.f32 %v2893, %v2993
      %v3001 = vld [vmem:[#allocation2 + $0x1c] sm:$0xc]
      %v3002 = vld [vmem:[#allocation2 + $0x28] sm:$0x3]
      %s3003 = scalar_lea.vmem %s8, 896
      %v3004 = vld [vmem:[%s3003] sm:$0xf]
      %v3005 = vld [vmem:[%s3003 + $0x4] sm:$0xf]
      %v3006 = vld [vmem:[%s3003 + $0x8] sm:$0xf]
      %v3007 = vld [vmem:[%s3003 + $0xc] sm:$0xf]
      %v3008 = vld [vmem:[%s3003 + $0x10] sm:$0xf]
      %v3009 = vld [vmem:[%s3003 + $0x14] sm:$0xf]
      %v3010 = vld [vmem:[%s3003 + $0x18] sm:$0xf]
      %v3011 = vld [vmem:[%s3003 + $0x1c] sm:$0xf]
      %v3014 = vunpack.c.l.b16 %v3001
      %v3015 = vunpack.c.l.b16 %v3002
      %v3016 = vpack.c.b16 %v2912, %v3014
      %v3017 = vpack.c.b16 %v3015, %v2913
      %v3018 = vrot.slane %v3016, 2
      %v3019 = vrot.slane %v3017, 2
      %v3020 = vsel %vm1293, %v3018, %v3019
      %v3029 = vunpack.c.l.b16 %v3004
      %v3030 = vunpack.c.l.b16 %v3005
      %v3031 = vunpack.c.l.b16 %v3006
      %v3032 = vunpack.c.l.b16 %v3007
      %v3033 = vunpack.c.l.b16 %v3008
      %v3034 = vunpack.c.l.b16 %v3009
      %v3035 = vunpack.c.l.b16 %v3010
      %v3036 = vunpack.c.l.b16 %v3011
      %v3037 = vpack.c.b16 %v3030, %v3029
      %v3038 = vpack.c.b16 %v3032, %v3031
      %v3039 = vpack.c.b16 %v3034, %v3033
      %v3040 = vpack.c.b16 %v3036, %v3035
      %v3046 = vsel %vm1139, %v3020, 0
      %v3049 = vsel %vm1139, %v3019, 0
      %3051 = vmatprep.subr.bf16.mxu0 0
      %3052 = vmatpush1.bf16.msra.mxu0 %v3037
      %3053 = vmatprep.subr.bf16.mxu0 0
      %3054 = vmatpush1.bf16.msra.mxu0 %v3038
      %3055 = vmatprep.subr.bf16.mxu0 0
      %3056 = vmatpush1.bf16.msra.mxu0 %v3039
      %3057 = vmatprep.subr.bf16.mxu0 0
      %3058 = vmatpush1.bf16.msra.mxu0 %v3040
      %3059 = vmatprep.subr.bf16.mxu0 0
      %3060 = vmatpush1.bf16.msra.mxu0 0
      %3061 = vmatprep.subr.bf16.mxu0 0
      %3062 = vmatpush1.bf16.msra.mxu0 0
      %3063 = vmatprep.subr.bf16.mxu0 0
      %3064 = vmatpush1.bf16.msra.mxu0 0
      %3065 = vmatprep.subr.bf16.mxu0 0
      %3066 = vmatpush1.bf16.msra.mxu0 0
      %3067 = vmatprep.subr.bf16.mxu0 0
      %3068 = vmatpush1.bf16.msra.mxu0 0
      %3069 = vmatprep.subr.bf16.mxu0 0
      %3070 = vmatpush1.bf16.msra.mxu0 0
      %3071 = vmatprep.subr.bf16.mxu0 0
      %3072 = vmatpush1.bf16.msra.mxu0 0
      %3073 = vmatprep.subr.bf16.mxu0 0
      %3074 = vmatpush1.bf16.msra.mxu0 0
      %3075 = vmatprep.subr.bf16.mxu0 0
      %3076 = vmatpush1.bf16.msra.mxu0 0
      %3077 = vmatprep.subr.bf16.mxu0 0
      %3078 = vmatpush1.bf16.msra.mxu0 0
      %3079 = vmatprep.subr.bf16.mxu0 0
      %3080 = vmatpush1.bf16.msra.mxu0 0
      %3081 = vmatprep.subr.bf16.mxu0 0
      %3082 = vmatpush1.bf16.msra.mxu0 0
      %3083 = vmatprep.mubr.bf16.mxu0 0
      %3084 = vmatmul.mubr.bf16.gmra.mrb[0].mxu0 %v3046
      %v3085 = vpop.f32.mrb[0].mxu0
      %v3086 = vadd.f32 0.0, %v3085
      %v3087 = vpop.f32.mrb[0].mxu0
      %v3088 = vpop.f32.mrb[0].mxu0
      %v3089 = vadd.f32 0.0, %v3088
      %v3090 = vpop.f32.mrb[0].mxu0
      %3091 = vmatprep.mubr.bf16.mxu0 0
      %3092 = vmatmul.mubr.bf16.gmra.mrb[0].mxu0 %v3049
      %v3093 = vpop.f32.mrb[0].mxu0
      %v3094 = vadd.f32 0.0, %v3093
      %v3095 = vpop.f32.mrb[0].mxu0
      %v3096 = vpop.f32.mrb[0].mxu0
      %v3097 = vpop.f32.mrb[0].mxu0
      %3098 = vdwg.mxu0
      %v3099 = vadd.f32 %v2998, %v3086
      %v3100 = vadd.f32 %v2999, %v3089
      %v3101 = vadd.f32 %v3000, %v3094
      %v3102 = vld [vmem:[#allocation2 + $0x28] sm:$0xc]
      %v3103 = vld [vmem:[#allocation2 + $0x2c] sm:$0xf]
      %v3104 = vld [vmem:[#allocation2 + $0x30] sm:$0xf]
      %v3105 = vld [vmem:[#allocation2 + $0x34] sm:$0x3]
      %s3106 = scalar_lea.vmem %s8, 64
      %v3107 = vld [vmem:[%s3106] sm:$0xf]
      %v3108 = vld [vmem:[%s3106 + $0x4] sm:$0xf]
      %v3109 = vld [vmem:[%s3106 + $0x8] sm:$0xf]
      %v3110 = vld [vmem:[%s3106 + $0xc] sm:$0xf]
      %v3111 = vld [vmem:[%s3106 + $0x10] sm:$0xf]
      %v3112 = vld [vmem:[%s3106 + $0x14] sm:$0xf]
      %v3113 = vld [vmem:[%s3106 + $0x18] sm:$0xf]
      %v3114 = vld [vmem:[%s3106 + $0x1c] sm:$0xf]
      %v3119 = vunpack.c.l.b16 %v3102
      %v3120 = vunpack.c.l.b16 %v3103
      %v3121 = vunpack.c.l.b16 %v3104
      %v3122 = vunpack.c.l.b16 %v3105
      %v3123 = vpack.c.b16 %v3120, %v3119
      %v3124 = vpack.c.b16 %v3122, %v3121
      %v3125 = vrot.slane %v3123, 2
      %v3126 = vrot.slane %v3124, 2
      %v3127 = vsel %vm1293, %v3125, %v3126
      %v3136 = vunpack.c.l.b16 %v3107
      %v3137 = vunpack.c.l.b16 %v3108
      %v3138 = vunpack.c.l.b16 %v3109
      %v3139 = vunpack.c.l.b16 %v3110
      %v3140 = vunpack.c.l.b16 %v3111
      %v3141 = vunpack.c.l.b16 %v3112
      %v3142 = vunpack.c.l.b16 %v3113
      %v3143 = vunpack.c.l.b16 %v3114
      %v3144 = vpack.c.b16 %v3137, %v3136
      %v3145 = vpack.c.b16 %v3139, %v3138
      %v3146 = vpack.c.b16 %v3141, %v3140
      %v3147 = vpack.c.b16 %v3143, %v3142
      %v3153 = vsel %vm1139, %v3127, 0
      %v3156 = vsel %vm1139, %v3126, 0
      %3158 = vmatprep.subr.bf16.mxu0 0
      %3159 = vmatpush1.bf16.msra.mxu0 %v3144
      %3160 = vmatprep.subr.bf16.mxu0 0
      %3161 = vmatpush1.bf16.msra.mxu0 %v3145
      %3162 = vmatprep.subr.bf16.mxu0 0
      %3163 = vmatpush1.bf16.msra.mxu0 %v3146
      %3164 = vmatprep.subr.bf16.mxu0 0
      %3165 = vmatpush1.bf16.msra.mxu0 %v3147
      %3166 = vmatprep.subr.bf16.mxu0 0
      %3167 = vmatpush1.bf16.msra.mxu0 0
      %3168 = vmatprep.subr.bf16.mxu0 0
      %3169 = vmatpush1.bf16.msra.mxu0 0
      %3170 = vmatprep.subr.bf16.mxu0 0
      %3171 = vmatpush1.bf16.msra.mxu0 0
      %3172 = vmatprep.subr.bf16.mxu0 0
      %3173 = vmatpush1.bf16.msra.mxu0 0
      %3174 = vmatprep.subr.bf16.mxu0 0
      %3175 = vmatpush1.bf16.msra.mxu0 0
      %3176 = vmatprep.subr.bf16.mxu0 0
      %3177 = vmatpush1.bf16.msra.mxu0 0
      %3178 = vmatprep.subr.bf16.mxu0 0
      %3179 = vmatpush1.bf16.msra.mxu0 0
      %3180 = vmatprep.subr.bf16.mxu0 0
      %3181 = vmatpush1.bf16.msra.mxu0 0
      %3182 = vmatprep.subr.bf16.mxu0 0
      %3183 = vmatpush1.bf16.msra.mxu0 0
      %3184 = vmatprep.subr.bf16.mxu0 0
      %3185 = vmatpush1.bf16.msra.mxu0 0
      %3186 = vmatprep.subr.bf16.mxu0 0
      %3187 = vmatpush1.bf16.msra.mxu0 0
      %3188 = vmatprep.subr.bf16.mxu0 0
      %3189 = vmatpush1.bf16.msra.mxu0 0
      %3190 = vmatprep.mubr.bf16.mxu0 0
      %3191 = vmatmul.mubr.bf16.gmra.mrb[0].mxu0 %v3153
      %v3192 = vpop.f32.mrb[0].mxu0
      %v3193 = vadd.f32 0.0, %v3192
      %v3194 = vpop.f32.mrb[0].mxu0
      %v3195 = vpop.f32.mrb[0].mxu0
      %v3196 = vadd.f32 0.0, %v3195
      %v3197 = vpop.f32.mrb[0].mxu0
      %3198 = vmatprep.mubr.bf16.mxu0 0
      %3199 = vmatmul.mubr.bf16.gmra.mrb[0].mxu0 %v3156
      %v3200 = vpop.f32.mrb[0].mxu0
      %v3201 = vadd.f32 0.0, %v3200
      %v3202 = vpop.f32.mrb[0].mxu0
      %v3203 = vpop.f32.mrb[0].mxu0
      %v3204 = vpop.f32.mrb[0].mxu0
      %3205 = vdwg.mxu0
      %v3206 = vadd.f32 %v3099, %v3193
      %v3207 = vadd.f32 %v3100, %v3196
      %v3208 = vadd.f32 %v3101, %v3201
      %v3209 = vld [vmem:[#allocation2 + $0x28] sm:$0x8]
      %v3210 = vld [vmem:[#allocation2 + $0x34] sm:$0x7]
      %s3211 = scalar_lea.vmem %s8, 160
      %v3212 = vld [vmem:[%s3211] sm:$0xf]
      %v3213 = vld [vmem:[%s3211 + $0x4] sm:$0xf]
      %v3214 = vld [vmem:[%s3211 + $0x8] sm:$0xf]
      %v3215 = vld [vmem:[%s3211 + $0xc] sm:$0xf]
      %v3216 = vld [vmem:[%s3211 + $0x10] sm:$0xf]
      %v3217 = vld [vmem:[%s3211 + $0x14] sm:$0xf]
      %v3218 = vld [vmem:[%s3211 + $0x18] sm:$0xf]
      %v3219 = vld [vmem:[%s3211 + $0x1c] sm:$0xf]
      %v3222 = vunpack.c.l.b16 %v3209
      %v3223 = vunpack.c.l.b16 %v3210
      %v3224 = vpack.c.b16 %v3120, %v3222
      %v3225 = vpack.c.b16 %v3223, %v3121
      %v3226 = vrot.slane %v3224, 3
      %v3227 = vrot.slane %v3225, 3
      %v3228 = vsel %vm1395, %v3226, %v3227
      %v3237 = vunpack.c.l.b16 %v3212
      %v3238 = vunpack.c.l.b16 %v3213
      %v3239 = vunpack.c.l.b16 %v3214
      %v3240 = vunpack.c.l.b16 %v3215
      %v3241 = vunpack.c.l.b16 %v3216
      %v3242 = vunpack.c.l.b16 %v3217
      %v3243 = vunpack.c.l.b16 %v3218
      %v3244 = vunpack.c.l.b16 %v3219
      %v3245 = vpack.c.b16 %v3238, %v3237
      %v3246 = vpack.c.b16 %v3240, %v3239
      %v3247 = vpack.c.b16 %v3242, %v3241
      %v3248 = vpack.c.b16 %v3244, %v3243
      %v3254 = vsel %vm1139, %v3228, 0
      %v3257 = vsel %vm1139, %v3227, 0
      %3259 = vmatprep.subr.bf16.mxu0 0
      %3260 = vmatpush1.bf16.msra.mxu0 %v3245
      %3261 = vmatprep.subr.bf16.mxu0 0
      %3262 = vmatpush1.bf16.msra.mxu0 %v3246
      %3263 = vmatprep.subr.bf16.mxu0 0
      %3264 = vmatpush1.bf16.msra.mxu0 %v3247
      %3265 = vmatprep.subr.bf16.mxu0 0
      %3266 = vmatpush1.bf16.msra.mxu0 %v3248
      %3267 = vmatprep.subr.bf16.mxu0 0
      %3268 = vmatpush1.bf16.msra.mxu0 0
      %3269 = vmatprep.subr.bf16.mxu0 0
      %3270 = vmatpush1.bf16.msra.mxu0 0
      %3271 = vmatprep.subr.bf16.mxu0 0
      %3272 = vmatpush1.bf16.msra.mxu0 0
      %3273 = vmatprep.subr.bf16.mxu0 0
      %3274 = vmatpush1.bf16.msra.mxu0 0
      %3275 = vmatprep.subr.bf16.mxu0 0
      %3276 = vmatpush1.bf16.msra.mxu0 0
      %3277 = vmatprep.subr.bf16.mxu0 0
      %3278 = vmatpush1.bf16.msra.mxu0 0
      %3279 = vmatprep.subr.bf16.mxu0 0
      %3280 = vmatpush1.bf16.msra.mxu0 0
      %3281 = vmatprep.subr.bf16.mxu0 0
      %3282 = vmatpush1.bf16.msra.mxu0 0
      %3283 = vmatprep.subr.bf16.mxu0 0
      %3284 = vmatpush1.bf16.msra.mxu0 0
      %3285 = vmatprep.subr.bf16.mxu0 0
      %3286 = vmatpush1.bf16.msra.mxu0 0
      %3287 = vmatprep.subr.bf16.mxu0 0
      %3288 = vmatpush1.bf16.msra.mxu0 0
      %3289 = vmatprep.subr.bf16.mxu0 0
      %3290 = vmatpush1.bf16.msra.mxu0 0
      %3291 = vmatprep.mubr.bf16.mxu0 0
      %3292 = vmatmul.mubr.bf16.gmra.mrb[0].mxu0 %v3254
      %v3293 = vpop.f32.mrb[0].mxu0
      %v3294 = vadd.f32 0.0, %v3293
      %v3295 = vpop.f32.mrb[0].mxu0
      %v3296 = vpop.f32.mrb[0].mxu0
      %v3297 = vadd.f32 0.0, %v3296
      %v3298 = vpop.f32.mrb[0].mxu0
      %3299 = vmatprep.mubr.bf16.mxu0 0
      %3300 = vmatmul.mubr.bf16.gmra.mrb[0].mxu0 %v3257
      %v3301 = vpop.f32.mrb[0].mxu0
      %v3302 = vadd.f32 0.0, %v3301
      %v3303 = vpop.f32.mrb[0].mxu0
      %v3304 = vpop.f32.mrb[0].mxu0
      %v3305 = vpop.f32.mrb[0].mxu0
      %3306 = vdwg.mxu0
      %v3307 = vadd.f32 %v3206, %v3294
      %v3308 = vadd.f32 %v3207, %v3297
      %v3309 = vadd.f32 %v3208, %v3302
      %v3310 = vld [vmem:[#allocation2 + $0x34] sm:$0xf]
      %s3311 = scalar_lea.vmem %s8, 256
      %v3312 = vld [vmem:[%s3311] sm:$0xf]
      %v3313 = vld [vmem:[%s3311 + $0x4] sm:$0xf]
      %v3314 = vld [vmem:[%s3311 + $0x8] sm:$0xf]
      %v3315 = vld [vmem:[%s3311 + $0xc] sm:$0xf]
      %v3316 = vld [vmem:[%s3311 + $0x10] sm:$0xf]
      %v3317 = vld [vmem:[%s3311 + $0x14] sm:$0xf]
      %v3318 = vld [vmem:[%s3311 + $0x18] sm:$0xf]
      %v3319 = vld [vmem:[%s3311 + $0x1c] sm:$0xf]
      %v3321 = vunpack.c.l.b16 %v3310
      %v3322 = vpack.c.b16 %v3121, %v3120
      %v3323 = vpack.c.b16 %v3321, %v3321
      %v3332 = vunpack.c.l.b16 %v3312
      %v3333 = vunpack.c.l.b16 %v3313
      %v3334 = vunpack.c.l.b16 %v3314
      %v3335 = vunpack.c.l.b16 %v3315
      %v3336 = vunpack.c.l.b16 %v3316
      %v3337 = vunpack.c.l.b16 %v3317
      %v3338 = vunpack.c.l.b16 %v3318
      %v3339 = vunpack.c.l.b16 %v3319
      %v3340 = vpack.c.b16 %v3333, %v3332
      %v3341 = vpack.c.b16 %v3335, %v3334
      %v3342 = vpack.c.b16 %v3337, %v3336
      %v3343 = vpack.c.b16 %v3339, %v3338
      %v3349 = vsel %vm1139, %v3322, 0
      %v3352 = vsel %vm1139, %v3323, 0
      %3354 = vmatprep.subr.bf16.mxu0 0
      %3355 = vmatpush1.bf16.msra.mxu0 %v3340
      %3356 = vmatprep.subr.bf16.mxu0 0
      %3357 = vmatpush1.bf16.msra.mxu0 %v3341
      %3358 = vmatprep.subr.bf16.mxu0 0
      %3359 = vmatpush1.bf16.msra.mxu0 %v3342
      %3360 = vmatprep.subr.bf16.mxu0 0
      %3361 = vmatpush1.bf16.msra.mxu0 %v3343
      %3362 = vmatprep.subr.bf16.mxu0 0
      %3363 = vmatpush1.bf16.msra.mxu0 0
      %3364 = vmatprep.subr.bf16.mxu0 0
      %3365 = vmatpush1.bf16.msra.mxu0 0
      %3366 = vmatprep.subr.bf16.mxu0 0
      %3367 = vmatpush1.bf16.msra.mxu0 0
      %3368 = vmatprep.subr.bf16.mxu0 0
      %3369 = vmatpush1.bf16.msra.mxu0 0
      %3370 = vmatprep.subr.bf16.mxu0 0
      %3371 = vmatpush1.bf16.msra.mxu0 0
      %3372 = vmatprep.subr.bf16.mxu0 0
      %3373 = vmatpush1.bf16.msra.mxu0 0
      %3374 = vmatprep.subr.bf16.mxu0 0
      %3375 = vmatpush1.bf16.msra.mxu0 0
      %3376 = vmatprep.subr.bf16.mxu0 0
      %3377 = vmatpush1.bf16.msra.mxu0 0
      %3378 = vmatprep.subr.bf16.mxu0 0
      %3379 = vmatpush1.bf16.msra.mxu0 0
      %3380 = vmatprep.subr.bf16.mxu0 0
      %3381 = vmatpush1.bf16.msra.mxu0 0
      %3382 = vmatprep.subr.bf16.mxu0 0
      %3383 = vmatpush1.bf16.msra.mxu0 0
      %3384 = vmatprep.subr.bf16.mxu0 0
      %3385 = vmatpush1.bf16.msra.mxu0 0
      %3386 = vmatprep.mubr.bf16.mxu0 0
      %3387 = vmatmul.mubr.bf16.gmra.mrb[0].mxu0 %v3349
      %v3388 = vpop.f32.mrb[0].mxu0
      %v3389 = vadd.f32 0.0, %v3388
      %v3390 = vpop.f32.mrb[0].mxu0
      %v3391 = vpop.f32.mrb[0].mxu0
      %v3392 = vadd.f32 0.0, %v3391
      %v3393 = vpop.f32.mrb[0].mxu0
      %3394 = vmatprep.mubr.bf16.mxu0 0
      %3395 = vmatmul.mubr.bf16.gmra.mrb[0].mxu0 %v3352
      %v3396 = vpop.f32.mrb[0].mxu0
      %v3397 = vadd.f32 0.0, %v3396
      %v3398 = vpop.f32.mrb[0].mxu0
      %v3399 = vpop.f32.mrb[0].mxu0
      %v3400 = vpop.f32.mrb[0].mxu0
      %3401 = vdwg.mxu0
      %v3402 = vadd.f32 %v3307, %v3389
      %v3403 = vadd.f32 %v3308, %v3392
      %v3404 = vadd.f32 %v3309, %v3397
      %v3405 = vld [vmem:[#allocation2 + $0x2c] sm:$0xe]
      %v3406 = vld [vmem:[#allocation2 + $0x30] sm:$0xf]
      %v3407 = vld [vmem:[#allocation2 + $0x34] sm:$0xf]
      %v3408 = vld [vmem:[#allocation2 + $0x38] sm:$0x1]
      %s3409 = scalar_lea.vmem %s8, 352
      %v3410 = vld [vmem:[%s3409] sm:$0xf]
      %v3411 = vld [vmem:[%s3409 + $0x4] sm:$0xf]
      %v3412 = vld [vmem:[%s3409 + $0x8] sm:$0xf]
      %v3413 = vld [vmem:[%s3409 + $0xc] sm:$0xf]
      %v3414 = vld [vmem:[%s3409 + $0x10] sm:$0xf]
      %v3415 = vld [vmem:[%s3409 + $0x14] sm:$0xf]
      %v3416 = vld [vmem:[%s3409 + $0x18] sm:$0xf]
      %v3417 = vld [vmem:[%s3409 + $0x1c] sm:$0xf]
      %v3422 = vunpack.c.l.b16 %v3405
      %v3423 = vunpack.c.l.b16 %v3406
      %v3424 = vunpack.c.l.b16 %v3407
      %v3425 = vunpack.c.l.b16 %v3408
      %v3426 = vpack.c.b16 %v3423, %v3422
      %v3427 = vpack.c.b16 %v3425, %v3424
      %v3428 = vrot.slane %v3426, 1
      %v3429 = vrot.slane %v3427, 1
      %v3430 = vsel %vm1111, %v3428, %v3429
      %v3439 = vunpack.c.l.b16 %v3410
      %v3440 = vunpack.c.l.b16 %v3411
      %v3441 = vunpack.c.l.b16 %v3412
      %v3442 = vunpack.c.l.b16 %v3413
      %v3443 = vunpack.c.l.b16 %v3414
      %v3444 = vunpack.c.l.b16 %v3415
      %v3445 = vunpack.c.l.b16 %v3416
      %v3446 = vunpack.c.l.b16 %v3417
      %v3447 = vpack.c.b16 %v3440, %v3439
      %v3448 = vpack.c.b16 %v3442, %v3441
      %v3449 = vpack.c.b16 %v3444, %v3443
      %v3450 = vpack.c.b16 %v3446, %v3445
      %v3456 = vsel %vm1139, %v3430, 0
      %v3459 = vsel %vm1139, %v3429, 0
      %3461 = vmatprep.subr.bf16.mxu0 0
      %3462 = vmatpush1.bf16.msra.mxu0 %v3447
      %3463 = vmatprep.subr.bf16.mxu0 0
      %3464 = vmatpush1.bf16.msra.mxu0 %v3448
      %3465 = vmatprep.subr.bf16.mxu0 0
      %3466 = vmatpush1.bf16.msra.mxu0 %v3449
      %3467 = vmatprep.subr.bf16.mxu0 0
      %3468 = vmatpush1.bf16.msra.mxu0 %v3450
      %3469 = vmatprep.subr.bf16.mxu0 0
      %3470 = vmatpush1.bf16.msra.mxu0 0
      %3471 = vmatprep.subr.bf16.mxu0 0
      %3472 = vmatpush1.bf16.msra.mxu0 0
      %3473 = vmatprep.subr.bf16.mxu0 0
      %3474 = vmatpush1.bf16.msra.mxu0 0
      %3475 = vmatprep.subr.bf16.mxu0 0
      %3476 = vmatpush1.bf16.msra.mxu0 0
      %3477 = vmatprep.subr.bf16.mxu0 0
      %3478 = vmatpush1.bf16.msra.mxu0 0
      %3479 = vmatprep.subr.bf16.mxu0 0
      %3480 = vmatpush1.bf16.msra.mxu0 0
      %3481 = vmatprep.subr.bf16.mxu0 0
      %3482 = vmatpush1.bf16.msra.mxu0 0
      %3483 = vmatprep.subr.bf16.mxu0 0
      %3484 = vmatpush1.bf16.msra.mxu0 0
      %3485 = vmatprep.subr.bf16.mxu0 0
      %3486 = vmatpush1.bf16.msra.mxu0 0
      %3487 = vmatprep.subr.bf16.mxu0 0
      %3488 = vmatpush1.bf16.msra.mxu0 0
      %3489 = vmatprep.subr.bf16.mxu0 0
      %3490 = vmatpush1.bf16.msra.mxu0 0
      %3491 = vmatprep.subr.bf16.mxu0 0
      %3492 = vmatpush1.bf16.msra.mxu0 0
      %3493 = vmatprep.mubr.bf16.mxu0 0
      %3494 = vmatmul.mubr.bf16.gmra.mrb[0].mxu0 %v3456
      %v3495 = vpop.f32.mrb[0].mxu0
      %v3496 = vadd.f32 0.0, %v3495
      %v3497 = vpop.f32.mrb[0].mxu0
      %v3498 = vpop.f32.mrb[0].mxu0
      %v3499 = vadd.f32 0.0, %v3498
      %v3500 = vpop.f32.mrb[0].mxu0
      %3501 = vmatprep.mubr.bf16.mxu0 0
      %3502 = vmatmul.mubr.bf16.gmra.mrb[0].mxu0 %v3459
      %v3503 = vpop.f32.mrb[0].mxu0
      %v3504 = vadd.f32 0.0, %v3503
      %v3505 = vpop.f32.mrb[0].mxu0
      %v3506 = vpop.f32.mrb[0].mxu0
      %v3507 = vpop.f32.mrb[0].mxu0
      %3508 = vdwg.mxu0
      %v3509 = vadd.f32 %v3402, %v3496
      %v3510 = vadd.f32 %v3403, %v3499
      %v3511 = vadd.f32 %v3404, %v3504
      %v3512 = vld [vmem:[#allocation2 + $0x2c] sm:$0xc]
      %v3513 = vld [vmem:[#allocation2 + $0x38] sm:$0x3]
      %s3514 = scalar_lea.vmem %s8, 448
      %v3515 = vld [vmem:[%s3514] sm:$0xf]
      %v3516 = vld [vmem:[%s3514 + $0x4] sm:$0xf]
      %v3517 = vld [vmem:[%s3514 + $0x8] sm:$0xf]
      %v3518 = vld [vmem:[%s3514 + $0xc] sm:$0xf]
      %v3519 = vld [vmem:[%s3514 + $0x10] sm:$0xf]
      %v3520 = vld [vmem:[%s3514 + $0x14] sm:$0xf]
      %v3521 = vld [vmem:[%s3514 + $0x18] sm:$0xf]
      %v3522 = vld [vmem:[%s3514 + $0x1c] sm:$0xf]
      %v3525 = vunpack.c.l.b16 %v3512
      %v3526 = vunpack.c.l.b16 %v3513
      %v3527 = vpack.c.b16 %v3423, %v3525
      %v3528 = vpack.c.b16 %v3526, %v3424
      %v3529 = vrot.slane %v3527, 2
      %v3530 = vrot.slane %v3528, 2
      %v3531 = vsel %vm1293, %v3529, %v3530
      %v3540 = vunpack.c.l.b16 %v3515
      %v3541 = vunpack.c.l.b16 %v3516
      %v3542 = vunpack.c.l.b16 %v3517
      %v3543 = vunpack.c.l.b16 %v3518
      %v3544 = vunpack.c.l.b16 %v3519
      %v3545 = vunpack.c.l.b16 %v3520
      %v3546 = vunpack.c.l.b16 %v3521
      %v3547 = vunpack.c.l.b16 %v3522
      %v3548 = vpack.c.b16 %v3541, %v3540
      %v3549 = vpack.c.b16 %v3543, %v3542
      %v3550 = vpack.c.b16 %v3545, %v3544
      %v3551 = vpack.c.b16 %v3547, %v3546
      %v3557 = vsel %vm1139, %v3531, 0
      %v3560 = vsel %vm1139, %v3530, 0
      %3562 = vmatprep.subr.bf16.mxu0 0
      %3563 = vmatpush1.bf16.msra.mxu0 %v3548
      %3564 = vmatprep.subr.bf16.mxu0 0
      %3565 = vmatpush1.bf16.msra.mxu0 %v3549
      %3566 = vmatprep.subr.bf16.mxu0 0
      %3567 = vmatpush1.bf16.msra.mxu0 %v3550
      %3568 = vmatprep.subr.bf16.mxu0 0
      %3569 = vmatpush1.bf16.msra.mxu0 %v3551
      %3570 = vmatprep.subr.bf16.mxu0 0
      %3571 = vmatpush1.bf16.msra.mxu0 0
      %3572 = vmatprep.subr.bf16.mxu0 0
      %3573 = vmatpush1.bf16.msra.mxu0 0
      %3574 = vmatprep.subr.bf16.mxu0 0
      %3575 = vmatpush1.bf16.msra.mxu0 0
      %3576 = vmatprep.subr.bf16.mxu0 0
      %3577 = vmatpush1.bf16.msra.mxu0 0
      %3578 = vmatprep.subr.bf16.mxu0 0
      %3579 = vmatpush1.bf16.msra.mxu0 0
      %3580 = vmatprep.subr.bf16.mxu0 0
      %3581 = vmatpush1.bf16.msra.mxu0 0
      %3582 = vmatprep.subr.bf16.mxu0 0
      %3583 = vmatpush1.bf16.msra.mxu0 0
      %3584 = vmatprep.subr.bf16.mxu0 0
      %3585 = vmatpush1.bf16.msra.mxu0 0
      %3586 = vmatprep.subr.bf16.mxu0 0
      %3587 = vmatpush1.bf16.msra.mxu0 0
      %3588 = vmatprep.subr.bf16.mxu0 0
      %3589 = vmatpush1.bf16.msra.mxu0 0
      %3590 = vmatprep.subr.bf16.mxu0 0
      %3591 = vmatpush1.bf16.msra.mxu0 0
      %3592 = vmatprep.subr.bf16.mxu0 0
      %3593 = vmatpush1.bf16.msra.mxu0 0
      %3594 = vmatprep.mubr.bf16.mxu0 0
      %3595 = vmatmul.mubr.bf16.gmra.mrb[0].mxu0 %v3557
      %v3596 = vpop.f32.mrb[0].mxu0
      %v3597 = vadd.f32 0.0, %v3596
      %v3598 = vpop.f32.mrb[0].mxu0
      %v3599 = vpop.f32.mrb[0].mxu0
      %v3600 = vadd.f32 0.0, %v3599
      %v3601 = vpop.f32.mrb[0].mxu0
      %3602 = vmatprep.mubr.bf16.mxu0 0
      %3603 = vmatmul.mubr.bf16.gmra.mrb[0].mxu0 %v3560
      %v3604 = vpop.f32.mrb[0].mxu0
      %v3605 = vadd.f32 0.0, %v3604
      %v3606 = vpop.f32.mrb[0].mxu0
      %v3607 = vpop.f32.mrb[0].mxu0
      %v3608 = vpop.f32.mrb[0].mxu0
      %3609 = vdwg.mxu0
      %v3610 = vadd.f32 %v3509, %v3597
      %v3611 = vadd.f32 %v3510, %v3600
      %v3612 = vadd.f32 %v3511, %v3605
      %v3613 = vld [vmem:[#allocation2 + $0x2c] sm:$0x8]
      %v3614 = vld [vmem:[#allocation2 + $0x38] sm:$0x7]
      %s3615 = scalar_lea.vmem %s8, 544
      %v3616 = vld [vmem:[%s3615] sm:$0xf]
      %v3617 = vld [vmem:[%s3615 + $0x4] sm:$0xf]
      %v3618 = vld [vmem:[%s3615 + $0x8] sm:$0xf]
      %v3619 = vld [vmem:[%s3615 + $0xc] sm:$0xf]
      %v3620 = vld [vmem:[%s3615 + $0x10] sm:$0xf]
      %v3621 = vld [vmem:[%s3615 + $0x14] sm:$0xf]
      %v3622 = vld [vmem:[%s3615 + $0x18] sm:$0xf]
      %v3623 = vld [vmem:[%s3615 + $0x1c] sm:$0xf]
      %v3626 = vunpack.c.l.b16 %v3613
      %v3627 = vunpack.c.l.b16 %v3614
      %v3628 = vpack.c.b16 %v3423, %v3626
      %v3629 = vpack.c.b16 %v3627, %v3424
      %v3630 = vrot.slane %v3628, 3
      %v3631 = vrot.slane %v3629, 3
      %v3632 = vsel %vm1395, %v3630, %v3631
      %v3641 = vunpack.c.l.b16 %v3616
      %v3642 = vunpack.c.l.b16 %v3617
      %v3643 = vunpack.c.l.b16 %v3618
      %v3644 = vunpack.c.l.b16 %v3619
      %v3645 = vunpack.c.l.b16 %v3620
      %v3646 = vunpack.c.l.b16 %v3621
      %v3647 = vunpack.c.l.b16 %v3622
      %v3648 = vunpack.c.l.b16 %v3623
      %v3649 = vpack.c.b16 %v3642, %v3641
      %v3650 = vpack.c.b16 %v3644, %v3643
      %v3651 = vpack.c.b16 %v3646, %v3645
      %v3652 = vpack.c.b16 %v3648, %v3647
      %v3658 = vsel %vm1139, %v3632, 0
      %v3661 = vsel %vm1139, %v3631, 0
      %3663 = vmatprep.subr.bf16.mxu0 0
      %3664 = vmatpush1.bf16.msra.mxu0 %v3649
      %3665 = vmatprep.subr.bf16.mxu0 0
      %3666 = vmatpush1.bf16.msra.mxu0 %v3650
      %3667 = vmatprep.subr.bf16.mxu0 0
      %3668 = vmatpush1.bf16.msra.mxu0 %v3651
      %3669 = vmatprep.subr.bf16.mxu0 0
      %3670 = vmatpush1.bf16.msra.mxu0 %v3652
      %3671 = vmatprep.subr.bf16.mxu0 0
      %3672 = vmatpush1.bf16.msra.mxu0 0
      %3673 = vmatprep.subr.bf16.mxu0 0
      %3674 = vmatpush1.bf16.msra.mxu0 0
      %3675 = vmatprep.subr.bf16.mxu0 0
      %3676 = vmatpush1.bf16.msra.mxu0 0
      %3677 = vmatprep.subr.bf16.mxu0 0
      %3678 = vmatpush1.bf16.msra.mxu0 0
      %3679 = vmatprep.subr.bf16.mxu0 0
      %3680 = vmatpush1.bf16.msra.mxu0 0
      %3681 = vmatprep.subr.bf16.mxu0 0
      %3682 = vmatpush1.bf16.msra.mxu0 0
      %3683 = vmatprep.subr.bf16.mxu0 0
      %3684 = vmatpush1.bf16.msra.mxu0 0
      %3685 = vmatprep.subr.bf16.mxu0 0
      %3686 = vmatpush1.bf16.msra.mxu0 0
      %3687 = vmatprep.subr.bf16.mxu0 0
      %3688 = vmatpush1.bf16.msra.mxu0 0
      %3689 = vmatprep.subr.bf16.mxu0 0
      %3690 = vmatpush1.bf16.msra.mxu0 0
      %3691 = vmatprep.subr.bf16.mxu0 0
      %3692 = vmatpush1.bf16.msra.mxu0 0
      %3693 = vmatprep.subr.bf16.mxu0 0
      %3694 = vmatpush1.bf16.msra.mxu0 0
      %3695 = vmatprep.mubr.bf16.mxu0 0
      %3696 = vmatmul.mubr.bf16.gmra.mrb[0].mxu0 %v3658
      %v3697 = vpop.f32.mrb[0].mxu0
      %v3698 = vadd.f32 0.0, %v3697
      %v3699 = vpop.f32.mrb[0].mxu0
      %v3700 = vpop.f32.mrb[0].mxu0
      %v3701 = vadd.f32 0.0, %v3700
      %v3702 = vpop.f32.mrb[0].mxu0
      %3703 = vmatprep.mubr.bf16.mxu0 0
      %3704 = vmatmul.mubr.bf16.gmra.mrb[0].mxu0 %v3661
      %v3705 = vpop.f32.mrb[0].mxu0
      %v3706 = vadd.f32 0.0, %v3705
      %v3707 = vpop.f32.mrb[0].mxu0
      %v3708 = vpop.f32.mrb[0].mxu0
      %v3709 = vpop.f32.mrb[0].mxu0
      %3710 = vdwg.mxu0
      %v3711 = vadd.f32 %v3610, %v3698
      %v3712 = vadd.f32 %v3611, %v3701
      %v3713 = vadd.f32 %v3612, %v3706
      %v3714 = vld [vmem:[#allocation2 + $0x38] sm:$0xf]
      %s3715 = scalar_lea.vmem %s8, 640
      %v3716 = vld [vmem:[%s3715] sm:$0xf]
      %v3717 = vld [vmem:[%s3715 + $0x4] sm:$0xf]
      %v3718 = vld [vmem:[%s3715 + $0x8] sm:$0xf]
      %v3719 = vld [vmem:[%s3715 + $0xc] sm:$0xf]
      %v3720 = vld [vmem:[%s3715 + $0x10] sm:$0xf]
      %v3721 = vld [vmem:[%s3715 + $0x14] sm:$0xf]
      %v3722 = vld [vmem:[%s3715 + $0x18] sm:$0xf]
      %v3723 = vld [vmem:[%s3715 + $0x1c] sm:$0xf]
      %v3725 = vunpack.c.l.b16 %v3714
      %v3726 = vpack.c.b16 %v3424, %v3423
      %v3727 = vpack.c.b16 %v3725, %v3725
      %v3736 = vunpack.c.l.b16 %v3716
      %v3737 = vunpack.c.l.b16 %v3717
      %v3738 = vunpack.c.l.b16 %v3718
      %v3739 = vunpack.c.l.b16 %v3719
      %v3740 = vunpack.c.l.b16 %v3720
      %v3741 = vunpack.c.l.b16 %v3721
      %v3742 = vunpack.c.l.b16 %v3722
      %v3743 = vunpack.c.l.b16 %v3723
      %v3744 = vpack.c.b16 %v3737, %v3736
      %v3745 = vpack.c.b16 %v3739, %v3738
      %v3746 = vpack.c.b16 %v3741, %v3740
      %v3747 = vpack.c.b16 %v3743, %v3742
      %v3753 = vsel %vm1139, %v3726, 0
      %v3756 = vsel %vm1139, %v3727, 0
      %3758 = vmatprep.subr.bf16.mxu0 0
      %3759 = vmatpush1.bf16.msra.mxu0 %v3744
      %3760 = vmatprep.subr.bf16.mxu0 0
      %3761 = vmatpush1.bf16.msra.mxu0 %v3745
      %3762 = vmatprep.subr.bf16.mxu0 0
      %3763 = vmatpush1.bf16.msra.mxu0 %v3746
      %3764 = vmatprep.subr.bf16.mxu0 0
      %3765 = vmatpush1.bf16.msra.mxu0 %v3747
      %3766 = vmatprep.subr.bf16.mxu0 0
      %3767 = vmatpush1.bf16.msra.mxu0 0
      %3768 = vmatprep.subr.bf16.mxu0 0
      %3769 = vmatpush1.bf16.msra.mxu0 0
      %3770 = vmatprep.subr.bf16.mxu0 0
      %3771 = vmatpush1.bf16.msra.mxu0 0
      %3772 = vmatprep.subr.bf16.mxu0 0
      %3773 = vmatpush1.bf16.msra.mxu0 0
      %3774 = vmatprep.subr.bf16.mxu0 0
      %3775 = vmatpush1.bf16.msra.mxu0 0
      %3776 = vmatprep.subr.bf16.mxu0 0
      %3777 = vmatpush1.bf16.msra.mxu0 0
      %3778 = vmatprep.subr.bf16.mxu0 0
      %3779 = vmatpush1.bf16.msra.mxu0 0
      %3780 = vmatprep.subr.bf16.mxu0 0
      %3781 = vmatpush1.bf16.msra.mxu0 0
      %3782 = vmatprep.subr.bf16.mxu0 0
      %3783 = vmatpush1.bf16.msra.mxu0 0
      %3784 = vmatprep.subr.bf16.mxu0 0
      %3785 = vmatpush1.bf16.msra.mxu0 0
      %3786 = vmatprep.subr.bf16.mxu0 0
      %3787 = vmatpush1.bf16.msra.mxu0 0
      %3788 = vmatprep.subr.bf16.mxu0 0
      %3789 = vmatpush1.bf16.msra.mxu0 0
      %3790 = vmatprep.mubr.bf16.mxu0 0
      %3791 = vmatmul.mubr.bf16.gmra.mrb[0].mxu0 %v3753
      %v3792 = vpop.f32.mrb[0].mxu0
      %v3793 = vadd.f32 0.0, %v3792
      %v3794 = vpop.f32.mrb[0].mxu0
      %v3795 = vpop.f32.mrb[0].mxu0
      %v3796 = vadd.f32 0.0, %v3795
      %v3797 = vpop.f32.mrb[0].mxu0
      %3798 = vmatprep.mubr.bf16.mxu0 0
      %3799 = vmatmul.mubr.bf16.gmra.mrb[0].mxu0 %v3756
      %v3800 = vpop.f32.mrb[0].mxu0
      %v3801 = vadd.f32 0.0, %v3800
      %v3802 = vpop.f32.mrb[0].mxu0
      %v3803 = vpop.f32.mrb[0].mxu0
      %v3804 = vpop.f32.mrb[0].mxu0
      %3805 = vdwg.mxu0
      %v3806 = vadd.f32 %v3711, %v3793
      %v3807 = vadd.f32 %v3712, %v3796
      %v3808 = vadd.f32 %v3713, %v3801
      %v3809 = vld [vmem:[#allocation2 + $0x30] sm:$0xe]
      %v3810 = vld [vmem:[#allocation2 + $0x34] sm:$0xf]
      %v3811 = vld [vmem:[#allocation2 + $0x38] sm:$0xf]
      %v3812 = vld [vmem:[#allocation2 + $0x3c] sm:$0x1]
      %s3813 = scalar_lea.vmem %s8, 736
      %v3814 = vld [vmem:[%s3813] sm:$0xf]
      %v3815 = vld [vmem:[%s3813 + $0x4] sm:$0xf]
      %v3816 = vld [vmem:[%s3813 + $0x8] sm:$0xf]
      %v3817 = vld [vmem:[%s3813 + $0xc] sm:$0xf]
      %v3818 = vld [vmem:[%s3813 + $0x10] sm:$0xf]
      %v3819 = vld [vmem:[%s3813 + $0x14] sm:$0xf]
      %v3820 = vld [vmem:[%s3813 + $0x18] sm:$0xf]
      %v3821 = vld [vmem:[%s3813 + $0x1c] sm:$0xf]
      %v3826 = vunpack.c.l.b16 %v3809
      %v3827 = vunpack.c.l.b16 %v3810
      %v3828 = vunpack.c.l.b16 %v3811
      %v3829 = vunpack.c.l.b16 %v3812
      %v3830 = vpack.c.b16 %v3827, %v3826
      %v3831 = vpack.c.b16 %v3829, %v3828
      %v3832 = vrot.slane %v3830, 1
      %v3833 = vrot.slane %v3831, 1
      %v3834 = vsel %vm1111, %v3832, %v3833
      %v3843 = vunpack.c.l.b16 %v3814
      %v3844 = vunpack.c.l.b16 %v3815
      %v3845 = vunpack.c.l.b16 %v3816
      %v3846 = vunpack.c.l.b16 %v3817
      %v3847 = vunpack.c.l.b16 %v3818
      %v3848 = vunpack.c.l.b16 %v3819
      %v3849 = vunpack.c.l.b16 %v3820
      %v3850 = vunpack.c.l.b16 %v3821
      %v3851 = vpack.c.b16 %v3844, %v3843
      %v3852 = vpack.c.b16 %v3846, %v3845
      %v3853 = vpack.c.b16 %v3848, %v3847
      %v3854 = vpack.c.b16 %v3850, %v3849
      %v3860 = vsel %vm1139, %v3834, 0
      %v3863 = vsel %vm1139, %v3833, 0
      %3865 = vmatprep.subr.bf16.mxu0 0
      %3866 = vmatpush1.bf16.msra.mxu0 %v3851
      %3867 = vmatprep.subr.bf16.mxu0 0
      %3868 = vmatpush1.bf16.msra.mxu0 %v3852
      %3869 = vmatprep.subr.bf16.mxu0 0
      %3870 = vmatpush1.bf16.msra.mxu0 %v3853
      %3871 = vmatprep.subr.bf16.mxu0 0
      %3872 = vmatpush1.bf16.msra.mxu0 %v3854
      %3873 = vmatprep.subr.bf16.mxu0 0
      %3874 = vmatpush1.bf16.msra.mxu0 0
      %3875 = vmatprep.subr.bf16.mxu0 0
      %3876 = vmatpush1.bf16.msra.mxu0 0
      %3877 = vmatprep.subr.bf16.mxu0 0
      %3878 = vmatpush1.bf16.msra.mxu0 0
      %3879 = vmatprep.subr.bf16.mxu0 0
      %3880 = vmatpush1.bf16.msra.mxu0 0
      %3881 = vmatprep.subr.bf16.mxu0 0
      %3882 = vmatpush1.bf16.msra.mxu0 0
      %3883 = vmatprep.subr.bf16.mxu0 0
      %3884 = vmatpush1.bf16.msra.mxu0 0
      %3885 = vmatprep.subr.bf16.mxu0 0
      %3886 = vmatpush1.bf16.msra.mxu0 0
      %3887 = vmatprep.subr.bf16.mxu0 0
      %3888 = vmatpush1.bf16.msra.mxu0 0
      %3889 = vmatprep.subr.bf16.mxu0 0
      %3890 = vmatpush1.bf16.msra.mxu0 0
      %3891 = vmatprep.subr.bf16.mxu0 0
      %3892 = vmatpush1.bf16.msra.mxu0 0
      %3893 = vmatprep.subr.bf16.mxu0 0
      %3894 = vmatpush1.bf16.msra.mxu0 0
      %3895 = vmatprep.subr.bf16.mxu0 0
      %3896 = vmatpush1.bf16.msra.mxu0 0
      %3897 = vmatprep.mubr.bf16.mxu0 0
      %3898 = vmatmul.mubr.bf16.gmra.mrb[0].mxu0 %v3860
      %v3899 = vpop.f32.mrb[0].mxu0
      %v3900 = vadd.f32 0.0, %v3899
      %v3901 = vpop.f32.mrb[0].mxu0
      %v3902 = vpop.f32.mrb[0].mxu0
      %v3903 = vadd.f32 0.0, %v3902
      %v3904 = vpop.f32.mrb[0].mxu0
      %3905 = vmatprep.mubr.bf16.mxu0 0
      %3906 = vmatmul.mubr.bf16.gmra.mrb[0].mxu0 %v3863
      %v3907 = vpop.f32.mrb[0].mxu0
      %v3908 = vadd.f32 0.0, %v3907
      %v3909 = vpop.f32.mrb[0].mxu0
      %v3910 = vpop.f32.mrb[0].mxu0
      %v3911 = vpop.f32.mrb[0].mxu0
      %3912 = vdwg.mxu0
      %v3913 = vadd.f32 %v3806, %v3900
      %v3914 = vadd.f32 %v3807, %v3903
      %v3915 = vadd.f32 %v3808, %v3908
      %v3916 = vld [vmem:[#allocation2 + $0x30] sm:$0xc]
      %v3917 = vld [vmem:[#allocation2 + $0x3c] sm:$0x3]
      %s3918 = scalar_lea.vmem %s8, 832
      %v3919 = vld [vmem:[%s3918] sm:$0xf]
      %v3920 = vld [vmem:[%s3918 + $0x4] sm:$0xf]
      %v3921 = vld [vmem:[%s3918 + $0x8] sm:$0xf]
      %v3922 = vld [vmem:[%s3918 + $0xc] sm:$0xf]
      %v3923 = vld [vmem:[%s3918 + $0x10] sm:$0xf]
      %v3924 = vld [vmem:[%s3918 + $0x14] sm:$0xf]
      %v3925 = vld [vmem:[%s3918 + $0x18] sm:$0xf]
      %v3926 = vld [vmem:[%s3918 + $0x1c] sm:$0xf]
      %v3929 = vunpack.c.l.b16 %v3916
      %v3930 = vunpack.c.l.b16 %v3917
      %v3931 = vpack.c.b16 %v3827, %v3929
      %v3932 = vpack.c.b16 %v3930, %v3828
      %v3933 = vrot.slane %v3931, 2
      %v3934 = vrot.slane %v3932, 2
      %v3935 = vsel %vm1293, %v3933, %v3934
      %v3944 = vunpack.c.l.b16 %v3919
      %v3945 = vunpack.c.l.b16 %v3920
      %v3946 = vunpack.c.l.b16 %v3921
      %v3947 = vunpack.c.l.b16 %v3922
      %v3948 = vunpack.c.l.b16 %v3923
      %v3949 = vunpack.c.l.b16 %v3924
      %v3950 = vunpack.c.l.b16 %v3925
      %v3951 = vunpack.c.l.b16 %v3926
      %v3952 = vpack.c.b16 %v3945, %v3944
      %v3953 = vpack.c.b16 %v3947, %v3946
      %v3954 = vpack.c.b16 %v3949, %v3948
      %v3955 = vpack.c.b16 %v3951, %v3950
      %v3961 = vsel %vm1139, %v3935, 0
      %v3964 = vsel %vm1139, %v3934, 0
      %3966 = vmatprep.subr.bf16.mxu0 0
      %3967 = vmatpush1.bf16.msra.mxu0 %v3952
      %3968 = vmatprep.subr.bf16.mxu0 0
      %3969 = vmatpush1.bf16.msra.mxu0 %v3953
      %3970 = vmatprep.subr.bf16.mxu0 0
      %3971 = vmatpush1.bf16.msra.mxu0 %v3954
      %3972 = vmatprep.subr.bf16.mxu0 0
      %3973 = vmatpush1.bf16.msra.mxu0 %v3955
      %3974 = vmatprep.subr.bf16.mxu0 0
      %3975 = vmatpush1.bf16.msra.mxu0 0
      %3976 = vmatprep.subr.bf16.mxu0 0
      %3977 = vmatpush1.bf16.msra.mxu0 0
      %3978 = vmatprep.subr.bf16.mxu0 0
      %3979 = vmatpush1.bf16.msra.mxu0 0
      %3980 = vmatprep.subr.bf16.mxu0 0
      %3981 = vmatpush1.bf16.msra.mxu0 0
      %3982 = vmatprep.subr.bf16.mxu0 0
      %3983 = vmatpush1.bf16.msra.mxu0 0
      %3984 = vmatprep.subr.bf16.mxu0 0
      %3985 = vmatpush1.bf16.msra.mxu0 0
      %3986 = vmatprep.subr.bf16.mxu0 0
      %3987 = vmatpush1.bf16.msra.mxu0 0
      %3988 = vmatprep.subr.bf16.mxu0 0
      %3989 = vmatpush1.bf16.msra.mxu0 0
      %3990 = vmatprep.subr.bf16.mxu0 0
      %3991 = vmatpush1.bf16.msra.mxu0 0
      %3992 = vmatprep.subr.bf16.mxu0 0
      %3993 = vmatpush1.bf16.msra.mxu0 0
      %3994 = vmatprep.subr.bf16.mxu0 0
      %3995 = vmatpush1.bf16.msra.mxu0 0
      %3996 = vmatprep.subr.bf16.mxu0 0
      %3997 = vmatpush1.bf16.msra.mxu0 0
      %3998 = vmatprep.mubr.bf16.mxu0 0
      %3999 = vmatmul.mubr.bf16.gmra.mrb[0].mxu0 %v3961
      %v4000 = vpop.f32.mrb[0].mxu0
      %v4001 = vadd.f32 0.0, %v4000
      %v4002 = vpop.f32.mrb[0].mxu0
      %v4003 = vpop.f32.mrb[0].mxu0
      %v4004 = vadd.f32 0.0, %v4003
      %v4005 = vpop.f32.mrb[0].mxu0
      %4006 = vmatprep.mubr.bf16.mxu0 0
      %4007 = vmatmul.mubr.bf16.gmra.mrb[0].mxu0 %v3964
      %v4008 = vpop.f32.mrb[0].mxu0
      %v4009 = vadd.f32 0.0, %v4008
      %v4010 = vpop.f32.mrb[0].mxu0
      %v4011 = vpop.f32.mrb[0].mxu0
      %v4012 = vpop.f32.mrb[0].mxu0
      %4013 = vdwg.mxu0
      %v4014 = vadd.f32 %v3913, %v4001
      %v4015 = vadd.f32 %v3914, %v4004
      %v4016 = vadd.f32 %v3915, %v4009
      %v4017 = vld [vmem:[#allocation2 + $0x30] sm:$0x8]
      %v4018 = vld [vmem:[#allocation2 + $0x3c] sm:$0x7]
      %s4019 = scalar_lea.vmem %s8, 928
      %v4020 = vld [vmem:[%s4019] sm:$0xf]
      %v4021 = vld [vmem:[%s4019 + $0x4] sm:$0xf]
      %v4022 = vld [vmem:[%s4019 + $0x8] sm:$0xf]
      %v4023 = vld [vmem:[%s4019 + $0xc] sm:$0xf]
      %v4024 = vld [vmem:[%s4019 + $0x10] sm:$0xf]
      %v4025 = vld [vmem:[%s4019 + $0x14] sm:$0xf]
      %v4026 = vld [vmem:[%s4019 + $0x18] sm:$0xf]
      %v4027 = vld [vmem:[%s4019 + $0x1c] sm:$0xf]
      %v4030 = vunpack.c.l.b16 %v4017
      %v4031 = vunpack.c.l.b16 %v4018
      %v4032 = vpack.c.b16 %v3827, %v4030
      %v4033 = vpack.c.b16 %v4031, %v3828
      %v4034 = vrot.slane %v4032, 3
      %v4035 = vrot.slane %v4033, 3
      %v4036 = vsel %vm1395, %v4034, %v4035
      %v4045 = vunpack.c.l.b16 %v4020
      %v4046 = vunpack.c.l.b16 %v4021
      %v4047 = vunpack.c.l.b16 %v4022
      %v4048 = vunpack.c.l.b16 %v4023
      %v4049 = vunpack.c.l.b16 %v4024
      %v4050 = vunpack.c.l.b16 %v4025
      %v4051 = vunpack.c.l.b16 %v4026
      %v4052 = vunpack.c.l.b16 %v4027
      %v4053 = vpack.c.b16 %v4046, %v4045
      %v4054 = vpack.c.b16 %v4048, %v4047
      %v4055 = vpack.c.b16 %v4050, %v4049
      %v4056 = vpack.c.b16 %v4052, %v4051
      %v4062 = vsel %vm1139, %v4036, 0
      %v4065 = vsel %vm1139, %v4035, 0
      %4067 = vmatprep.subr.bf16.mxu0 0
      %4068 = vmatpush1.bf16.msra.mxu0 %v4053
      %4069 = vmatprep.subr.bf16.mxu0 0
      %4070 = vmatpush1.bf16.msra.mxu0 %v4054
      %4071 = vmatprep.subr.bf16.mxu0 0
      %4072 = vmatpush1.bf16.msra.mxu0 %v4055
      %4073 = vmatprep.subr.bf16.mxu0 0
      %4074 = vmatpush1.bf16.msra.mxu0 %v4056
      %4075 = vmatprep.subr.bf16.mxu0 0
      %4076 = vmatpush1.bf16.msra.mxu0 0
      %4077 = vmatprep.subr.bf16.mxu0 0
      %4078 = vmatpush1.bf16.msra.mxu0 0
      %4079 = vmatprep.subr.bf16.mxu0 0
      %4080 = vmatpush1.bf16.msra.mxu0 0
      %4081 = vmatprep.subr.bf16.mxu0 0
      %4082 = vmatpush1.bf16.msra.mxu0 0
      %4083 = vmatprep.subr.bf16.mxu0 0
      %4084 = vmatpush1.bf16.msra.mxu0 0
      %4085 = vmatprep.subr.bf16.mxu0 0
      %4086 = vmatpush1.bf16.msra.mxu0 0
      %4087 = vmatprep.subr.bf16.mxu0 0
      %4088 = vmatpush1.bf16.msra.mxu0 0
      %4089 = vmatprep.subr.bf16.mxu0 0
      %4090 = vmatpush1.bf16.msra.mxu0 0
      %4091 = vmatprep.subr.bf16.mxu0 0
      %4092 = vmatpush1.bf16.msra.mxu0 0
      %4093 = vmatprep.subr.bf16.mxu0 0
      %4094 = vmatpush1.bf16.msra.mxu0 0
      %4095 = vmatprep.subr.bf16.mxu0 0
      %4096 = vmatpush1.bf16.msra.mxu0 0
      %4097 = vmatprep.subr.bf16.mxu0 0
      %4098 = vmatpush1.bf16.msra.mxu0 0
      %4099 = vmatprep.mubr.bf16.mxu0 0
      %4100 = vmatmul.mubr.bf16.gmra.mrb[0].mxu0 %v4062
      %v4101 = vpop.f32.mrb[0].mxu0
      %v4102 = vadd.f32 0.0, %v4101
      %v4103 = vpop.f32.mrb[0].mxu0
      %v4104 = vpop.f32.mrb[0].mxu0
      %v4105 = vadd.f32 0.0, %v4104
      %v4106 = vpop.f32.mrb[0].mxu0
      %4107 = vmatprep.mubr.bf16.mxu0 0
      %4108 = vmatmul.mubr.bf16.gmra.mrb[0].mxu0 %v4065
      %v4109 = vpop.f32.mrb[0].mxu0
      %v4110 = vadd.f32 0.0, %v4109
      %v4111 = vpop.f32.mrb[0].mxu0
      %v4112 = vpop.f32.mrb[0].mxu0
      %v4113 = vpop.f32.mrb[0].mxu0
      %4114 = vdwg.mxu0
      %v4115 = vadd.f32 %v4014, %v4102
      %v4116 = vadd.f32 %v4015, %v4105
      %v4117 = vadd.f32 %v4016, %v4110
      %v4118 = vld [vmem:[%s9] sm:$0x1]
      %v4120 = vlaneseq
      %v4121 = vshrl.u32 %v4120, 7
      %v4122 = vsub.s32 0, %v4121
      %v4123 = vrot.slane %v4118, %v4122
      %v4125 = vadd.f32 %v4115, %v4123
      %v4126 = vadd.f32 %v4116, %v4123
      %v4127 = vadd.f32 %v4117, %v4123
      %v4128 = vmax.f32 %v4125, 0.0
      %v4129 = vmax.f32 %v4126, 0.0
      %v4130 = vmax.f32 %v4127, 0.0
      %v4131 = vpack.c.bf16 %v4129, %v4128
      %v4132 = vpack.c.bf16 %v4130, %v4130
      %v4135 = vunpack.c.l.b16 %v4131
      %v4136 = vunpack.c.h.b16 %v4131
      %v4137 = vunpack.c.l.b16 %v4132
      %v4138 = vpack.c.b16 %v4135, %v4135
      %v4139 = vpack.c.b16 %v4136, %v4136
      %v4140 = vpack.c.b16 %v4137, %v4137
      %vm4144 = vcmask 257024
      %4145 = vst.msk [vmem:[#allocation3] sm:$0xf] %vm4144, %v4138
      %4146 = vst.msk [vmem:[#allocation3 + $0x4] sm:$0xf] %vm4144, %v4139
      %4147 = vst.msk [vmem:[#allocation3 + $0x8] sm:$0xf] %vm4144, %v4140
      %v4148 = vld [vmem:[#allocation3] sm:$0x7]
      %v4149 = vld [vmem:[%s10] sm:$0xf]
      %v4150 = vld [vmem:[%s10 + $0x4] sm:$0xf]
      %v4151 = vld [vmem:[%s10 + $0x8] sm:$0xf]
      %v4152 = vld [vmem:[%s10 + $0xc] sm:$0xf]
      %v4153 = vld [vmem:[#allocation3] sm:$0xe]
      %s4154 = scalar_lea.vmem %s10, 16
      %v4155 = vld [vmem:[%s4154] sm:$0xf]
      %v4156 = vld [vmem:[%s4154 + $0x4] sm:$0xf]
      %v4157 = vld [vmem:[%s4154 + $0x8] sm:$0xf]
      %v4158 = vld [vmem:[%s4154 + $0xc] sm:$0xf]
      %v4160 = vunpack.c.l.b16 %v4153
      %v4161 = vpack.c.b16 %v4160, %v4160
      %v4162 = vrot.slane %v4161, 1
      %v4167 = vunpack.c.l.b16 %v4155
      %v4168 = vunpack.c.l.b16 %v4156
      %v4169 = vunpack.c.l.b16 %v4157
      %v4170 = vunpack.c.l.b16 %v4158
      %v4171 = vpack.c.b16 %v4168, %v4167
      %v4172 = vpack.c.b16 %v4170, %v4169
      %v4176 = vsel %vm577, %v4162, 0
      %4178 = vmatprep.subr.bf16.mxu0 0
      %4179 = vmatpush1.bf16.msra.mxu0 %v4171
      %4180 = vmatprep.subr.bf16.mxu0 0
      %4181 = vmatpush1.bf16.msra.mxu0 %v4172
      %4182 = vmatprep.subr.bf16.mxu0 0
      %4183 = vmatpush1.bf16.msra.mxu0 0
      %4184 = vmatprep.subr.bf16.mxu0 0
      %4185 = vmatpush1.bf16.msra.mxu0 0
      %4186 = vmatprep.subr.bf16.mxu0 0
      %4187 = vmatpush1.bf16.msra.mxu0 0
      %4188 = vmatprep.subr.bf16.mxu0 0
      %4189 = vmatpush1.bf16.msra.mxu0 0
      %4190 = vmatprep.subr.bf16.mxu0 0
      %4191 = vmatpush1.bf16.msra.mxu0 0
      %4192 = vmatprep.subr.bf16.mxu0 0
      %4193 = vmatpush1.bf16.msra.mxu0 0
      %4194 = vmatprep.subr.bf16.mxu0 0
      %4195 = vmatpush1.bf16.msra.mxu0 0
      %4196 = vmatprep.subr.bf16.mxu0 0
      %4197 = vmatpush1.bf16.msra.mxu0 0
      %4198 = vmatprep.subr.bf16.mxu0 0
      %4199 = vmatpush1.bf16.msra.mxu0 0
      %4200 = vmatprep.subr.bf16.mxu0 0
      %4201 = vmatpush1.bf16.msra.mxu0 0
      %4202 = vmatprep.subr.bf16.mxu0 0
      %4203 = vmatpush1.bf16.msra.mxu0 0
      %4204 = vmatprep.subr.bf16.mxu0 0
      %4205 = vmatpush1.bf16.msra.mxu0 0
      %4206 = vmatprep.subr.bf16.mxu0 0
      %4207 = vmatpush1.bf16.msra.mxu0 0
      %4208 = vmatprep.subr.bf16.mxu0 0
      %4209 = vmatpush1.bf16.msra.mxu0 0
      %4210 = vmatprep.mubr.bf16.mxu0 0
      %4211 = vmatmul.mubr.bf16.gmra.mrb[0].mxu0 %v4176
      %v4212 = vpop.f32.mrb[0].mxu0
      %v4213 = vadd.f32 0.0, %v4212
      %v4214 = vpop.f32.mrb[0].mxu0
      %v4215 = vpop.f32.mrb[0].mxu0
      %v4216 = vpop.f32.mrb[0].mxu0
      %4217 = vdwg.mxu0
      %v4222 = vunpack.c.l.b16 %v4149
      %v4223 = vunpack.c.l.b16 %v4150
      %v4224 = vunpack.c.l.b16 %v4151
      %v4225 = vunpack.c.l.b16 %v4152
      %v4226 = vpack.c.b16 %v4223, %v4222
      %v4227 = vpack.c.b16 %v4225, %v4224
      %v4231 = vsel %vm577, %v4148, 0
      %4233 = vmatprep.subr.bf16.mxu0 0
      %4234 = vmatpush1.bf16.msra.mxu0 %v4226
      %4235 = vmatprep.subr.bf16.mxu0 0
      %4236 = vmatpush1.bf16.msra.mxu0 %v4227
      %4237 = vmatprep.subr.bf16.mxu0 0
      %4238 = vmatpush1.bf16.msra.mxu0 0
      %4239 = vmatprep.subr.bf16.mxu0 0
      %4240 = vmatpush1.bf16.msra.mxu0 0
      %4241 = vmatprep.subr.bf16.mxu0 0
      %4242 = vmatpush1.bf16.msra.mxu0 0
      %4243 = vmatprep.subr.bf16.mxu0 0
      %4244 = vmatpush1.bf16.msra.mxu0 0
      %4245 = vmatprep.subr.bf16.mxu0 0
      %4246 = vmatpush1.bf16.msra.mxu0 0
      %4247 = vmatprep.subr.bf16.mxu0 0
      %4248 = vmatpush1.bf16.msra.mxu0 0
      %4249 = vmatprep.subr.bf16.mxu0 0
      %4250 = vmatpush1.bf16.msra.mxu0 0
      %4251 = vmatprep.subr.bf16.mxu0 0
      %4252 = vmatpush1.bf16.msra.mxu0 0
      %4253 = vmatprep.subr.bf16.mxu0 0
      %4254 = vmatpush1.bf16.msra.mxu0 0
      %4255 = vmatprep.subr.bf16.mxu0 0
      %4256 = vmatpush1.bf16.msra.mxu0 0
      %4257 = vmatprep.subr.bf16.mxu0 0
      %4258 = vmatpush1.bf16.msra.mxu0 0
      %4259 = vmatprep.subr.bf16.mxu0 0
      %4260 = vmatpush1.bf16.msra.mxu0 0
      %4261 = vmatprep.subr.bf16.mxu0 0
      %4262 = vmatpush1.bf16.msra.mxu0 0
      %4263 = vmatprep.subr.bf16.mxu0 0
      %4264 = vmatpush1.bf16.msra.mxu0 0
      %4265 = vmatprep.mubr.bf16.mxu0 0
      %4266 = vmatmul.mubr.bf16.gmra.mrb[0].mxu0 %v4231
      %v4267 = vpop.f32.mrb[0].mxu0
      %v4268 = vadd.f32 %v4213, %v4267
      %v4269 = vpop.f32.mrb[0].mxu0
      %v4270 = vpop.f32.mrb[0].mxu0
      %v4271 = vpop.f32.mrb[0].mxu0
      %4272 = vdwg.mxu0
      %v4273 = vld [vmem:[#allocation3] sm:$0xc]
      %v4274 = vld [vmem:[#allocation3 + $0x4] sm:$0x1]
      %s4275 = scalar_lea.vmem %s10, 32
      %v4276 = vld [vmem:[%s4275] sm:$0xf]
      %v4277 = vld [vmem:[%s4275 + $0x4] sm:$0xf]
      %v4278 = vld [vmem:[%s4275 + $0x8] sm:$0xf]
      %v4279 = vld [vmem:[%s4275 + $0xc] sm:$0xf]
      %v4282 = vunpack.c.l.b16 %v4273
      %v4283 = vunpack.c.l.b16 %v4274
      %v4284 = vpack.c.b16 %v4283, %v4282
      %v4285 = vrot.slane %v4284, 2
      %v4290 = vunpack.c.l.b16 %v4276
      %v4291 = vunpack.c.l.b16 %v4277
      %v4292 = vunpack.c.l.b16 %v4278
      %v4293 = vunpack.c.l.b16 %v4279
      %v4294 = vpack.c.b16 %v4291, %v4290
      %v4295 = vpack.c.b16 %v4293, %v4292
      %v4299 = vsel %vm577, %v4285, 0
      %4301 = vmatprep.subr.bf16.mxu0 0
      %4302 = vmatpush1.bf16.msra.mxu0 %v4294
      %4303 = vmatprep.subr.bf16.mxu0 0
      %4304 = vmatpush1.bf16.msra.mxu0 %v4295
      %4305 = vmatprep.subr.bf16.mxu0 0
      %4306 = vmatpush1.bf16.msra.mxu0 0
      %4307 = vmatprep.subr.bf16.mxu0 0
      %4308 = vmatpush1.bf16.msra.mxu0 0
      %4309 = vmatprep.subr.bf16.mxu0 0
      %4310 = vmatpush1.bf16.msra.mxu0 0
      %4311 = vmatprep.subr.bf16.mxu0 0
      %4312 = vmatpush1.bf16.msra.mxu0 0
      %4313 = vmatprep.subr.bf16.mxu0 0
      %4314 = vmatpush1.bf16.msra.mxu0 0
      %4315 = vmatprep.subr.bf16.mxu0 0
      %4316 = vmatpush1.bf16.msra.mxu0 0
      %4317 = vmatprep.subr.bf16.mxu0 0
      %4318 = vmatpush1.bf16.msra.mxu0 0
      %4319 = vmatprep.subr.bf16.mxu0 0
      %4320 = vmatpush1.bf16.msra.mxu0 0
      %4321 = vmatprep.subr.bf16.mxu0 0
      %4322 = vmatpush1.bf16.msra.mxu0 0
      %4323 = vmatprep.subr.bf16.mxu0 0
      %4324 = vmatpush1.bf16.msra.mxu0 0
      %4325 = vmatprep.subr.bf16.mxu0 0
      %4326 = vmatpush1.bf16.msra.mxu0 0
      %4327 = vmatprep.subr.bf16.mxu0 0
      %4328 = vmatpush1.bf16.msra.mxu0 0
      %4329 = vmatprep.subr.bf16.mxu0 0
      %4330 = vmatpush1.bf16.msra.mxu0 0
      %4331 = vmatprep.subr.bf16.mxu0 0
      %4332 = vmatpush1.bf16.msra.mxu0 0
      %4333 = vmatprep.mubr.bf16.mxu0 0
      %4334 = vmatmul.mubr.bf16.gmra.mrb[0].mxu0 %v4299
      %v4335 = vpop.f32.mrb[0].mxu0
      %v4336 = vadd.f32 0.0, %v4335
      %v4337 = vpop.f32.mrb[0].mxu0
      %v4338 = vpop.f32.mrb[0].mxu0
      %v4339 = vpop.f32.mrb[0].mxu0
      %4340 = vdwg.mxu0
      %v4341 = vadd.f32 %v4268, %v4336
      %v4342 = vld [vmem:[#allocation3] sm:$0x8]
      %v4343 = vld [vmem:[#allocation3 + $0x4] sm:$0x3]
      %s4344 = scalar_lea.vmem %s10, 48
      %v4345 = vld [vmem:[%s4344] sm:$0xf]
      %v4346 = vld [vmem:[%s4344 + $0x4] sm:$0xf]
      %v4347 = vld [vmem:[%s4344 + $0x8] sm:$0xf]
      %v4348 = vld [vmem:[%s4344 + $0xc] sm:$0xf]
      %v4351 = vunpack.c.l.b16 %v4342
      %v4352 = vunpack.c.l.b16 %v4343
      %v4353 = vpack.c.b16 %v4352, %v4351
      %v4354 = vrot.slane %v4353, 3
      %v4359 = vunpack.c.l.b16 %v4345
      %v4360 = vunpack.c.l.b16 %v4346
      %v4361 = vunpack.c.l.b16 %v4347
      %v4362 = vunpack.c.l.b16 %v4348
      %v4363 = vpack.c.b16 %v4360, %v4359
      %v4364 = vpack.c.b16 %v4362, %v4361
      %v4368 = vsel %vm577, %v4354, 0
      %4370 = vmatprep.subr.bf16.mxu0 0
      %4371 = vmatpush1.bf16.msra.mxu0 %v4363
      %4372 = vmatprep.subr.bf16.mxu0 0
      %4373 = vmatpush1.bf16.msra.mxu0 %v4364
      %4374 = vmatprep.subr.bf16.mxu0 0
      %4375 = vmatpush1.bf16.msra.mxu0 0
      %4376 = vmatprep.subr.bf16.mxu0 0
      %4377 = vmatpush1.bf16.msra.mxu0 0
      %4378 = vmatprep.subr.bf16.mxu0 0
      %4379 = vmatpush1.bf16.msra.mxu0 0
      %4380 = vmatprep.subr.bf16.mxu0 0
      %4381 = vmatpush1.bf16.msra.mxu0 0
      %4382 = vmatprep.subr.bf16.mxu0 0
      %4383 = vmatpush1.bf16.msra.mxu0 0
      %4384 = vmatprep.subr.bf16.mxu0 0
      %4385 = vmatpush1.bf16.msra.mxu0 0
      %4386 = vmatprep.subr.bf16.mxu0 0
      %4387 = vmatpush1.bf16.msra.mxu0 0
      %4388 = vmatprep.subr.bf16.mxu0 0
      %4389 = vmatpush1.bf16.msra.mxu0 0
      %4390 = vmatprep.subr.bf16.mxu0 0
      %4391 = vmatpush1.bf16.msra.mxu0 0
      %4392 = vmatprep.subr.bf16.mxu0 0
      %4393 = vmatpush1.bf16.msra.mxu0 0
      %4394 = vmatprep.subr.bf16.mxu0 0
      %4395 = vmatpush1.bf16.msra.mxu0 0
      %4396 = vmatprep.subr.bf16.mxu0 0
      %4397 = vmatpush1.bf16.msra.mxu0 0
      %4398 = vmatprep.subr.bf16.mxu0 0
      %4399 = vmatpush1.bf16.msra.mxu0 0
      %4400 = vmatprep.subr.bf16.mxu0 0
      %4401 = vmatpush1.bf16.msra.mxu0 0
      %4402 = vmatprep.mubr.bf16.mxu0 0
      %4403 = vmatmul.mubr.bf16.gmra.mrb[0].mxu0 %v4368
      %v4404 = vpop.f32.mrb[0].mxu0
      %v4405 = vadd.f32 0.0, %v4404
      %v4406 = vpop.f32.mrb[0].mxu0
      %v4407 = vpop.f32.mrb[0].mxu0
      %v4408 = vpop.f32.mrb[0].mxu0
      %4409 = vdwg.mxu0
      %v4410 = vadd.f32 %v4341, %v4405
      %v4411 = vld [vmem:[#allocation3 + $0x4] sm:$0x7]
      %s4412 = scalar_lea.vmem %s10, 64
      %v4413 = vld [vmem:[%s4412] sm:$0xf]
      %v4414 = vld [vmem:[%s4412 + $0x4] sm:$0xf]
      %v4415 = vld [vmem:[%s4412 + $0x8] sm:$0xf]
      %v4416 = vld [vmem:[%s4412 + $0xc] sm:$0xf]
      %v4421 = vunpack.c.l.b16 %v4413
      %v4422 = vunpack.c.l.b16 %v4414
      %v4423 = vunpack.c.l.b16 %v4415
      %v4424 = vunpack.c.l.b16 %v4416
      %v4425 = vpack.c.b16 %v4422, %v4421
      %v4426 = vpack.c.b16 %v4424, %v4423
      %v4430 = vsel %vm577, %v4411, 0
      %4432 = vmatprep.subr.bf16.mxu0 0
      %4433 = vmatpush1.bf16.msra.mxu0 %v4425
      %4434 = vmatprep.subr.bf16.mxu0 0
      %4435 = vmatpush1.bf16.msra.mxu0 %v4426
      %4436 = vmatprep.subr.bf16.mxu0 0
      %4437 = vmatpush1.bf16.msra.mxu0 0
      %4438 = vmatprep.subr.bf16.mxu0 0
      %4439 = vmatpush1.bf16.msra.mxu0 0
      %4440 = vmatprep.subr.bf16.mxu0 0
      %4441 = vmatpush1.bf16.msra.mxu0 0
      %4442 = vmatprep.subr.bf16.mxu0 0
      %4443 = vmatpush1.bf16.msra.mxu0 0
      %4444 = vmatprep.subr.bf16.mxu0 0
      %4445 = vmatpush1.bf16.msra.mxu0 0
      %4446 = vmatprep.subr.bf16.mxu0 0
      %4447 = vmatpush1.bf16.msra.mxu0 0
      %4448 = vmatprep.subr.bf16.mxu0 0
      %4449 = vmatpush1.bf16.msra.mxu0 0
      %4450 = vmatprep.subr.bf16.mxu0 0
      %4451 = vmatpush1.bf16.msra.mxu0 0
      %4452 = vmatprep.subr.bf16.mxu0 0
      %4453 = vmatpush1.bf16.msra.mxu0 0
      %4454 = vmatprep.subr.bf16.mxu0 0
      %4455 = vmatpush1.bf16.msra.mxu0 0
      %4456 = vmatprep.subr.bf16.mxu0 0
      %4457 = vmatpush1.bf16.msra.mxu0 0
      %4458 = vmatprep.subr.bf16.mxu0 0
      %4459 = vmatpush1.bf16.msra.mxu0 0
      %4460 = vmatprep.subr.bf16.mxu0 0
      %4461 = vmatpush1.bf16.msra.mxu0 0
      %4462 = vmatprep.subr.bf16.mxu0 0
      %4463 = vmatpush1.bf16.msra.mxu0 0
      %4464 = vmatprep.mubr.bf16.mxu0 0
      %4465 = vmatmul.mubr.bf16.gmra.mrb[0].mxu0 %v4430
      %v4466 = vpop.f32.mrb[0].mxu0
      %v4467 = vadd.f32 0.0, %v4466
      %v4468 = vpop.f32.mrb[0].mxu0
      %v4469 = vpop.f32.mrb[0].mxu0
      %v4470 = vpop.f32.mrb[0].mxu0
      %4471 = vdwg.mxu0
      %v4472 = vadd.f32 %v4410, %v4467
      %v4473 = vld [vmem:[#allocation3 + $0x4] sm:$0xe]
      %s4474 = scalar_lea.vmem %s10, 80
      %v4475 = vld [vmem:[%s4474] sm:$0xf]
      %v4476 = vld [vmem:[%s4474 + $0x4] sm:$0xf]
      %v4477 = vld [vmem:[%s4474 + $0x8] sm:$0xf]
      %v4478 = vld [vmem:[%s4474 + $0xc] sm:$0xf]
      %v4480 = vunpack.c.l.b16 %v4473
      %v4481 = vpack.c.b16 %v4480, %v4480
      %v4482 = vrot.slane %v4481, 1
      %v4487 = vunpack.c.l.b16 %v4475
      %v4488 = vunpack.c.l.b16 %v4476
      %v4489 = vunpack.c.l.b16 %v4477
      %v4490 = vunpack.c.l.b16 %v4478
      %v4491 = vpack.c.b16 %v4488, %v4487
      %v4492 = vpack.c.b16 %v4490, %v4489
      %v4496 = vsel %vm577, %v4482, 0
      %4498 = vmatprep.subr.bf16.mxu0 0
      %4499 = vmatpush1.bf16.msra.mxu0 %v4491
      %4500 = vmatprep.subr.bf16.mxu0 0
      %4501 = vmatpush1.bf16.msra.mxu0 %v4492
      %4502 = vmatprep.subr.bf16.mxu0 0
      %4503 = vmatpush1.bf16.msra.mxu0 0
      %4504 = vmatprep.subr.bf16.mxu0 0
      %4505 = vmatpush1.bf16.msra.mxu0 0
      %4506 = vmatprep.subr.bf16.mxu0 0
      %4507 = vmatpush1.bf16.msra.mxu0 0
      %4508 = vmatprep.subr.bf16.mxu0 0
      %4509 = vmatpush1.bf16.msra.mxu0 0
      %4510 = vmatprep.subr.bf16.mxu0 0
      %4511 = vmatpush1.bf16.msra.mxu0 0
      %4512 = vmatprep.subr.bf16.mxu0 0
      %4513 = vmatpush1.bf16.msra.mxu0 0
      %4514 = vmatprep.subr.bf16.mxu0 0
      %4515 = vmatpush1.bf16.msra.mxu0 0
      %4516 = vmatprep.subr.bf16.mxu0 0
      %4517 = vmatpush1.bf16.msra.mxu0 0
      %4518 = vmatprep.subr.bf16.mxu0 0
      %4519 = vmatpush1.bf16.msra.mxu0 0
      %4520 = vmatprep.subr.bf16.mxu0 0
      %4521 = vmatpush1.bf16.msra.mxu0 0
      %4522 = vmatprep.subr.bf16.mxu0 0
      %4523 = vmatpush1.bf16.msra.mxu0 0
      %4524 = vmatprep.subr.bf16.mxu0 0
      %4525 = vmatpush1.bf16.msra.mxu0 0
      %4526 = vmatprep.subr.bf16.mxu0 0
      %4527 = vmatpush1.bf16.msra.mxu0 0
      %4528 = vmatprep.subr.bf16.mxu0 0
      %4529 = vmatpush1.bf16.msra.mxu0 0
      %4530 = vmatprep.mubr.bf16.mxu0 0
      %4531 = vmatmul.mubr.bf16.gmra.mrb[0].mxu0 %v4496
      %v4532 = vpop.f32.mrb[0].mxu0
      %v4533 = vadd.f32 0.0, %v4532
      %v4534 = vpop.f32.mrb[0].mxu0
      %v4535 = vpop.f32.mrb[0].mxu0
      %v4536 = vpop.f32.mrb[0].mxu0
      %4537 = vdwg.mxu0
      %v4538 = vadd.f32 %v4472, %v4533
      %v4539 = vld [vmem:[#allocation3 + $0x4] sm:$0xc]
      %v4540 = vld [vmem:[#allocation3 + $0x8] sm:$0x1]
      %s4541 = scalar_lea.vmem %s10, 96
      %v4542 = vld [vmem:[%s4541] sm:$0xf]
      %v4543 = vld [vmem:[%s4541 + $0x4] sm:$0xf]
      %v4544 = vld [vmem:[%s4541 + $0x8] sm:$0xf]
      %v4545 = vld [vmem:[%s4541 + $0xc] sm:$0xf]
      %v4548 = vunpack.c.l.b16 %v4539
      %v4549 = vunpack.c.l.b16 %v4540
      %v4550 = vpack.c.b16 %v4549, %v4548
      %v4551 = vrot.slane %v4550, 2
      %v4556 = vunpack.c.l.b16 %v4542
      %v4557 = vunpack.c.l.b16 %v4543
      %v4558 = vunpack.c.l.b16 %v4544
      %v4559 = vunpack.c.l.b16 %v4545
      %v4560 = vpack.c.b16 %v4557, %v4556
      %v4561 = vpack.c.b16 %v4559, %v4558
      %v4565 = vsel %vm577, %v4551, 0
      %4567 = vmatprep.subr.bf16.mxu0 0
      %4568 = vmatpush1.bf16.msra.mxu0 %v4560
      %4569 = vmatprep.subr.bf16.mxu0 0
      %4570 = vmatpush1.bf16.msra.mxu0 %v4561
      %4571 = vmatprep.subr.bf16.mxu0 0
      %4572 = vmatpush1.bf16.msra.mxu0 0
      %4573 = vmatprep.subr.bf16.mxu0 0
      %4574 = vmatpush1.bf16.msra.mxu0 0
      %4575 = vmatprep.subr.bf16.mxu0 0
      %4576 = vmatpush1.bf16.msra.mxu0 0
      %4577 = vmatprep.subr.bf16.mxu0 0
      %4578 = vmatpush1.bf16.msra.mxu0 0
      %4579 = vmatprep.subr.bf16.mxu0 0
      %4580 = vmatpush1.bf16.msra.mxu0 0
      %4581 = vmatprep.subr.bf16.mxu0 0
      %4582 = vmatpush1.bf16.msra.mxu0 0
      %4583 = vmatprep.subr.bf16.mxu0 0
      %4584 = vmatpush1.bf16.msra.mxu0 0
      %4585 = vmatprep.subr.bf16.mxu0 0
      %4586 = vmatpush1.bf16.msra.mxu0 0
      %4587 = vmatprep.subr.bf16.mxu0 0
      %4588 = vmatpush1.bf16.msra.mxu0 0
      %4589 = vmatprep.subr.bf16.mxu0 0
      %4590 = vmatpush1.bf16.msra.mxu0 0
      %4591 = vmatprep.subr.bf16.mxu0 0
      %4592 = vmatpush1.bf16.msra.mxu0 0
      %4593 = vmatprep.subr.bf16.mxu0 0
      %4594 = vmatpush1.bf16.msra.mxu0 0
      %4595 = vmatprep.subr.bf16.mxu0 0
      %4596 = vmatpush1.bf16.msra.mxu0 0
      %4597 = vmatprep.subr.bf16.mxu0 0
      %4598 = vmatpush1.bf16.msra.mxu0 0
      %4599 = vmatprep.mubr.bf16.mxu0 0
      %4600 = vmatmul.mubr.bf16.gmra.mrb[0].mxu0 %v4565
      %v4601 = vpop.f32.mrb[0].mxu0
      %v4602 = vadd.f32 0.0, %v4601
      %v4603 = vpop.f32.mrb[0].mxu0
      %v4604 = vpop.f32.mrb[0].mxu0
      %v4605 = vpop.f32.mrb[0].mxu0
      %4606 = vdwg.mxu0
      %v4607 = vadd.f32 %v4538, %v4602
      %v4608 = vld [vmem:[#allocation3 + $0x4] sm:$0x8]
      %v4609 = vld [vmem:[#allocation3 + $0x8] sm:$0x3]
      %s4610 = scalar_lea.vmem %s10, 112
      %v4611 = vld [vmem:[%s4610] sm:$0xf]
      %v4612 = vld [vmem:[%s4610 + $0x4] sm:$0xf]
      %v4613 = vld [vmem:[%s4610 + $0x8] sm:$0xf]
      %v4614 = vld [vmem:[%s4610 + $0xc] sm:$0xf]
      %v4617 = vunpack.c.l.b16 %v4608
      %v4618 = vunpack.c.l.b16 %v4609
      %v4619 = vpack.c.b16 %v4618, %v4617
      %v4620 = vrot.slane %v4619, 3
      %v4625 = vunpack.c.l.b16 %v4611
      %v4626 = vunpack.c.l.b16 %v4612
      %v4627 = vunpack.c.l.b16 %v4613
      %v4628 = vunpack.c.l.b16 %v4614
      %v4629 = vpack.c.b16 %v4626, %v4625
      %v4630 = vpack.c.b16 %v4628, %v4627
      %v4634 = vsel %vm577, %v4620, 0
      %4636 = vmatprep.subr.bf16.mxu0 0
      %4637 = vmatpush1.bf16.msra.mxu0 %v4629
      %4638 = vmatprep.subr.bf16.mxu0 0
      %4639 = vmatpush1.bf16.msra.mxu0 %v4630
      %4640 = vmatprep.subr.bf16.mxu0 0
      %4641 = vmatpush1.bf16.msra.mxu0 0
      %4642 = vmatprep.subr.bf16.mxu0 0
      %4643 = vmatpush1.bf16.msra.mxu0 0
      %4644 = vmatprep.subr.bf16.mxu0 0
      %4645 = vmatpush1.bf16.msra.mxu0 0
      %4646 = vmatprep.subr.bf16.mxu0 0
      %4647 = vmatpush1.bf16.msra.mxu0 0
      %4648 = vmatprep.subr.bf16.mxu0 0
      %4649 = vmatpush1.bf16.msra.mxu0 0
      %4650 = vmatprep.subr.bf16.mxu0 0
      %4651 = vmatpush1.bf16.msra.mxu0 0
      %4652 = vmatprep.subr.bf16.mxu0 0
      %4653 = vmatpush1.bf16.msra.mxu0 0
      %4654 = vmatprep.subr.bf16.mxu0 0
      %4655 = vmatpush1.bf16.msra.mxu0 0
      %4656 = vmatprep.subr.bf16.mxu0 0
      %4657 = vmatpush1.bf16.msra.mxu0 0
      %4658 = vmatprep.subr.bf16.mxu0 0
      %4659 = vmatpush1.bf16.msra.mxu0 0
      %4660 = vmatprep.subr.bf16.mxu0 0
      %4661 = vmatpush1.bf16.msra.mxu0 0
      %4662 = vmatprep.subr.bf16.mxu0 0
      %4663 = vmatpush1.bf16.msra.mxu0 0
      %4664 = vmatprep.subr.bf16.mxu0 0
      %4665 = vmatpush1.bf16.msra.mxu0 0
      %4666 = vmatprep.subr.bf16.mxu0 0
      %4667 = vmatpush1.bf16.msra.mxu0 0
      %4668 = vmatprep.mubr.bf16.mxu0 0
      %4669 = vmatmul.mubr.bf16.gmra.mrb[0].mxu0 %v4634
      %v4670 = vpop.f32.mrb[0].mxu0
      %v4671 = vadd.f32 0.0, %v4670
      %v4672 = vpop.f32.mrb[0].mxu0
      %v4673 = vpop.f32.mrb[0].mxu0
      %v4674 = vpop.f32.mrb[0].mxu0
      %4675 = vdwg.mxu0
      %v4676 = vadd.f32 %v4607, %v4671
      %v4677 = vld [vmem:[#allocation3 + $0x8] sm:$0x7]
      %s4678 = scalar_lea.vmem %s10, 128
      %v4679 = vld [vmem:[%s4678] sm:$0xf]
      %v4680 = vld [vmem:[%s4678 + $0x4] sm:$0xf]
      %v4681 = vld [vmem:[%s4678 + $0x8] sm:$0xf]
      %v4682 = vld [vmem:[%s4678 + $0xc] sm:$0xf]
      %v4687 = vunpack.c.l.b16 %v4679
      %v4688 = vunpack.c.l.b16 %v4680
      %v4689 = vunpack.c.l.b16 %v4681
      %v4690 = vunpack.c.l.b16 %v4682
      %v4691 = vpack.c.b16 %v4688, %v4687
      %v4692 = vpack.c.b16 %v4690, %v4689
      %v4696 = vsel %vm577, %v4677, 0
      %4698 = vmatprep.subr.bf16.mxu0 0
      %4699 = vmatpush1.bf16.msra.mxu0 %v4691
      %4700 = vmatprep.subr.bf16.mxu0 0
      %4701 = vmatpush1.bf16.msra.mxu0 %v4692
      %4702 = vmatprep.subr.bf16.mxu0 0
      %4703 = vmatpush1.bf16.msra.mxu0 0
      %4704 = vmatprep.subr.bf16.mxu0 0
      %4705 = vmatpush1.bf16.msra.mxu0 0
      %4706 = vmatprep.subr.bf16.mxu0 0
      %4707 = vmatpush1.bf16.msra.mxu0 0
      %4708 = vmatprep.subr.bf16.mxu0 0
      %4709 = vmatpush1.bf16.msra.mxu0 0
      %4710 = vmatprep.subr.bf16.mxu0 0
      %4711 = vmatpush1.bf16.msra.mxu0 0
      %4712 = vmatprep.subr.bf16.mxu0 0
      %4713 = vmatpush1.bf16.msra.mxu0 0
      %4714 = vmatprep.subr.bf16.mxu0 0
      %4715 = vmatpush1.bf16.msra.mxu0 0
      %4716 = vmatprep.subr.bf16.mxu0 0
      %4717 = vmatpush1.bf16.msra.mxu0 0
      %4718 = vmatprep.subr.bf16.mxu0 0
      %4719 = vmatpush1.bf16.msra.mxu0 0
      %4720 = vmatprep.subr.bf16.mxu0 0
      %4721 = vmatpush1.bf16.msra.mxu0 0
      %4722 = vmatprep.subr.bf16.mxu0 0
      %4723 = vmatpush1.bf16.msra.mxu0 0
      %4724 = vmatprep.subr.bf16.mxu0 0
      %4725 = vmatpush1.bf16.msra.mxu0 0
      %4726 = vmatprep.subr.bf16.mxu0 0
      %4727 = vmatpush1.bf16.msra.mxu0 0
      %4728 = vmatprep.subr.bf16.mxu0 0
      %4729 = vmatpush1.bf16.msra.mxu0 0
      %4730 = vmatprep.mubr.bf16.mxu0 0
      %4731 = vmatmul.mubr.bf16.gmra.mrb[0].mxu0 %v4696
      %v4732 = vpop.f32.mrb[0].mxu0
      %v4733 = vadd.f32 0.0, %v4732
      %v4734 = vpop.f32.mrb[0].mxu0
      %v4735 = vpop.f32.mrb[0].mxu0
      %v4736 = vpop.f32.mrb[0].mxu0
      %4737 = vdwg.mxu0
      %v4738 = vadd.f32 %v4676, %v4733
      %v4739 = vld [vmem:[#allocation3 + $0x8] sm:$0xe]
      %s4740 = scalar_lea.vmem %s10, 144
      %v4741 = vld [vmem:[%s4740] sm:$0xf]
      %v4742 = vld [vmem:[%s4740 + $0x4] sm:$0xf]
      %v4743 = vld [vmem:[%s4740 + $0x8] sm:$0xf]
      %v4744 = vld [vmem:[%s4740 + $0xc] sm:$0xf]
      %v4746 = vunpack.c.l.b16 %v4739
      %v4747 = vpack.c.b16 %v4746, %v4746
      %v4748 = vrot.slane %v4747, 1
      %v4753 = vunpack.c.l.b16 %v4741
      %v4754 = vunpack.c.l.b16 %v4742
      %v4755 = vunpack.c.l.b16 %v4743
      %v4756 = vunpack.c.l.b16 %v4744
      %v4757 = vpack.c.b16 %v4754, %v4753
      %v4758 = vpack.c.b16 %v4756, %v4755
      %v4762 = vsel %vm577, %v4748, 0
      %4764 = vmatprep.subr.bf16.mxu0 0
      %4765 = vmatpush1.bf16.msra.mxu0 %v4757
      %4766 = vmatprep.subr.bf16.mxu0 0
      %4767 = vmatpush1.bf16.msra.mxu0 %v4758
      %4768 = vmatprep.subr.bf16.mxu0 0
      %4769 = vmatpush1.bf16.msra.mxu0 0
      %4770 = vmatprep.subr.bf16.mxu0 0
      %4771 = vmatpush1.bf16.msra.mxu0 0
      %4772 = vmatprep.subr.bf16.mxu0 0
      %4773 = vmatpush1.bf16.msra.mxu0 0
      %4774 = vmatprep.subr.bf16.mxu0 0
      %4775 = vmatpush1.bf16.msra.mxu0 0
      %4776 = vmatprep.subr.bf16.mxu0 0
      %4777 = vmatpush1.bf16.msra.mxu0 0
      %4778 = vmatprep.subr.bf16.mxu0 0
      %4779 = vmatpush1.bf16.msra.mxu0 0
      %4780 = vmatprep.subr.bf16.mxu0 0
      %4781 = vmatpush1.bf16.msra.mxu0 0
      %4782 = vmatprep.subr.bf16.mxu0 0
      %4783 = vmatpush1.bf16.msra.mxu0 0
      %4784 = vmatprep.subr.bf16.mxu0 0
      %4785 = vmatpush1.bf16.msra.mxu0 0
      %4786 = vmatprep.subr.bf16.mxu0 0
      %4787 = vmatpush1.bf16.msra.mxu0 0
      %4788 = vmatprep.subr.bf16.mxu0 0
      %4789 = vmatpush1.bf16.msra.mxu0 0
      %4790 = vmatprep.subr.bf16.mxu0 0
      %4791 = vmatpush1.bf16.msra.mxu0 0
      %4792 = vmatprep.subr.bf16.mxu0 0
      %4793 = vmatpush1.bf16.msra.mxu0 0
      %4794 = vmatprep.subr.bf16.mxu0 0
      %4795 = vmatpush1.bf16.msra.mxu0 0
      %4796 = vmatprep.mubr.bf16.mxu0 0
      %4797 = vmatmul.mubr.bf16.gmra.mrb[0].mxu0 %v4762
      %v4798 = vpop.f32.mrb[0].mxu0
      %v4799 = vadd.f32 0.0, %v4798
      %v4800 = vpop.f32.mrb[0].mxu0
      %v4801 = vpop.f32.mrb[0].mxu0
      %v4802 = vpop.f32.mrb[0].mxu0
      %4803 = vdwg.mxu0
      %v4804 = vadd.f32 %v4738, %v4799
      %v4805 = vld [vmem:[%s11] sm:$0x1]
      %v4807 = vlaneseq
      %v4808 = vshrl.u32 %v4807, 7
      %v4809 = vsub.s32 0, %v4808
      %v4810 = vrot.slane %v4805, %v4809
      %v4812 = vadd.f32 %v4804, %v4810
      %v4813 = vpack.c.bf16 %v4812, %v4812
      %v4814 = vld [vmem:[%s12] sm:$0xf]
      %v4815 = vld [vmem:[%s12 + $0x4] sm:$0xf]
      %v4816 = vld [vmem:[%s14] sm:$0x1]
      %v4818 = vlaneseq
      %v4819 = vshrl.u32 %v4818, 7
      %v4820 = vsub.s32 0, %v4819
      %v4821 = vrot.slane %v4816, %v4820
      %v4825 = vunpack.c.l.b16 %v4814
      %v4826 = vunpack.c.l.b16 %v4815
      %v4827 = vpack.c.b16 %v4826, %v4825
      %vm4829 = vcmask 130048
      %v4831 = vsel %vm4829, %v4813, 0
      %4833 = vmatprep.subr.bf16.mxu0 0
      %4834 = vmatpush1.bf16.msra.mxu0 %v4827
      %4835 = vmatprep.subr.bf16.mxu0 0
      %4836 = vmatpush1.bf16.msra.mxu0 0
      %4837 = vmatprep.subr.bf16.mxu0 0
      %4838 = vmatpush1.bf16.msra.mxu0 0
      %4839 = vmatprep.subr.bf16.mxu0 0
      %4840 = vmatpush1.bf16.msra.mxu0 0
      %4841 = vmatprep.subr.bf16.mxu0 0
      %4842 = vmatpush1.bf16.msra.mxu0 0
      %4843 = vmatprep.subr.bf16.mxu0 0
      %4844 = vmatpush1.bf16.msra.mxu0 0
      %4845 = vmatprep.subr.bf16.mxu0 0
      %4846 = vmatpush1.bf16.msra.mxu0 0
      %4847 = vmatprep.subr.bf16.mxu0 0
      %4848 = vmatpush1.bf16.msra.mxu0 0
      %4849 = vmatprep.subr.bf16.mxu0 0
      %4850 = vmatpush1.bf16.msra.mxu0 0
      %4851 = vmatprep.subr.bf16.mxu0 0
      %4852 = vmatpush1.bf16.msra.mxu0 0
      %4853 = vmatprep.subr.bf16.mxu0 0
      %4854 = vmatpush1.bf16.msra.mxu0 0
      %4855 = vmatprep.subr.bf16.mxu0 0
      %4856 = vmatpush1.bf16.msra.mxu0 0
      %4857 = vmatprep.subr.bf16.mxu0 0
      %4858 = vmatpush1.bf16.msra.mxu0 0
      %4859 = vmatprep.subr.bf16.mxu0 0
      %4860 = vmatpush1.bf16.msra.mxu0 0
      %4861 = vmatprep.subr.bf16.mxu0 0
      %4862 = vmatpush1.bf16.msra.mxu0 0
      %4863 = vmatprep.subr.bf16.mxu0 0
      %4864 = vmatpush1.bf16.msra.mxu0 0
      %4865 = vmatprep.mubr.bf16.mxu0 0
      %4866 = vmatmul.mubr.bf16.gmra.mrb[0].mxu0 %v4831
      %v4867 = vpop.f32.mrb[0].mxu0
      %v4868 = vadd.f32 %v4821, %v4867
      %v4869 = vpop.f32.mrb[0].mxu0
      %v4870 = vpop.f32.mrb[0].mxu0
      %v4871 = vpop.f32.mrb[0].mxu0
      %4872 = vdwg.mxu0
      %v4873 = vpack.c.bf16 %v648, %v648
      %v4874 = vld [vmem:[%s13] sm:$0xf]
      %v4875 = vld [vmem:[%s13 + $0x4] sm:$0xf]
      %v4878 = vunpack.c.l.b16 %v4874
      %v4879 = vunpack.c.l.b16 %v4875
      %v4880 = vpack.c.b16 %v4879, %v4878
      %v4883 = vsel %vm4829, %v4873, 0
      %4885 = vmatprep.subr.bf16.mxu0 0
      %4886 = vmatpush1.bf16.msra.mxu0 %v4880
      %4887 = vmatprep.subr.bf16.mxu0 0
      %4888 = vmatpush1.bf16.msra.mxu0 0
      %4889 = vmatprep.subr.bf16.mxu0 0
      %4890 = vmatpush1.bf16.msra.mxu0 0
      %4891 = vmatprep.subr.bf16.mxu0 0
      %4892 = vmatpush1.bf16.msra.mxu0 0
      %4893 = vmatprep.subr.bf16.mxu0 0
      %4894 = vmatpush1.bf16.msra.mxu0 0
      %4895 = vmatprep.subr.bf16.mxu0 0
      %4896 = vmatpush1.bf16.msra.mxu0 0
      %4897 = vmatprep.subr.bf16.mxu0 0
      %4898 = vmatpush1.bf16.msra.mxu0 0
      %4899 = vmatprep.subr.bf16.mxu0 0
      %4900 = vmatpush1.bf16.msra.mxu0 0
      %4901 = vmatprep.subr.bf16.mxu0 0
      %4902 = vmatpush1.bf16.msra.mxu0 0
      %4903 = vmatprep.subr.bf16.mxu0 0
      %4904 = vmatpush1.bf16.msra.mxu0 0
      %4905 = vmatprep.subr.bf16.mxu0 0
      %4906 = vmatpush1.bf16.msra.mxu0 0
      %4907 = vmatprep.subr.bf16.mxu0 0
      %4908 = vmatpush1.bf16.msra.mxu0 0
      %4909 = vmatprep.subr.bf16.mxu0 0
      %4910 = vmatpush1.bf16.msra.mxu0 0
      %4911 = vmatprep.subr.bf16.mxu0 0
      %4912 = vmatpush1.bf16.msra.mxu0 0
      %4913 = vmatprep.subr.bf16.mxu0 0
      %4914 = vmatpush1.bf16.msra.mxu0 0
      %4915 = vmatprep.subr.bf16.mxu0 0
      %4916 = vmatpush1.bf16.msra.mxu0 0
      %4917 = vmatprep.mubr.bf16.mxu0 0
      %4918 = vmatmul.mubr.bf16.gmra.mrb[0].mxu0 %v4883
      %v4919 = vpop.f32.mrb[0].mxu0
      %v4920 = vadd.f32 0.0, %v4919
      %v4921 = vpop.f32.mrb[0].mxu0
      %v4922 = vpop.f32.mrb[0].mxu0
      %v4923 = vpop.f32.mrb[0].mxu0
      %4924 = vdwg.mxu0
      %v4925 = vadd.f32 %v4868, %v4920
      %v4926 = vxor.u32 %v4925, 2147483648
      %v4927 = vmul.f32 %v4926, 1.442695
      %v4928 = vpow.pop %v4927
      %v4929 = vadd.f32 %v4928, 1.0
      %v4930 = vrcp.pop %v4929
      %v4931 = vmul.f32 1.0, %v4930
      %v4932 = vtanh.pop %v4925
      %4934 = vrot.lane.b32.xlu0 %v729, 16
      %v4935 = vpop.permute.xlu0 %4934
      %v4937 = vmul.f32 %v4931, %v4935
      %4939 = vrot.lane.b32.xlu0 %v4932, 96
      %v4940 = vpop.permute.xlu0 %4939
      %v4942 = vmul.f32 %v4931, %v4940
      %4944 = vrot.lane.b32.xlu0 %v4942, 16
      %v4945 = vpop.permute.xlu0 %4944
      %v4947 = vadd.f32 %v4937, %v4945
      %v4948 = vtanh.pop %v4947
      %4950 = vrot.lane.b32.xlu0 %v4948, 32
      %v4951 = vpop.permute.xlu0 %4950
      %v4953 = vmul.f32 %v4931, %v4951
      %v4954 = vpack.c.bf16 %v4953, %v4953
      %4956 = vrot.lane.b32.xlu0 %v4954, 80
      %v4957 = vpop.permute.xlu0 %4956
      %v4959 = vsel %vm4829, %v4957, 0
      %4961 = vmatprep.subr.bf16.mxu0 0
      %4962 = vmatpush1.bf16.msra.mxu0 %v4880
      %4963 = vmatprep.subr.bf16.mxu0 0
      %4964 = vmatpush1.bf16.msra.mxu0 0
      %4965 = vmatprep.subr.bf16.mxu0 0
      %4966 = vmatpush1.bf16.msra.mxu0 0
      %4967 = vmatprep.subr.bf16.mxu0 0
      %4968 = vmatpush1.bf16.msra.mxu0 0
      %4969 = vmatprep.subr.bf16.mxu0 0
      %4970 = vmatpush1.bf16.msra.mxu0 0
      %4971 = vmatprep.subr.bf16.mxu0 0
      %4972 = vmatpush1.bf16.msra.mxu0 0
      %4973 = vmatprep.subr.bf16.mxu0 0
      %4974 = vmatpush1.bf16.msra.mxu0 0
      %4975 = vmatprep.subr.bf16.mxu0 0
      %4976 = vmatpush1.bf16.msra.mxu0 0
      %4977 = vmatprep.subr.bf16.mxu0 0
      %4978 = vmatpush1.bf16.msra.mxu0 0
      %4979 = vmatprep.subr.bf16.mxu0 0
      %4980 = vmatpush1.bf16.msra.mxu0 0
      %4981 = vmatprep.subr.bf16.mxu0 0
      %4982 = vmatpush1.bf16.msra.mxu0 0
      %4983 = vmatprep.subr.bf16.mxu0 0
      %4984 = vmatpush1.bf16.msra.mxu0 0
      %4985 = vmatprep.subr.bf16.mxu0 0
      %4986 = vmatpush1.bf16.msra.mxu0 0
      %4987 = vmatprep.subr.bf16.mxu0 0
      %4988 = vmatpush1.bf16.msra.mxu0 0
      %4989 = vmatprep.subr.bf16.mxu0 0
      %4990 = vmatpush1.bf16.msra.mxu0 0
      %4991 = vmatprep.subr.bf16.mxu0 0
      %4992 = vmatpush1.bf16.msra.mxu0 0
      %4993 = vmatprep.mubr.bf16.mxu0 0
      %4994 = vmatmul.mubr.bf16.gmra.mrb[0].mxu0 %v4959
      %v4995 = vpop.f32.mrb[0].mxu0
      %v4996 = vadd.f32 0.0, %v4995
      %v4997 = vpop.f32.mrb[0].mxu0
      %v4998 = vpop.f32.mrb[0].mxu0
      %v4999 = vpop.f32.mrb[0].mxu0
      %5000 = vdwg.mxu0
      %v5002 = vrot.slane %v4996, 6
      %v5004 = vadd.f32 %v4868, %v5002
      %v5005 = vxor.u32 %v5004, 2147483648
      %v5006 = vmul.f32 %v5005, 1.442695
      %v5007 = vpow.pop %v5006
      %v5008 = vadd.f32 %v5007, 1.0
      %v5009 = vrcp.pop %v5008
      %v5010 = vmul.f32 1.0, %v5009
      %v5011 = vtanh.pop %v5004
      %v5013 = vrot.slane %v4947, 6
      %v5015 = vmul.f32 %v5010, %v5013
      %5017 = vrot.lane.b32.xlu0 %v5011, 96
      %v5018 = vpop.permute.xlu0 %5017
      %v5020 = vmul.f32 %v5010, %v5018
      %5022 = vrot.lane.b32.xlu0 %v5020, 16
      %v5023 = vpop.permute.xlu0 %5022
      %v5025 = vadd.f32 %v5015, %v5023
      %v5026 = vtanh.pop %v5025
      %5028 = vrot.lane.b32.xlu0 %v5026, 32
      %v5029 = vpop.permute.xlu0 %5028
      %v5031 = vmul.f32 %v5010, %v5029
      %v5032 = vpack.c.bf16 %v5031, %v5031
      %v5034 = vrot.slane %v5032, 1
      %5035 = vrot.lane.b32.xlu0 %v5034, 80
      %v5036 = vpop.permute.xlu0 %5035
      %v5038 = vsel %vm4829, %v5036, 0
      %5040 = vmatprep.subr.bf16.mxu0 0
      %5041 = vmatpush1.bf16.msra.mxu0 %v4880
      %5042 = vmatprep.subr.bf16.mxu0 0
      %5043 = vmatpush1.bf16.msra.mxu0 0
      %5044 = vmatprep.subr.bf16.mxu0 0
      %5045 = vmatpush1.bf16.msra.mxu0 0
      %5046 = vmatprep.subr.bf16.mxu0 0
      %5047 = vmatpush1.bf16.msra.mxu0 0
      %5048 = vmatprep.subr.bf16.mxu0 0
      %5049 = vmatpush1.bf16.msra.mxu0 0
      %5050 = vmatprep.subr.bf16.mxu0 0
      %5051 = vmatpush1.bf16.msra.mxu0 0
      %5052 = vmatprep.subr.bf16.mxu0 0
      %5053 = vmatpush1.bf16.msra.mxu0 0
      %5054 = vmatprep.subr.bf16.mxu0 0
      %5055 = vmatpush1.bf16.msra.mxu0 0
      %5056 = vmatprep.subr.bf16.mxu0 0
      %5057 = vmatpush1.bf16.msra.mxu0 0
      %5058 = vmatprep.subr.bf16.mxu0 0
      %5059 = vmatpush1.bf16.msra.mxu0 0
      %5060 = vmatprep.subr.bf16.mxu0 0
      %5061 = vmatpush1.bf16.msra.mxu0 0
      %5062 = vmatprep.subr.bf16.mxu0 0
      %5063 = vmatpush1.bf16.msra.mxu0 0
      %5064 = vmatprep.subr.bf16.mxu0 0
      %5065 = vmatpush1.bf16.msra.mxu0 0
      %5066 = vmatprep.subr.bf16.mxu0 0
      %5067 = vmatpush1.bf16.msra.mxu0 0
      %5068 = vmatprep.subr.bf16.mxu0 0
      %5069 = vmatpush1.bf16.msra.mxu0 0
      %5070 = vmatprep.subr.bf16.mxu0 0
      %5071 = vmatpush1.bf16.msra.mxu0 0
      %5072 = vmatprep.mubr.bf16.mxu0 0
      %5073 = vmatmul.mubr.bf16.gmra.mrb[0].mxu0 %v5038
      %v5074 = vpop.f32.mrb[0].mxu0
      %v5075 = vadd.f32 0.0, %v5074
      %v5076 = vpop.f32.mrb[0].mxu0
      %v5077 = vpop.f32.mrb[0].mxu0
      %v5078 = vpop.f32.mrb[0].mxu0
      %5079 = vdwg.mxu0
      %v5081 = vrot.slane %v5075, 4
      %v5083 = vadd.f32 %v4868, %v5081
      %v5084 = vxor.u32 %v5083, 2147483648
      %v5085 = vmul.f32 %v5084, 1.442695
      %v5086 = vpow.pop %v5085
      %v5087 = vadd.f32 %v5086, 1.0
      %v5088 = vrcp.pop %v5087
      %v5089 = vmul.f32 1.0, %v5088
      %v5090 = vtanh.pop %v5083
      %v5092 = vrot.slane %v5025, 6
      %v5094 = vmul.f32 %v5089, %v5092
      %5096 = vrot.lane.b32.xlu0 %v5090, 96
      %v5097 = vpop.permute.xlu0 %5096
      %v5099 = vmul.f32 %v5089, %v5097
      %5101 = vrot.lane.b32.xlu0 %v5099, 16
      %v5102 = vpop.permute.xlu0 %5101
      %v5104 = vadd.f32 %v5094, %v5102
      %v5105 = vtanh.pop %v5104
      %5107 = vrot.lane.b32.xlu0 %v5105, 32
      %v5108 = vpop.permute.xlu0 %5107
      %v5110 = vmul.f32 %v5089, %v5108
      %v5111 = vld [vmem:[%s15] sm:$0x1]
      %v5113 = vlaneseq
      %v5114 = vshrl.u32 %v5113, 7
      %v5115 = vsub.s32 0, %v5114
      %v5116 = vrot.slane %v5111, %v5115
      %5117 = vrot.lane.b32.xlu0 %v5116, 48
      %v5118 = vpop.permute.xlu0 %5117
      %v5120 = vmul.f32 %v5110, %v5118
      %5122 = vrot.lane.b32.xlu0 %v5120, 80
      %v5123 = vpop.permute.xlu0 %5122
      %vm5125 = vcmask 128004
      %v5126 = vsel %vm5125, %v5123, 0.0
      %5127 = vadd.xlane.f32.xlu0 %v5126
      %v5128 = vpop.xlane.xlu0 %5127
      %v5129 = vld [vmem:[#allocation4] sm:$0x1]
      %v5131 = vlaneseq
      %v5132 = vshrl.u32 %v5131, 7
      %v5133 = vsub.s32 0, %v5132
      %v5134 = vrot.slane %v5129, %v5133
      %v5136 = vadd.f32 %v5128, %v5134
      %v5138 = vrot.slane %v5136, 1
      %v5140 = vsub.f32 %v5136, %v5138
      %v5141 = vxor.u32 %v5140, 2147483648
      %v5142 = vmul.f32 %v5141, 1.442695
      %v5143 = vpow.pop %v5142
      %v5144 = vadd.f32 %v5143, 1.0
      %v5145 = vrcp.pop %v5144
      %v5146 = vmul.f32 1.0, %v5145
      %vm5147 = vcmask 4100
      %5148 = vst.msk [vmem:[%s563 - $0x4] sm:$0x10] %vm5147, %v5146
      %p5149 = scmp.lt.s32.totalorder %s30, 1
      %s5150 = scalar_select %p5149, %s30, 1
      %s5151 = scalar_lea.vmem %s17, %s5150
      // Predicated region
      $region89: #{rank_net.1} parent=87 // pred_check
        %p5152 = pneg %p415
      $region90: #{rank_net.1} parent=87 // pred_check_branch
        %5154 = sbr.rel (%p5152) target = $region92
      $region91: #{rank_net.1} parent=87 // pred_region
        _
      $region92: #{rank_net.1} parent=87 // pred_fallthru
        _
    $region88: #{rank_net.1} parent=5 // pred_fallthru
      _
    %p5155 = scmp.le.s32.totalorder 2, %s25
    // Predicated region
    $region93: #{rank_net.1} parent=5 // pred_check
      %p5156 = pneg %p5155
    $region94: #{rank_net.1} parent=5 // pred_check_branch
      %5158 = sbr.rel (%p5156) target = $region96
    $region95: #{rank_net.1} parent=5 // pred_region
      %s5159 = ssub.s32 %s25, 2
      // Predicated region
      $region97: #{rank_net.1} parent=95 // pred_check
        %p5160 = pneg %p421
      $region98: #{rank_net.1} parent=95 // pred_check_branch
        %5162 = sbr.rel (%p5160) target = $region100
      $region99: #{rank_net.1} parent=95 // pred_region
        %p5163 = scmp.lt.s32.totalorder %s31, 1
        %s5164 = scalar_select %p5163, %s31, 1
        %s5165 = scalar_lea.vmem %s17, %s5164
      $region100: #{rank_net.1} parent=95 // pred_fallthru
        _
    $region96: #{rank_net.1} parent=5 // pred_fallthru
      _
  $region6: #{rank_net.1} parent=0 // loop_footer
    %s29 = sadd.s32 1, %s25
  $region7: #{rank_net.1} parent=0 // loop_footer_branch
    %24 = sbr.rel target = $region3
  $region8: #{rank_net.1} parent=0 // loop_exit
    _

</llo_original>
